<compile_context>
chip_gen: v7x
topology: tpu7x:2x2x1
jax: 0.10.0
libtpu: 0.0.40
codegen_flags: <defaults>
</compile_context>

<pallas_src>
import functools
import math

import jax
import jax.numpy as jnp
from jax.experimental import pallas as pl
from jax.experimental.pallas import tpu as pltpu


# ---------------------------------------------------------------------------
# helpers
# ---------------------------------------------------------------------------
def _erf(x):
    # Abramowitz & Stegun 7.1.26 rational approximation (|err| < 1.5e-7),
    # built only from ops that lower cleanly in Mosaic (exp + arithmetic).
    a1, a2, a3, a4, a5 = (0.254829592, -0.284496736, 1.421413741,
                          -1.453152027, 1.061405429)
    p = 0.3275911
    sign = jnp.where(x >= 0.0, 1.0, -1.0)
    ax = jnp.abs(x)
    t = 1.0 / (1.0 + p * ax)
    poly = ((((a5 * t + a4) * t + a3) * t + a2) * t + a1) * t
    return sign * (1.0 - poly * jnp.exp(-ax * ax))


def _gelu(x):
    # exact (erf-based) GELU, matching PyTorch nn.GELU() default
    return 0.5 * x * (1.0 + _erf(x * 0.7071067811865476))


def _compiler_params():
    cp_cls = getattr(pltpu, "CompilerParams", None)
    if cp_cls is None:  # older JAX versions
        cp_cls = getattr(pltpu, "TPUCompilerParams", None)
    if cp_cls is None:
        return None
    return cp_cls(dimension_semantics=("parallel",))


# ---------------------------------------------------------------------------
# fused FFN kernel: one batch image per grid step
# ---------------------------------------------------------------------------
def _gdfn_kernel(x_ref, ln_w_ref, ln_b_ref, w_in1_ref, w_in2_ref,
                 dw1_ref, dw2_ref, w_out_ref, o_ref, pad1_ref, pad2_ref):
    h, w, c = x_ref.shape
    hidden = w_out_ref.shape[0]

    # ---- WithBias LayerNorm over channels (fused into project_in GEMM) ----
    x = x_ref[...].reshape(h * w, c)
    mu = jnp.mean(x, axis=-1, keepdims=True)
    var = jnp.mean((x - mu) * (x - mu), axis=-1, keepdims=True)
    xn = (x - mu) / jnp.sqrt(var + 1e-5) * ln_w_ref[...] + ln_b_ref[...]
    xn_bf = xn.astype(jnp.bfloat16)

    # ---- project_in (1x1 conv == GEMM), already split into the two halves
    #      that chunk(2, dim=1) would later select (bf16 in, f32 accumulate) --
    y1 = jnp.dot(xn_bf, w_in1_ref[...], preferred_element_type=jnp.float32)
    y2 = jnp.dot(xn_bf, w_in2_ref[...], preferred_element_type=jnp.float32)

    # ---- zero-pad the halo inside VMEM (no host-side jnp.pad) ----
    pad1_ref[...] = jnp.zeros_like(pad1_ref)
    pad2_ref[...] = jnp.zeros_like(pad2_ref)
    pad1_ref[pl.ds(1, h), pl.ds(1, w), :] = y1.reshape(h, w, hidden)
    pad2_ref[pl.ds(1, h), pl.ds(1, w), :] = y2.reshape(h, w, hidden)

    # ---- depthwise 3x3 conv (stride 1, pad 1) on both halves ----
    dw1 = dw1_ref[...]
    dw2 = dw2_ref[...]
    acc1 = jnp.zeros((h, w, hidden), jnp.float32)
    acc2 = jnp.zeros((h, w, hidden), jnp.float32)
    for dy in range(3):
        for dx in range(3):
            acc1 = acc1 + pad1_ref[pl.ds(dy, h), pl.ds(dx, w), :] * dw1[dy, dx, :]
            acc2 = acc2 + pad2_ref[pl.ds(dy, h), pl.ds(dx, w), :] * dw2[dy, dx, :]

    # ---- gated GELU fused with project_out GEMM ----
    g = (_gelu(acc1) * acc2).reshape(h * w, hidden).astype(jnp.bfloat16)
    out = jnp.dot(g, w_out_ref[...], preferred_element_type=jnp.float32)
    o_ref[...] = out.reshape(h, w, c).astype(o_ref.dtype)


def gated_dconv_feedforward(x_nchw, params):
    """x_nchw: (B, dim, H, W) float32, params as produced in __main__."""
    b, dim, h, w = x_nchw.shape
    hidden = params["w_out"].shape[0]

    x = jnp.transpose(x_nchw, (0, 2, 3, 1)).astype(jnp.float32)   # -> NHWC

    ln_w = params["ln_w"].reshape(1, dim)
    ln_b = params["ln_b"].reshape(1, dim)
    # chunk(2, dim=1) of the dwconv output == splitting project_in columns and
    # dwconv channels (depthwise conv keeps channels independent).
    w_in1 = params["w_in"][:, :hidden].astype(jnp.bfloat16)
    w_in2 = params["w_in"][:, hidden:].astype(jnp.bfloat16)
    dw1 = params["w_dw"][:, :, :hidden]
    dw2 = params["w_dw"][:, :, hidden:]
    w_out = params["w_out"].astype(jnp.bfloat16)

    out = pl.pallas_call(
        _gdfn_kernel,
        out_shape=jax.ShapeDtypeStruct((b, h, w, dim), jnp.float32),
        grid=(b,),
        in_specs=[
            pl.BlockSpec((None, h, w, dim), lambda i: (i, 0, 0, 0)),   # x
            pl.BlockSpec((1, dim), lambda i: (0, 0)),                  # ln_w
            pl.BlockSpec((1, dim), lambda i: (0, 0)),                  # ln_b
            pl.BlockSpec((dim, hidden), lambda i: (0, 0)),             # w_in1
            pl.BlockSpec((dim, hidden), lambda i: (0, 0)),             # w_in2
            pl.BlockSpec((3, 3, hidden), lambda i: (0, 0, 0)),         # dw1
            pl.BlockSpec((3, 3, hidden), lambda i: (0, 0, 0)),         # dw2
            pl.BlockSpec((hidden, dim), lambda i: (0, 0)),             # w_out
        ],
        out_specs=pl.BlockSpec((None, h, w, dim), lambda i: (i, 0, 0, 0)),
        scratch_shapes=[
            pltpu.VMEM((h + 2, w + 2, hidden), jnp.float32),           # pad1
            pltpu.VMEM((h + 2, w + 2, hidden), jnp.float32),           # pad2
        ],
        compiler_params=_compiler_params(),
    )(x, ln_w, ln_b, w_in1, w_in2, dw1, dw2, w_out)

    return jnp.transpose(out, (0, 3, 1, 2))                       # -> NCHW


# ---------------------------------------------------------------------------
# pure-JAX float32 reference (mirrors the PyTorch module) for a tolerance test
# ---------------------------------------------------------------------------
def _reference(x_nchw, params):
    b, c, h, w = x_nchw.shape
    hidden = params["w_out"].shape[0]
    xf = jnp.transpose(x_nchw, (0, 2, 3, 1)).reshape(-1, c)
    mu = jnp.mean(xf, axis=-1, keepdims=True)
    var = jnp.mean((xf - mu) ** 2, axis=-1, keepdims=True)
    xn = (xf - mu) / jnp.sqrt(var + 1e-5) * params["ln_w"] + params["ln_b"]
    y = (xn @ params["w_in"]).reshape(b, h, w, 2 * hidden)
    yp = jnp.pad(y, ((0, 0), (1, 1), (1, 1), (0, 0)))
    acc = sum(yp[:, dy:dy + h, dx:dx + w, :] * params["w_dw"][dy, dx]
              for dy in range(3) for dx in range(3))
    x1, x2 = acc[..., :hidden], acc[..., hidden:]
    g = 0.5 * x1 * (1.0 + jax.lax.erf(x1 * 0.7071067811865476)) * x2
    out = g.reshape(-1, hidden) @ params["w_out"]
    return jnp.transpose(out.reshape(b, h, w, c), (0, 3, 1, 2))


if __name__ == "__main__":
    dim, B, H, W = 16, 2, 16, 16
    hidden = int(dim * 2.66)          # 42, as in the PyTorch module

    key = jax.random.PRNGKey(0)
    kx, kw1, kw2, kw3, kg, kb = jax.random.split(key, 6)
    x = jax.random.normal(kx, (B, dim, H, W), jnp.float32)        # NCHW
    params = {
        "ln_w": 1.0 + 0.1 * jax.random.normal(kg, (dim,), jnp.float32),
        "ln_b": 0.1 * jax.random.normal(kb, (dim,), jnp.float32),
        "w_in": jax.random.normal(kw1, (dim, 2 * hidden), jnp.float32)
                / math.sqrt(dim),
        "w_dw": jax.random.normal(kw2, (3, 3, 2 * hidden), jnp.float32) / 3.0,
        "w_out": jax.random.normal(kw3, (hidden, dim), jnp.float32)
                 / math.sqrt(hidden),
    }

    fwd = jax.jit(gated_dconv_feedforward)
    out = fwd(x, params)
    jax.block_until_ready(out)

    assert out.shape == (B, dim, H, W)
    assert bool(jnp.all(jnp.isfinite(out)))

    # tolerance-based check vs float32 reference (kernel uses bf16 MXU inputs
    # with f32 accumulation, so allow a few percent).
    ref = _reference(x, params)
    err = float(jnp.max(jnp.abs(out - ref)))
    tol = 5e-2 * float(jnp.max(jnp.abs(ref))) + 5e-2
    assert err <= tol, f"max abs err {err} > tol {tol}"

    print("KERNEL_OK")
</pallas_src>

<mosaic_0001>
module attributes {stable_mosaic.version = 11 : i64} {
  func.func @_gdfn_kernel(%arg0: i32, %arg1: memref<1x16x16x16xf32, #tpu.memory_space<vmem>>, %arg2: memref<1x16xf32, #tpu.memory_space<vmem>>, %arg3: memref<1x16xf32, #tpu.memory_space<vmem>>, %arg4: memref<16x42xbf16, #tpu.memory_space<vmem>>, %arg5: memref<16x42xbf16, #tpu.memory_space<vmem>>, %arg6: memref<3x3x42xf32, #tpu.memory_space<vmem>>, %arg7: memref<3x3x42xf32, #tpu.memory_space<vmem>>, %arg8: memref<42x16xbf16, #tpu.memory_space<vmem>>, %arg9: memref<1x16x16x16xf32, #tpu.memory_space<vmem>>, %arg10: memref<18x18x42xf32, #tpu.memory_space<vmem>>, %arg11: memref<18x18x42xf32, #tpu.memory_space<vmem>>) attributes {dimension_semantics = [#tpu.dimension_semantics<parallel>], iteration_bounds = array<i64: 2>, scalar_prefetch = 0 : i64, scratch_operands = 2 : i64, tpu.core_type = #tpu.core_type<tc>, window_params = [{transform_indices = @transform_0, window_bounds = array<i64: 1, 16, 16, 16>}, {pipeline_mode = #tpu.pipeline_mode<synchronous>, transform_indices = @transform_1, window_bounds = array<i64: 1, 16>}, {pipeline_mode = #tpu.pipeline_mode<synchronous>, transform_indices = @transform_2, window_bounds = array<i64: 1, 16>}, {pipeline_mode = #tpu.pipeline_mode<synchronous>, transform_indices = @transform_3, window_bounds = array<i64: 16, 42>}, {pipeline_mode = #tpu.pipeline_mode<synchronous>, transform_indices = @transform_4, window_bounds = array<i64: 16, 42>}, {pipeline_mode = #tpu.pipeline_mode<synchronous>, transform_indices = @transform_5, window_bounds = array<i64: 3, 3, 42>}, {pipeline_mode = #tpu.pipeline_mode<synchronous>, transform_indices = @transform_6, window_bounds = array<i64: 3, 3, 42>}, {pipeline_mode = #tpu.pipeline_mode<synchronous>, transform_indices = @transform_7, window_bounds = array<i64: 42, 16>}, {transform_indices = @transform_8, window_bounds = array<i64: 1, 16, 16, 16>}]} {
    %c0 = arith.constant 0 : index
    %c0_0 = arith.constant 0 : index
    %c0_1 = arith.constant 0 : index
    %c0_2 = arith.constant 0 : index
    %0 = vector.load %arg1[%c0, %c0_0, %c0_1, %c0_2] : memref<1x16x16x16xf32, #tpu.memory_space<vmem>>, vector<1x16x16x16xf32>
    %1 = vector.shape_cast %0 : vector<1x16x16x16xf32> to vector<16x16x16xf32>
    %2 = vector.shape_cast %1 : vector<16x16x16xf32> to vector<256x16xf32>
    %cst = arith.constant dense<0.000000e+00> : vector<256xf32>
    %3 = vector.multi_reduction <add>, %2, %cst [1] : vector<256x16xf32> to vector<256xf32>
    %4 = vector.shape_cast %3 : vector<256xf32> to vector<256x1xf32>
    %cst_3 = arith.constant 1.600000e+01 : f32
    %5 = vector.broadcast %cst_3 : f32 to vector<256x1xf32>
    %6 = arith.divf %4, %5 : vector<256x1xf32>
    %7 = vector.broadcast %6 : vector<256x1xf32> to vector<256x16xf32>
    %8 = arith.subf %2, %7 : vector<256x16xf32>
    %9 = vector.broadcast %6 : vector<256x1xf32> to vector<256x16xf32>
    %10 = arith.subf %2, %9 : vector<256x16xf32>
    %11 = arith.mulf %8, %10 : vector<256x16xf32>
    %cst_4 = arith.constant dense<0.000000e+00> : vector<256xf32>
    %12 = vector.multi_reduction <add>, %11, %cst_4 [1] : vector<256x16xf32> to vector<256xf32>
    %13 = vector.shape_cast %12 : vector<256xf32> to vector<256x1xf32>
    %cst_5 = arith.constant 1.600000e+01 : f32
    %14 = vector.broadcast %cst_5 : f32 to vector<256x1xf32>
    %15 = arith.divf %13, %14 : vector<256x1xf32>
    %16 = vector.broadcast %6 : vector<256x1xf32> to vector<256x16xf32>
    %17 = arith.subf %2, %16 : vector<256x16xf32>
    %cst_6 = arith.constant 9.99999974E-6 : f32
    %18 = vector.broadcast %cst_6 : f32 to vector<256x1xf32>
    %19 = arith.addf %15, %18 : vector<256x1xf32>
    %20 = math.sqrt %19 : vector<256x1xf32>
    %21 = vector.broadcast %20 : vector<256x1xf32> to vector<256x16xf32>
    %22 = arith.divf %17, %21 : vector<256x16xf32>
    %c0_7 = arith.constant 0 : index
    %c0_8 = arith.constant 0 : index
    %23 = vector.load %arg2[%c0_7, %c0_8] : memref<1x16xf32, #tpu.memory_space<vmem>>, vector<1x16xf32>
    %24 = vector.broadcast %23 : vector<1x16xf32> to vector<256x16xf32>
    %25 = arith.mulf %22, %24 : vector<256x16xf32>
    %c0_9 = arith.constant 0 : index
    %c0_10 = arith.constant 0 : index
    %26 = vector.load %arg3[%c0_9, %c0_10] : memref<1x16xf32, #tpu.memory_space<vmem>>, vector<1x16xf32>
    %27 = vector.broadcast %26 : vector<1x16xf32> to vector<256x16xf32>
    %28 = arith.addf %25, %27 : vector<256x16xf32>
    %29 = arith.truncf %28 : vector<256x16xf32> to vector<256x16xbf16>
    %c0_11 = arith.constant 0 : index
    %c0_12 = arith.constant 0 : index
    %30 = vector.load %arg4[%c0_11, %c0_12] : memref<16x42xbf16, #tpu.memory_space<vmem>>, vector<16x42xbf16>
    %cst_13 = arith.constant dense<0.000000e+00> : vector<256x42xf32>
    %31 = tpu.matmul %29, %30, %cst_13 {dimension_numbers = #tpu.dot_dimension_numbers<[1], [0], [0], [1], [0, 0, 1, 1], [], []>} : vector<256x16xbf16>, vector<16x42xbf16>, vector<256x42xf32> -> vector<256x42xf32>
    %c0_14 = arith.constant 0 : index
    %c0_15 = arith.constant 0 : index
    %32 = vector.load %arg5[%c0_14, %c0_15] : memref<16x42xbf16, #tpu.memory_space<vmem>>, vector<16x42xbf16>
    %cst_16 = arith.constant dense<0.000000e+00> : vector<256x42xf32>
    %33 = tpu.matmul %29, %32, %cst_16 {dimension_numbers = #tpu.dot_dimension_numbers<[1], [0], [0], [1], [0, 0, 1, 1], [], []>} : vector<256x16xbf16>, vector<16x42xbf16>, vector<256x42xf32> -> vector<256x42xf32>
    %cst_17 = arith.constant 0.000000e+00 : f32
    %34 = vector.broadcast %cst_17 : f32 to vector<18x18x42xf32>
    %c0_18 = arith.constant 0 : index
    %c0_19 = arith.constant 0 : index
    %c0_20 = arith.constant 0 : index
    %35 = vector.load %arg10[%c0_18, %c0_19, %c0_20] : memref<18x18x42xf32, #tpu.memory_space<vmem>>, vector<18x18x42xf32>
    tpu.vector_store %arg10[%c0_18, %c0_19, %c0_20], %34 {strides = array<i32>} : memref<18x18x42xf32, #tpu.memory_space<vmem>>, vector<18x18x42xf32>,
    %cst_21 = arith.constant 0.000000e+00 : f32
    %36 = vector.broadcast %cst_21 : f32 to vector<18x18x42xf32>
    %c0_22 = arith.constant 0 : index
    %c0_23 = arith.constant 0 : index
    %c0_24 = arith.constant 0 : index
    %37 = vector.load %arg11[%c0_22, %c0_23, %c0_24] : memref<18x18x42xf32, #tpu.memory_space<vmem>>, vector<18x18x42xf32>
    tpu.vector_store %arg11[%c0_22, %c0_23, %c0_24], %36 {strides = array<i32>} : memref<18x18x42xf32, #tpu.memory_space<vmem>>, vector<18x18x42xf32>,
    %38 = vector.shape_cast %31 : vector<256x42xf32> to vector<16x16x42xf32>
    %c1 = arith.constant 1 : index
    %c1_25 = arith.constant 1 : index
    %c0_26 = arith.constant 0 : index
    %39 = vector.load %arg10[%c1, %c1_25, %c0_26] : memref<18x18x42xf32, #tpu.memory_space<vmem>>, vector<16x16x42xf32>
    tpu.vector_store %arg10[%c1, %c1_25, %c0_26], %38 {strides = array<i32>} : memref<18x18x42xf32, #tpu.memory_space<vmem>>, vector<16x16x42xf32>,
    %40 = vector.shape_cast %33 : vector<256x42xf32> to vector<16x16x42xf32>
    %c1_27 = arith.constant 1 : index
    %c1_28 = arith.constant 1 : index
    %c0_29 = arith.constant 0 : index
    %41 = vector.load %arg11[%c1_27, %c1_28, %c0_29] : memref<18x18x42xf32, #tpu.memory_space<vmem>>, vector<16x16x42xf32>
    tpu.vector_store %arg11[%c1_27, %c1_28, %c0_29], %40 {strides = array<i32>} : memref<18x18x42xf32, #tpu.memory_space<vmem>>, vector<16x16x42xf32>,
    %c0_30 = arith.constant 0 : index
    %c0_31 = arith.constant 0 : index
    %c0_32 = arith.constant 0 : index
    %42 = vector.load %arg6[%c0_30, %c0_31, %c0_32] : memref<3x3x42xf32, #tpu.memory_space<vmem>>, vector<3x3x42xf32>
    %c0_33 = arith.constant 0 : index
    %c0_34 = arith.constant 0 : index
    %c0_35 = arith.constant 0 : index
    %43 = vector.load %arg7[%c0_33, %c0_34, %c0_35] : memref<3x3x42xf32, #tpu.memory_space<vmem>>, vector<3x3x42xf32>
    %cst_36 = arith.constant 0.000000e+00 : f32
    %44 = vector.broadcast %cst_36 : f32 to vector<16x16x42xf32>
    %cst_37 = arith.constant 0.000000e+00 : f32
    %45 = vector.broadcast %cst_37 : f32 to vector<16x16x42xf32>
    %c0_38 = arith.constant 0 : index
    %c0_39 = arith.constant 0 : index
    %c0_40 = arith.constant 0 : index
    %46 = vector.load %arg10[%c0_38, %c0_39, %c0_40] : memref<18x18x42xf32, #tpu.memory_space<vmem>>, vector<16x16x42xf32>
    %47 = vector.extract_strided_slice %42 {offsets = [0, 0, 0], sizes = [1, 1, 42], strides = [1, 1, 1]} : vector<3x3x42xf32> to vector<1x1x42xf32>
    %48 = vector.shape_cast %47 : vector<1x1x42xf32> to vector<42xf32>
    %49 = vector.shape_cast %48 : vector<42xf32> to vector<1x1x42xf32>
    %50 = vector.broadcast %49 : vector<1x1x42xf32> to vector<16x16x42xf32>
    %51 = arith.mulf %46, %50 : vector<16x16x42xf32>
    %52 = arith.addf %44, %51 : vector<16x16x42xf32>
    %c0_41 = arith.constant 0 : index
    %c0_42 = arith.constant 0 : index
    %c0_43 = arith.constant 0 : index
    %53 = vector.load %arg11[%c0_41, %c0_42, %c0_43] : memref<18x18x42xf32, #tpu.memory_space<vmem>>, vector<16x16x42xf32>
    %54 = vector.extract_strided_slice %43 {offsets = [0, 0, 0], sizes = [1, 1, 42], strides = [1, 1, 1]} : vector<3x3x42xf32> to vector<1x1x42xf32>
    %55 = vector.shape_cast %54 : vector<1x1x42xf32> to vector<42xf32>
    %56 = vector.shape_cast %55 : vector<42xf32> to vector<1x1x42xf32>
    %57 = vector.broadcast %56 : vector<1x1x42xf32> to vector<16x16x42xf32>
    %58 = arith.mulf %53, %57 : vector<16x16x42xf32>
    %59 = arith.addf %45, %58 : vector<16x16x42xf32>
    %c0_44 = arith.constant 0 : index
    %c1_45 = arith.constant 1 : index
    %c0_46 = arith.constant 0 : index
    %60 = vector.load %arg10[%c0_44, %c1_45, %c0_46] : memref<18x18x42xf32, #tpu.memory_space<vmem>>, vector<16x16x42xf32>
    %61 = vector.extract_strided_slice %42 {offsets = [0, 1, 0], sizes = [1, 1, 42], strides = [1, 1, 1]} : vector<3x3x42xf32> to vector<1x1x42xf32>
    %62 = vector.shape_cast %61 : vector<1x1x42xf32> to vector<42xf32>
    %63 = vector.shape_cast %62 : vector<42xf32> to vector<1x1x42xf32>
    %64 = vector.broadcast %63 : vector<1x1x42xf32> to vector<16x16x42xf32>
    %65 = arith.mulf %60, %64 : vector<16x16x42xf32>
    %66 = arith.addf %52, %65 : vector<16x16x42xf32>
    %c0_47 = arith.constant 0 : index
    %c1_48 = arith.constant 1 : index
    %c0_49 = arith.constant 0 : index
    %67 = vector.load %arg11[%c0_47, %c1_48, %c0_49] : memref<18x18x42xf32, #tpu.memory_space<vmem>>, vector<16x16x42xf32>
    %68 = vector.extract_strided_slice %43 {offsets = [0, 1, 0], sizes = [1, 1, 42], strides = [1, 1, 1]} : vector<3x3x42xf32> to vector<1x1x42xf32>
    %69 = vector.shape_cast %68 : vector<1x1x42xf32> to vector<42xf32>
    %70 = vector.shape_cast %69 : vector<42xf32> to vector<1x1x42xf32>
    %71 = vector.broadcast %70 : vector<1x1x42xf32> to vector<16x16x42xf32>
    %72 = arith.mulf %67, %71 : vector<16x16x42xf32>
    %73 = arith.addf %59, %72 : vector<16x16x42xf32>
    %c0_50 = arith.constant 0 : index
    %c2 = arith.constant 2 : index
    %c0_51 = arith.constant 0 : index
    %74 = vector.load %arg10[%c0_50, %c2, %c0_51] : memref<18x18x42xf32, #tpu.memory_space<vmem>>, vector<16x16x42xf32>
    %75 = vector.extract_strided_slice %42 {offsets = [0, 2, 0], sizes = [1, 1, 42], strides = [1, 1, 1]} : vector<3x3x42xf32> to vector<1x1x42xf32>
    %76 = vector.shape_cast %75 : vector<1x1x42xf32> to vector<42xf32>
    %77 = vector.shape_cast %76 : vector<42xf32> to vector<1x1x42xf32>
    %78 = vector.broadcast %77 : vector<1x1x42xf32> to vector<16x16x42xf32>
    %79 = arith.mulf %74, %78 : vector<16x16x42xf32>
    %80 = arith.addf %66, %79 : vector<16x16x42xf32>
    %c0_52 = arith.constant 0 : index
    %c2_53 = arith.constant 2 : index
    %c0_54 = arith.constant 0 : index
    %81 = vector.load %arg11[%c0_52, %c2_53, %c0_54] : memref<18x18x42xf32, #tpu.memory_space<vmem>>, vector<16x16x42xf32>
    %82 = vector.extract_strided_slice %43 {offsets = [0, 2, 0], sizes = [1, 1, 42], strides = [1, 1, 1]} : vector<3x3x42xf32> to vector<1x1x42xf32>
    %83 = vector.shape_cast %82 : vector<1x1x42xf32> to vector<42xf32>
    %84 = vector.shape_cast %83 : vector<42xf32> to vector<1x1x42xf32>
    %85 = vector.broadcast %84 : vector<1x1x42xf32> to vector<16x16x42xf32>
    %86 = arith.mulf %81, %85 : vector<16x16x42xf32>
    %87 = arith.addf %73, %86 : vector<16x16x42xf32>
    %c1_55 = arith.constant 1 : index
    %c0_56 = arith.constant 0 : index
    %c0_57 = arith.constant 0 : index
    %88 = vector.load %arg10[%c1_55, %c0_56, %c0_57] : memref<18x18x42xf32, #tpu.memory_space<vmem>>, vector<16x16x42xf32>
    %89 = vector.extract_strided_slice %42 {offsets = [1, 0, 0], sizes = [1, 1, 42], strides = [1, 1, 1]} : vector<3x3x42xf32> to vector<1x1x42xf32>
    %90 = vector.shape_cast %89 : vector<1x1x42xf32> to vector<42xf32>
    %91 = vector.shape_cast %90 : vector<42xf32> to vector<1x1x42xf32>
    %92 = vector.broadcast %91 : vector<1x1x42xf32> to vector<16x16x42xf32>
    %93 = arith.mulf %88, %92 : vector<16x16x42xf32>
    %94 = arith.addf %80, %93 : vector<16x16x42xf32>
    %c1_58 = arith.constant 1 : index
    %c0_59 = arith.constant 0 : index
    %c0_60 = arith.constant 0 : index
    %95 = vector.load %arg11[%c1_58, %c0_59, %c0_60] : memref<18x18x42xf32, #tpu.memory_space<vmem>>, vector<16x16x42xf32>
    %96 = vector.extract_strided_slice %43 {offsets = [1, 0, 0], sizes = [1, 1, 42], strides = [1, 1, 1]} : vector<3x3x42xf32> to vector<1x1x42xf32>
    %97 = vector.shape_cast %96 : vector<1x1x42xf32> to vector<42xf32>
    %98 = vector.shape_cast %97 : vector<42xf32> to vector<1x1x42xf32>
    %99 = vector.broadcast %98 : vector<1x1x42xf32> to vector<16x16x42xf32>
    %100 = arith.mulf %95, %99 : vector<16x16x42xf32>
    %101 = arith.addf %87, %100 : vector<16x16x42xf32>
    %c1_61 = arith.constant 1 : index
    %c1_62 = arith.constant 1 : index
    %c0_63 = arith.constant 0 : index
    %102 = vector.load %arg10[%c1_61, %c1_62, %c0_63] : memref<18x18x42xf32, #tpu.memory_space<vmem>>, vector<16x16x42xf32>
    %103 = vector.extract_strided_slice %42 {offsets = [1, 1, 0], sizes = [1, 1, 42], strides = [1, 1, 1]} : vector<3x3x42xf32> to vector<1x1x42xf32>
    %104 = vector.shape_cast %103 : vector<1x1x42xf32> to vector<42xf32>
    %105 = vector.shape_cast %104 : vector<42xf32> to vector<1x1x42xf32>
    %106 = vector.broadcast %105 : vector<1x1x42xf32> to vector<16x16x42xf32>
    %107 = arith.mulf %102, %106 : vector<16x16x42xf32>
    %108 = arith.addf %94, %107 : vector<16x16x42xf32>
    %c1_64 = arith.constant 1 : index
    %c1_65 = arith.constant 1 : index
    %c0_66 = arith.constant 0 : index
    %109 = vector.load %arg11[%c1_64, %c1_65, %c0_66] : memref<18x18x42xf32, #tpu.memory_space<vmem>>, vector<16x16x42xf32>
    %110 = vector.extract_strided_slice %43 {offsets = [1, 1, 0], sizes = [1, 1, 42], strides = [1, 1, 1]} : vector<3x3x42xf32> to vector<1x1x42xf32>
    %111 = vector.shape_cast %110 : vector<1x1x42xf32> to vector<42xf32>
    %112 = vector.shape_cast %111 : vector<42xf32> to vector<1x1x42xf32>
    %113 = vector.broadcast %112 : vector<1x1x42xf32> to vector<16x16x42xf32>
    %114 = arith.mulf %109, %113 : vector<16x16x42xf32>
    %115 = arith.addf %101, %114 : vector<16x16x42xf32>
    %c1_67 = arith.constant 1 : index
    %c2_68 = arith.constant 2 : index
    %c0_69 = arith.constant 0 : index
    %116 = vector.load %arg10[%c1_67, %c2_68, %c0_69] : memref<18x18x42xf32, #tpu.memory_space<vmem>>, vector<16x16x42xf32>
    %117 = vector.extract_strided_slice %42 {offsets = [1, 2, 0], sizes = [1, 1, 42], strides = [1, 1, 1]} : vector<3x3x42xf32> to vector<1x1x42xf32>
    %118 = vector.shape_cast %117 : vector<1x1x42xf32> to vector<42xf32>
    %119 = vector.shape_cast %118 : vector<42xf32> to vector<1x1x42xf32>
    %120 = vector.broadcast %119 : vector<1x1x42xf32> to vector<16x16x42xf32>
    %121 = arith.mulf %116, %120 : vector<16x16x42xf32>
    %122 = arith.addf %108, %121 : vector<16x16x42xf32>
    %c1_70 = arith.constant 1 : index
    %c2_71 = arith.constant 2 : index
    %c0_72 = arith.constant 0 : index
    %123 = vector.load %arg11[%c1_70, %c2_71, %c0_72] : memref<18x18x42xf32, #tpu.memory_space<vmem>>, vector<16x16x42xf32>
    %124 = vector.extract_strided_slice %43 {offsets = [1, 2, 0], sizes = [1, 1, 42], strides = [1, 1, 1]} : vector<3x3x42xf32> to vector<1x1x42xf32>
    %125 = vector.shape_cast %124 : vector<1x1x42xf32> to vector<42xf32>
    %126 = vector.shape_cast %125 : vector<42xf32> to vector<1x1x42xf32>
    %127 = vector.broadcast %126 : vector<1x1x42xf32> to vector<16x16x42xf32>
    %128 = arith.mulf %123, %127 : vector<16x16x42xf32>
    %129 = arith.addf %115, %128 : vector<16x16x42xf32>
    %c2_73 = arith.constant 2 : index
    %c0_74 = arith.constant 0 : index
    %c0_75 = arith.constant 0 : index
    %130 = vector.load %arg10[%c2_73, %c0_74, %c0_75] : memref<18x18x42xf32, #tpu.memory_space<vmem>>, vector<16x16x42xf32>
    %131 = vector.extract_strided_slice %42 {offsets = [2, 0, 0], sizes = [1, 1, 42], strides = [1, 1, 1]} : vector<3x3x42xf32> to vector<1x1x42xf32>
    %132 = vector.shape_cast %131 : vector<1x1x42xf32> to vector<42xf32>
    %133 = vector.shape_cast %132 : vector<42xf32> to vector<1x1x42xf32>
    %134 = vector.broadcast %133 : vector<1x1x42xf32> to vector<16x16x42xf32>
    %135 = arith.mulf %130, %134 : vector<16x16x42xf32>
    %136 = arith.addf %122, %135 : vector<16x16x42xf32>
    %c2_76 = arith.constant 2 : index
    %c0_77 = arith.constant 0 : index
    %c0_78 = arith.constant 0 : index
    %137 = vector.load %arg11[%c2_76, %c0_77, %c0_78] : memref<18x18x42xf32, #tpu.memory_space<vmem>>, vector<16x16x42xf32>
    %138 = vector.extract_strided_slice %43 {offsets = [2, 0, 0], sizes = [1, 1, 42], strides = [1, 1, 1]} : vector<3x3x42xf32> to vector<1x1x42xf32>
    %139 = vector.shape_cast %138 : vector<1x1x42xf32> to vector<42xf32>
    %140 = vector.shape_cast %139 : vector<42xf32> to vector<1x1x42xf32>
    %141 = vector.broadcast %140 : vector<1x1x42xf32> to vector<16x16x42xf32>
    %142 = arith.mulf %137, %141 : vector<16x16x42xf32>
    %143 = arith.addf %129, %142 : vector<16x16x42xf32>
    %c2_79 = arith.constant 2 : index
    %c1_80 = arith.constant 1 : index
    %c0_81 = arith.constant 0 : index
    %144 = vector.load %arg10[%c2_79, %c1_80, %c0_81] : memref<18x18x42xf32, #tpu.memory_space<vmem>>, vector<16x16x42xf32>
    %145 = vector.extract_strided_slice %42 {offsets = [2, 1, 0], sizes = [1, 1, 42], strides = [1, 1, 1]} : vector<3x3x42xf32> to vector<1x1x42xf32>
    %146 = vector.shape_cast %145 : vector<1x1x42xf32> to vector<42xf32>
    %147 = vector.shape_cast %146 : vector<42xf32> to vector<1x1x42xf32>
    %148 = vector.broadcast %147 : vector<1x1x42xf32> to vector<16x16x42xf32>
    %149 = arith.mulf %144, %148 : vector<16x16x42xf32>
    %150 = arith.addf %136, %149 : vector<16x16x42xf32>
    %c2_82 = arith.constant 2 : index
    %c1_83 = arith.constant 1 : index
    %c0_84 = arith.constant 0 : index
    %151 = vector.load %arg11[%c2_82, %c1_83, %c0_84] : memref<18x18x42xf32, #tpu.memory_space<vmem>>, vector<16x16x42xf32>
    %152 = vector.extract_strided_slice %43 {offsets = [2, 1, 0], sizes = [1, 1, 42], strides = [1, 1, 1]} : vector<3x3x42xf32> to vector<1x1x42xf32>
    %153 = vector.shape_cast %152 : vector<1x1x42xf32> to vector<42xf32>
    %154 = vector.shape_cast %153 : vector<42xf32> to vector<1x1x42xf32>
    %155 = vector.broadcast %154 : vector<1x1x42xf32> to vector<16x16x42xf32>
    %156 = arith.mulf %151, %155 : vector<16x16x42xf32>
    %157 = arith.addf %143, %156 : vector<16x16x42xf32>
    %c2_85 = arith.constant 2 : index
    %c2_86 = arith.constant 2 : index
    %c0_87 = arith.constant 0 : index
    %158 = vector.load %arg10[%c2_85, %c2_86, %c0_87] : memref<18x18x42xf32, #tpu.memory_space<vmem>>, vector<16x16x42xf32>
    %159 = vector.extract_strided_slice %42 {offsets = [2, 2, 0], sizes = [1, 1, 42], strides = [1, 1, 1]} : vector<3x3x42xf32> to vector<1x1x42xf32>
    %160 = vector.shape_cast %159 : vector<1x1x42xf32> to vector<42xf32>
    %161 = vector.shape_cast %160 : vector<42xf32> to vector<1x1x42xf32>
    %162 = vector.broadcast %161 : vector<1x1x42xf32> to vector<16x16x42xf32>
    %163 = arith.mulf %158, %162 : vector<16x16x42xf32>
    %164 = arith.addf %150, %163 : vector<16x16x42xf32>
    %c2_88 = arith.constant 2 : index
    %c2_89 = arith.constant 2 : index
    %c0_90 = arith.constant 0 : index
    %165 = vector.load %arg11[%c2_88, %c2_89, %c0_90] : memref<18x18x42xf32, #tpu.memory_space<vmem>>, vector<16x16x42xf32>
    %166 = vector.extract_strided_slice %43 {offsets = [2, 2, 0], sizes = [1, 1, 42], strides = [1, 1, 1]} : vector<3x3x42xf32> to vector<1x1x42xf32>
    %167 = vector.shape_cast %166 : vector<1x1x42xf32> to vector<42xf32>
    %168 = vector.shape_cast %167 : vector<42xf32> to vector<1x1x42xf32>
    %169 = vector.broadcast %168 : vector<1x1x42xf32> to vector<16x16x42xf32>
    %170 = arith.mulf %165, %169 : vector<16x16x42xf32>
    %171 = arith.addf %157, %170 : vector<16x16x42xf32>
    %cst_91 = arith.constant 5.000000e-01 : f32
    %172 = vector.broadcast %cst_91 : f32 to vector<16x16x42xf32>
    %173 = arith.mulf %172, %164 : vector<16x16x42xf32>
    %cst_92 = arith.constant 0.707106769 : f32
    %174 = vector.broadcast %cst_92 : f32 to vector<16x16x42xf32>
    %175 = arith.mulf %164, %174 : vector<16x16x42xf32>
    %cst_93 = arith.constant 0.000000e+00 : f32
    %176 = vector.broadcast %cst_93 : f32 to vector<16x16x42xf32>
    %177 = arith.cmpf oge, %175, %176 : vector<16x16x42xf32>
    %cst_94 = arith.constant 1.000000e+00 : f32
    %cst_95 = arith.constant -1.000000e+00 : f32
    %178 = vector.broadcast %cst_94 : f32 to vector<16x16x42xf32>
    %179 = vector.broadcast %cst_95 : f32 to vector<16x16x42xf32>
    %180 = arith.select %177, %178, %179 : vector<16x16x42xi1>, vector<16x16x42xf32>
    %181 = math.absf %175 : vector<16x16x42xf32>
    %cst_96 = arith.constant 0.327591091 : f32
    %182 = vector.broadcast %cst_96 : f32 to vector<16x16x42xf32>
    %183 = arith.mulf %182, %181 : vector<16x16x42xf32>
    %cst_97 = arith.constant 1.000000e+00 : f32
    %184 = vector.broadcast %cst_97 : f32 to vector<16x16x42xf32>
    %185 = arith.addf %184, %183 : vector<16x16x42xf32>
    %cst_98 = arith.constant 1.000000e+00 : f32
    %186 = vector.broadcast %cst_98 : f32 to vector<16x16x42xf32>
    %187 = arith.divf %186, %185 : vector<16x16x42xf32>
    %cst_99 = arith.constant 1.06140542 : f32
    %188 = vector.broadcast %cst_99 : f32 to vector<16x16x42xf32>
    %189 = arith.mulf %188, %187 : vector<16x16x42xf32>
    %cst_100 = arith.constant -1.45315206 : f32
    %190 = vector.broadcast %cst_100 : f32 to vector<16x16x42xf32>
    %191 = arith.addf %189, %190 : vector<16x16x42xf32>
    %192 = arith.mulf %191, %187 : vector<16x16x42xf32>
    %cst_101 = arith.constant 1.42141378 : f32
    %193 = vector.broadcast %cst_101 : f32 to vector<16x16x42xf32>
    %194 = arith.addf %192, %193 : vector<16x16x42xf32>
    %195 = arith.mulf %194, %187 : vector<16x16x42xf32>
    %cst_102 = arith.constant -0.284496725 : f32
    %196 = vector.broadcast %cst_102 : f32 to vector<16x16x42xf32>
    %197 = arith.addf %195, %196 : vector<16x16x42xf32>
    %198 = arith.mulf %197, %187 : vector<16x16x42xf32>
    %cst_103 = arith.constant 0.254829586 : f32
    %199 = vector.broadcast %cst_103 : f32 to vector<16x16x42xf32>
    %200 = arith.addf %198, %199 : vector<16x16x42xf32>
    %201 = arith.mulf %200, %187 : vector<16x16x42xf32>
    %cst_104 = arith.constant 0.000000e+00 : f32
    %202 = vector.broadcast %cst_104 : f32 to vector<16x16x42xf32>
    %203 = arith.subf %202, %181 : vector<16x16x42xf32>
    %204 = arith.mulf %203, %181 : vector<16x16x42xf32>
    %205 = math.exp %204 : vector<16x16x42xf32>
    %206 = arith.mulf %201, %205 : vector<16x16x42xf32>
    %cst_105 = arith.constant 1.000000e+00 : f32
    %207 = vector.broadcast %cst_105 : f32 to vector<16x16x42xf32>
    %208 = arith.subf %207, %206 : vector<16x16x42xf32>
    %209 = arith.mulf %180, %208 : vector<16x16x42xf32>
    %cst_106 = arith.constant 1.000000e+00 : f32
    %210 = vector.broadcast %cst_106 : f32 to vector<16x16x42xf32>
    %211 = arith.addf %210, %209 : vector<16x16x42xf32>
    %212 = arith.mulf %173, %211 : vector<16x16x42xf32>
    %213 = arith.mulf %212, %171 : vector<16x16x42xf32>
    %214 = vector.shape_cast %213 : vector<16x16x42xf32> to vector<256x42xf32>
    %215 = arith.truncf %214 : vector<256x42xf32> to vector<256x42xbf16>
    %c0_107 = arith.constant 0 : index
    %c0_108 = arith.constant 0 : index
    %216 = vector.load %arg8[%c0_107, %c0_108] : memref<42x16xbf16, #tpu.memory_space<vmem>>, vector<42x16xbf16>
    %cst_109 = arith.constant dense<0.000000e+00> : vector<256x16xf32>
    %217 = tpu.matmul %215, %216, %cst_109 {dimension_numbers = #tpu.dot_dimension_numbers<[1], [0], [0], [1], [0, 0, 1, 1], [], []>} : vector<256x42xbf16>, vector<42x16xbf16>, vector<256x16xf32> -> vector<256x16xf32>
    %218 = vector.shape_cast %217 : vector<256x16xf32> to vector<16x16x16xf32>
    %c0_110 = arith.constant 0 : index
    %c0_111 = arith.constant 0 : index
    %c0_112 = arith.constant 0 : index
    %c0_113 = arith.constant 0 : index
    %219 = vector.load %arg9[%c0_110, %c0_111, %c0_112, %c0_113] : memref<1x16x16x16xf32, #tpu.memory_space<vmem>>, vector<1x16x16x16xf32>
    %220 = vector.shape_cast %219 : vector<1x16x16x16xf32> to vector<16x16x16xf32>
    %221 = vector.shape_cast %218 : vector<16x16x16xf32> to vector<1x16x16x16xf32>
    tpu.vector_store %arg9[%c0_110, %c0_111, %c0_112, %c0_113], %221 {strides = array<i32>} : memref<1x16x16x16xf32, #tpu.memory_space<vmem>>, vector<1x16x16x16xf32>,
    return
  }
  func.func @transform_0(%arg0: i32) -> (i32, i32, i32, i32) {
    %c0_i32 = arith.constant 0 : i32
    %c0_i32_0 = arith.constant 0 : i32
    %c0_i32_1 = arith.constant 0 : i32
    %c0_i32_2 = arith.constant 0 : i32
    return %arg0, %c0_i32, %c0_i32_0, %c0_i32_1 : i32, i32, i32, i32
  }
  func.func @transform_1(%arg0: i32) -> (i32, i32) {
    %c0_i32 = arith.constant 0 : i32
    %c0_i32_0 = arith.constant 0 : i32
    %c0_i32_1 = arith.constant 0 : i32
    return %c0_i32, %c0_i32_0 : i32, i32
  }
  func.func @transform_2(%arg0: i32) -> (i32, i32) {
    %c0_i32 = arith.constant 0 : i32
    %c0_i32_0 = arith.constant 0 : i32
    %c0_i32_1 = arith.constant 0 : i32
    return %c0_i32, %c0_i32_0 : i32, i32
  }
  func.func @transform_3(%arg0: i32) -> (i32, i32) {
    %c0_i32 = arith.constant 0 : i32
    %c0_i32_0 = arith.constant 0 : i32
    %c0_i32_1 = arith.constant 0 : i32
    return %c0_i32, %c0_i32_0 : i32, i32
  }
  func.func @transform_4(%arg0: i32) -> (i32, i32) {
    %c0_i32 = arith.constant 0 : i32
    %c0_i32_0 = arith.constant 0 : i32
    %c0_i32_1 = arith.constant 0 : i32
    return %c0_i32, %c0_i32_0 : i32, i32
  }
  func.func @transform_5(%arg0: i32) -> (i32, i32, i32) {
    %c0_i32 = arith.constant 0 : i32
    %c0_i32_0 = arith.constant 0 : i32
    %c0_i32_1 = arith.constant 0 : i32
    %c0_i32_2 = arith.constant 0 : i32
    return %c0_i32, %c0_i32_0, %c0_i32_1 : i32, i32, i32
  }
  func.func @transform_6(%arg0: i32) -> (i32, i32, i32) {
    %c0_i32 = arith.constant 0 : i32
    %c0_i32_0 = arith.constant 0 : i32
    %c0_i32_1 = arith.constant 0 : i32
    %c0_i32_2 = arith.constant 0 : i32
    return %c0_i32, %c0_i32_0, %c0_i32_1 : i32, i32, i32
  }
  func.func @transform_7(%arg0: i32) -> (i32, i32) {
    %c0_i32 = arith.constant 0 : i32
    %c0_i32_0 = arith.constant 0 : i32
    %c0_i32_1 = arith.constant 0 : i32
    return %c0_i32, %c0_i32_0 : i32, i32
  }
  func.func @transform_8(%arg0: i32) -> (i32, i32, i32, i32) {
    %c0_i32 = arith.constant 0 : i32
    %c0_i32_0 = arith.constant 0 : i32
    %c0_i32_1 = arith.constant 0 : i32
    %c0_i32_2 = arith.constant 0 : i32
    return %arg0, %c0_i32, %c0_i32_0, %c0_i32_1 : i32, i32, i32, i32
  }
}

</mosaic_0001>

<llo_original>
// kernel: gated_dconv_feedforward.1
$region0: #{gated_dconv_feedforward.1}
  #allocation0 [shape = 'u32[]', space=smem, size = 0x4, offset = 0x4, fixed_abs, tag = 'smem constant byte address 0x4 - core index']
  #allocation1 [shape = 'u32[144,128]{1,0:T(1,128)}', space=vmem, size = 0x12000, scoped, tag = 'internal scratch']
  #allocation2 [shape = 'f32[18,18,42]{2,1,0:T(8,128)}', space=vmem, size = 0x36000, scoped, tag = 'scratch operand']
  #allocation3 [shape = 'f32[18,18,42]{2,1,0:T(8,128)}', space=vmem, size = 0x36000, scoped, tag = 'scratch operand']
  %s0 = inlined_call_operand.vmem [shape: f32[2,16,16,16], index: 0, kind: input, shape index: {}]
  %s1 = inlined_call_operand.vmem [shape: f32[1,16], index: 1, kind: input, shape index: {}]
  %s2 = inlined_call_operand.vmem [shape: f32[1,16], index: 2, kind: input, shape index: {}]
  %s3 = inlined_call_operand.vmem [shape: bf16[16,42], index: 3, kind: input, shape index: {}]
  %s4 = inlined_call_operand.vmem [shape: bf16[16,42], index: 4, kind: input, shape index: {}]
  %s5 = inlined_call_operand.vmem [shape: f32[3,3,42], index: 5, kind: input, shape index: {}]
  %s6 = inlined_call_operand.vmem [shape: f32[3,3,42], index: 6, kind: input, shape index: {}]
  %s7 = inlined_call_operand.vmem [shape: bf16[42,16], index: 7, kind: input, shape index: {}]
  %s8 = inlined_call_operand.vmem [shape: f32[2,16,16,16], index: 8, kind: output, shape index: {}]
  %s9 = sld [smem:[#allocation0]]
  $region65: #{gated_dconv_feedforward.1} parent=0
    _
  %s11 = ssub.s32 1, %s9
  %s12 = scalar_select 0, %s11, %s9
  loop: start=0, step=1, limit=4
  $region2: #{gated_dconv_feedforward.1} parent=0 // loop_pre_header
    _
  $region3: #{gated_dconv_feedforward.1} parent=0 // loop_header
    %s14 = sphi 0, %s18
    %p15 = scmp.ge.s32.totalorder %s14, 4
    %s24 = sphi 0, %s26
    %s27 = sphi 0, %s24
    %s28 = sphi 0, %s27
    %s44 = sphi 0, %s28
    %s48 = sphi 0, %s48
    %s50 = sphi 0, %s48
    %s51 = sphi 0, %s50
    %s65 = sphi 0, %s51
    %s69 = sphi 0, %s69
    %s71 = sphi 0, %s69
    %s72 = sphi 0, %s71
    %s86 = sphi 0, %s72
    %s90 = sphi 0, %s90
    %s92 = sphi 0, %s90
    %s93 = sphi 0, %s92
    %s107 = sphi 0, %s93
    %s111 = sphi 0, %s111
    %s113 = sphi 0, %s111
    %s114 = sphi 0, %s113
    %s128 = sphi 0, %s114
    %s132 = sphi 0, %s132
    %s134 = sphi 0, %s132
    %s135 = sphi 0, %s134
    %s149 = sphi 0, %s135
    %s153 = sphi 0, %s153
    %s155 = sphi 0, %s153
    %s156 = sphi 0, %s155
    %s170 = sphi 0, %s156
    %s174 = sphi 0, %s174
    %s176 = sphi 0, %s174
    %s177 = sphi 0, %s176
    %s191 = sphi 0, %s177
    %s197 = sphi 0, %s199
    %s200 = sphi 0, %s197
    %s201 = sphi 0, %s200
    %s217 = sphi 0, %s201
  $region4: #{gated_dconv_feedforward.1} parent=0 // loop_header_branch
    %17 = sbr.rel (%p15) target = $region8
  $region5: #{gated_dconv_feedforward.1} parent=0 // loop_body
    %s19 = ssub.s32 %s14, 1
    %s20 = ssub.s32 %s14, 2
    %s21 = sadd.s32 %s14, 1
    %s22 = ssub.s32 %s14, %s21
    %p23 = scmp.eq.s32.totalorder %s22, 0
    %s25 = sadd.s32 %s24, 1
    %s26 = scalar_select %p23, %s24, %s25
    %p29 = pneg %p23
    %p30 = scmp.eq.s32.totalorder %s14, 1
    %p31 = por %p29, %p30
    %p32 = scmp.ne.s32.totalorder %s24, %s27
    %p33 = scmp.eq.s32.totalorder %s14, 0
    %p34 = por %p32, %p33
    %p35 = scmp.ne.s32.totalorder %s24, %s27
    %p36 = scmp.eq.s32.totalorder %s19, 1
    %p37 = por %p35, %p36
    %p38 = scmp.ne.s32.totalorder %s27, %s28
    %p39 = scmp.eq.s32.totalorder %s19, 0
    %p40 = por %p38, %p39
    %p41 = scmp.ne.s32.totalorder %s27, %s28
    %p42 = scmp.eq.s32.totalorder %s20, 1
    %p43 = por %p41, %p42
    %p45 = scmp.ne.s32.totalorder %s28, %s44
    %p46 = scmp.eq.s32.totalorder %s20, 0
    %p47 = por %p45, %p46
    %s49 = sadd.s32 %s48, 1
    %p52 = scmp.eq.s32.totalorder %s14, 1
    %p53 = scmp.ne.s32.totalorder %s48, %s50
    %p54 = scmp.eq.s32.totalorder %s14, 0
    %p55 = por %p53, %p54
    %p56 = scmp.ne.s32.totalorder %s48, %s50
    %p57 = scmp.eq.s32.totalorder %s19, 1
    %p58 = por %p56, %p57
    %p59 = scmp.ne.s32.totalorder %s50, %s51
    %p60 = scmp.eq.s32.totalorder %s19, 0
    %p61 = por %p59, %p60
    %p62 = scmp.ne.s32.totalorder %s50, %s51
    %p63 = scmp.eq.s32.totalorder %s20, 1
    %p64 = por %p62, %p63
    %p66 = scmp.ne.s32.totalorder %s51, %s65
    %p67 = scmp.eq.s32.totalorder %s20, 0
    %p68 = por %p66, %p67
    %s70 = sadd.s32 %s69, 1
    %p73 = scmp.eq.s32.totalorder %s14, 1
    %p74 = scmp.ne.s32.totalorder %s69, %s71
    %p75 = scmp.eq.s32.totalorder %s14, 0
    %p76 = por %p74, %p75
    %p77 = scmp.ne.s32.totalorder %s69, %s71
    %p78 = scmp.eq.s32.totalorder %s19, 1
    %p79 = por %p77, %p78
    %p80 = scmp.ne.s32.totalorder %s71, %s72
    %p81 = scmp.eq.s32.totalorder %s19, 0
    %p82 = por %p80, %p81
    %p83 = scmp.ne.s32.totalorder %s71, %s72
    %p84 = scmp.eq.s32.totalorder %s20, 1
    %p85 = por %p83, %p84
    %p87 = scmp.ne.s32.totalorder %s72, %s86
    %p88 = scmp.eq.s32.totalorder %s20, 0
    %p89 = por %p87, %p88
    %s91 = sadd.s32 %s90, 1
    %p94 = scmp.eq.s32.totalorder %s14, 1
    %p95 = scmp.ne.s32.totalorder %s90, %s92
    %p96 = scmp.eq.s32.totalorder %s14, 0
    %p97 = por %p95, %p96
    %p98 = scmp.ne.s32.totalorder %s90, %s92
    %p99 = scmp.eq.s32.totalorder %s19, 1
    %p100 = por %p98, %p99
    %p101 = scmp.ne.s32.totalorder %s92, %s93
    %p102 = scmp.eq.s32.totalorder %s19, 0
    %p103 = por %p101, %p102
    %p104 = scmp.ne.s32.totalorder %s92, %s93
    %p105 = scmp.eq.s32.totalorder %s20, 1
    %p106 = por %p104, %p105
    %p108 = scmp.ne.s32.totalorder %s93, %s107
    %p109 = scmp.eq.s32.totalorder %s20, 0
    %p110 = por %p108, %p109
    %s112 = sadd.s32 %s111, 1
    %p115 = scmp.eq.s32.totalorder %s14, 1
    %p116 = scmp.ne.s32.totalorder %s111, %s113
    %p117 = scmp.eq.s32.totalorder %s14, 0
    %p118 = por %p116, %p117
    %p119 = scmp.ne.s32.totalorder %s111, %s113
    %p120 = scmp.eq.s32.totalorder %s19, 1
    %p121 = por %p119, %p120
    %p122 = scmp.ne.s32.totalorder %s113, %s114
    %p123 = scmp.eq.s32.totalorder %s19, 0
    %p124 = por %p122, %p123
    %p125 = scmp.ne.s32.totalorder %s113, %s114
    %p126 = scmp.eq.s32.totalorder %s20, 1
    %p127 = por %p125, %p126
    %p129 = scmp.ne.s32.totalorder %s114, %s128
    %p130 = scmp.eq.s32.totalorder %s20, 0
    %p131 = por %p129, %p130
    %s133 = sadd.s32 %s132, 1
    %p136 = scmp.eq.s32.totalorder %s14, 1
    %p137 = scmp.ne.s32.totalorder %s132, %s134
    %p138 = scmp.eq.s32.totalorder %s14, 0
    %p139 = por %p137, %p138
    %p140 = scmp.ne.s32.totalorder %s132, %s134
    %p141 = scmp.eq.s32.totalorder %s19, 1
    %p142 = por %p140, %p141
    %p143 = scmp.ne.s32.totalorder %s134, %s135
    %p144 = scmp.eq.s32.totalorder %s19, 0
    %p145 = por %p143, %p144
    %p146 = scmp.ne.s32.totalorder %s134, %s135
    %p147 = scmp.eq.s32.totalorder %s20, 1
    %p148 = por %p146, %p147
    %p150 = scmp.ne.s32.totalorder %s135, %s149
    %p151 = scmp.eq.s32.totalorder %s20, 0
    %p152 = por %p150, %p151
    %s154 = sadd.s32 %s153, 1
    %p157 = scmp.eq.s32.totalorder %s14, 1
    %p158 = scmp.ne.s32.totalorder %s153, %s155
    %p159 = scmp.eq.s32.totalorder %s14, 0
    %p160 = por %p158, %p159
    %p161 = scmp.ne.s32.totalorder %s153, %s155
    %p162 = scmp.eq.s32.totalorder %s19, 1
    %p163 = por %p161, %p162
    %p164 = scmp.ne.s32.totalorder %s155, %s156
    %p165 = scmp.eq.s32.totalorder %s19, 0
    %p166 = por %p164, %p165
    %p167 = scmp.ne.s32.totalorder %s155, %s156
    %p168 = scmp.eq.s32.totalorder %s20, 1
    %p169 = por %p167, %p168
    %p171 = scmp.ne.s32.totalorder %s156, %s170
    %p172 = scmp.eq.s32.totalorder %s20, 0
    %p173 = por %p171, %p172
    %s175 = sadd.s32 %s174, 1
    %p178 = scmp.eq.s32.totalorder %s14, 1
    %p179 = scmp.ne.s32.totalorder %s174, %s176
    %p180 = scmp.eq.s32.totalorder %s14, 0
    %p181 = por %p179, %p180
    %p182 = scmp.ne.s32.totalorder %s174, %s176
    %p183 = scmp.eq.s32.totalorder %s19, 1
    %p184 = por %p182, %p183
    %p185 = scmp.ne.s32.totalorder %s176, %s177
    %p186 = scmp.eq.s32.totalorder %s19, 0
    %p187 = por %p185, %p186
    %p188 = scmp.ne.s32.totalorder %s176, %s177
    %p189 = scmp.eq.s32.totalorder %s20, 1
    %p190 = por %p188, %p189
    %p192 = scmp.ne.s32.totalorder %s177, %s191
    %p193 = scmp.eq.s32.totalorder %s20, 0
    %p194 = por %p192, %p193
    %s195 = ssub.s32 %s14, %s21
    %p196 = scmp.eq.s32.totalorder %s195, 0
    %s198 = sadd.s32 %s197, 1
    %s199 = scalar_select %p196, %s197, %s198
    %p202 = pneg %p196
    %p203 = scmp.eq.s32.totalorder %s14, 1
    %p204 = por %p202, %p203
    %p205 = scmp.ne.s32.totalorder %s197, %s200
    %p206 = scmp.eq.s32.totalorder %s14, 0
    %p207 = por %p205, %p206
    %p208 = scmp.ne.s32.totalorder %s197, %s200
    %p209 = scmp.eq.s32.totalorder %s19, 1
    %p210 = por %p208, %p209
    %p211 = scmp.ne.s32.totalorder %s200, %s201
    %p212 = scmp.eq.s32.totalorder %s19, 0
    %p213 = por %p211, %p212
    %p214 = scmp.ne.s32.totalorder %s200, %s201
    %p215 = scmp.eq.s32.totalorder %s20, 1
    %p216 = por %p214, %p215
    %p218 = scmp.ne.s32.totalorder %s201, %s217
    %p219 = scmp.eq.s32.totalorder %s20, 0
    %p220 = por %p218, %p219
    %p221 = scmp.le.s32.totalorder 1, %s14
    %p222 = scmp.lt.s32.totalorder %s14, 3
    %p223 = pnand %p221, %p222
    %p224 = pneg %p223
    // Predicated region
    $region9: #{gated_dconv_feedforward.1} parent=5 // pred_check
      _
    $region10: #{gated_dconv_feedforward.1} parent=5 // pred_check_branch
      %226 = sbr.rel (%p223) target = $region12
    $region11: #{gated_dconv_feedforward.1} parent=5 // pred_region
      %s227 = ssub.s32 %s14, 1
      // Predicated region
      $region13: #{gated_dconv_feedforward.1} parent=11 // pred_check
        %p228 = pneg %p61
      $region14: #{gated_dconv_feedforward.1} parent=11 // pred_check_branch
        %230 = sbr.rel (%p228) target = $region16
      $region15: #{gated_dconv_feedforward.1} parent=11 // pred_region
        _
      $region16: #{gated_dconv_feedforward.1} parent=11 // pred_fallthru
        _
      // Predicated region
      $region17: #{gated_dconv_feedforward.1} parent=11 // pred_check
        %p231 = pneg %p82
      $region18: #{gated_dconv_feedforward.1} parent=11 // pred_check_branch
        %233 = sbr.rel (%p231) target = $region20
      $region19: #{gated_dconv_feedforward.1} parent=11 // pred_region
        _
      $region20: #{gated_dconv_feedforward.1} parent=11 // pred_fallthru
        _
      // Predicated region
      $region21: #{gated_dconv_feedforward.1} parent=11 // pred_check
        %p234 = pneg %p103
      $region22: #{gated_dconv_feedforward.1} parent=11 // pred_check_branch
        %236 = sbr.rel (%p234) target = $region24
      $region23: #{gated_dconv_feedforward.1} parent=11 // pred_region
        _
      $region24: #{gated_dconv_feedforward.1} parent=11 // pred_fallthru
        _
      // Predicated region
      $region25: #{gated_dconv_feedforward.1} parent=11 // pred_check
        %p237 = pneg %p124
      $region26: #{gated_dconv_feedforward.1} parent=11 // pred_check_branch
        %239 = sbr.rel (%p237) target = $region28
      $region27: #{gated_dconv_feedforward.1} parent=11 // pred_region
        _
      $region28: #{gated_dconv_feedforward.1} parent=11 // pred_fallthru
        _
      // Predicated region
      $region29: #{gated_dconv_feedforward.1} parent=11 // pred_check
        %p240 = pneg %p145
      $region30: #{gated_dconv_feedforward.1} parent=11 // pred_check_branch
        %242 = sbr.rel (%p240) target = $region32
      $region31: #{gated_dconv_feedforward.1} parent=11 // pred_region
        _
      $region32: #{gated_dconv_feedforward.1} parent=11 // pred_fallthru
        _
      // Predicated region
      $region33: #{gated_dconv_feedforward.1} parent=11 // pred_check
        %p243 = pneg %p166
      $region34: #{gated_dconv_feedforward.1} parent=11 // pred_check_branch
        %245 = sbr.rel (%p243) target = $region36
      $region35: #{gated_dconv_feedforward.1} parent=11 // pred_region
        _
      $region36: #{gated_dconv_feedforward.1} parent=11 // pred_fallthru
        _
      // Predicated region
      $region37: #{gated_dconv_feedforward.1} parent=11 // pred_check
        %p246 = pneg %p187
      $region38: #{gated_dconv_feedforward.1} parent=11 // pred_check_branch
        %248 = sbr.rel (%p246) target = $region40
      $region39: #{gated_dconv_feedforward.1} parent=11 // pred_region
        _
      $region40: #{gated_dconv_feedforward.1} parent=11 // pred_fallthru
        _
    $region12: #{gated_dconv_feedforward.1} parent=5 // pred_fallthru
      _
    %p249 = scmp.lt.s32.totalorder %s14, 2
    // Predicated region
    $region41: #{gated_dconv_feedforward.1} parent=5 // pred_check
      %p250 = pneg %p249
    $region42: #{gated_dconv_feedforward.1} parent=5 // pred_check_branch
      %252 = sbr.rel (%p250) target = $region44
    $region43: #{gated_dconv_feedforward.1} parent=5 // pred_region
      // Predicated region
      $region45: #{gated_dconv_feedforward.1} parent=43 // pred_check
        %p253 = pneg %p34
      $region46: #{gated_dconv_feedforward.1} parent=43 // pred_check_branch
        %255 = sbr.rel (%p253) target = $region48
      $region47: #{gated_dconv_feedforward.1} parent=43 // pred_region
        %p256 = scmp.lt.s32.totalorder %s14, 1
        %s257 = scalar_select %p256, %s14, 1
        %s258 = smul.addr %s257, 32
        %s259 = smul.addr %s258, 8
        %s260 = scalar_lea.vmem %s0, %s259
      $region48: #{gated_dconv_feedforward.1} parent=43 // pred_fallthru
        _
    $region44: #{gated_dconv_feedforward.1} parent=5 // pred_fallthru
      _
    %p261 = scmp.le.s32.totalorder 1, %s14
    %p262 = scmp.lt.s32.totalorder %s14, 3
    %p263 = pnand %p261, %p262
    %p264 = pneg %p263
    // Predicated region
    $region49: #{gated_dconv_feedforward.1} parent=5 // pred_check
      _
    $region50: #{gated_dconv_feedforward.1} parent=5 // pred_check_branch
      %266 = sbr.rel (%p263) target = $region52
    $region51: #{gated_dconv_feedforward.1} parent=5 // pred_region
      %s267 = ssub.s32 %s14, 1
      %p268 = scmp.lt.s32.totalorder %s19, 1
      %s269 = scalar_select %p268, %s19, 1
      %s270 = smul.addr %s269, 32
      %s271 = smul.addr %s270, 8
      %s272 = scalar_lea.vmem %s0, %s271
      %p273 = pneg %p40
      %p274 = pneg %p37
      %p275 = pneg %p61
      %p276 = pneg %p58
      %p277 = pneg %p82
      %p278 = pneg %p79
      %p279 = pneg %p103
      %p280 = pneg %p100
      %p281 = pneg %p124
      %p282 = pneg %p121
      %p283 = pneg %p145
      %p284 = pneg %p142
      %p285 = pneg %p166
      %p286 = pneg %p163
      %p287 = pneg %p187
      %p288 = pneg %p184
      %p289 = pneg %p213
      %p290 = pneg %p210
      %p291 = scmp.lt.s32.totalorder %s19, 1
      %s292 = scalar_select %p291, %s19, 1
      %s293 = smul.addr %s292, 32
      %s294 = smul.addr %s293, 8
      %s295 = scalar_lea.vmem %s8, %s294
      %p296 = scmp.lt.s32.totalorder %s19, 1
      %s297 = scalar_select %p296, %s19, 1
      %s298 = smul.addr %s297, 32
      %s299 = smul.addr %s298, 8
      %s300 = scalar_lea.vmem %s0, %s299
      %p301 = scmp.lt.s32.totalorder %s19, 1
      %s302 = scalar_select %p301, %s19, 1
      %s303 = smul.addr %s302, 32
      %s304 = smul.addr %s303, 8
      %s305 = scalar_lea.vmem %s8, %s304
      %v307 = vld [vmem:[%s300] sm:$0xff]
      %v308 = vld [vmem:[%s300 + $0x8] sm:$0xff]
      %v309 = vld [vmem:[%s300 + $0x10] sm:$0xff]
      %v310 = vld [vmem:[%s300 + $0x18] sm:$0xff]
      %v311 = vld [vmem:[%s300 + $0x20] sm:$0xff]
      %v312 = vld [vmem:[%s300 + $0x28] sm:$0xff]
      %v313 = vld [vmem:[%s300 + $0x30] sm:$0xff]
      %v314 = vld [vmem:[%s300 + $0x38] sm:$0xff]
      %v315 = vld [vmem:[%s300 + $0x40] sm:$0xff]
      %v316 = vld [vmem:[%s300 + $0x48] sm:$0xff]
      %v317 = vld [vmem:[%s300 + $0x50] sm:$0xff]
      %v318 = vld [vmem:[%s300 + $0x58] sm:$0xff]
      %v319 = vld [vmem:[%s300 + $0x60] sm:$0xff]
      %v320 = vld [vmem:[%s300 + $0x68] sm:$0xff]
      %v321 = vld [vmem:[%s300 + $0x70] sm:$0xff]
      %v322 = vld [vmem:[%s300 + $0x78] sm:$0xff]
      %v323 = vld [vmem:[%s300 + $0x80] sm:$0xff]
      %v324 = vld [vmem:[%s300 + $0x88] sm:$0xff]
      %v325 = vld [vmem:[%s300 + $0x90] sm:$0xff]
      %v326 = vld [vmem:[%s300 + $0x98] sm:$0xff]
      %v327 = vld [vmem:[%s300 + $0xa0] sm:$0xff]
      %v328 = vld [vmem:[%s300 + $0xa8] sm:$0xff]
      %v329 = vld [vmem:[%s300 + $0xb0] sm:$0xff]
      %v330 = vld [vmem:[%s300 + $0xb8] sm:$0xff]
      %v331 = vld [vmem:[%s300 + $0xc0] sm:$0xff]
      %v332 = vld [vmem:[%s300 + $0xc8] sm:$0xff]
      %v333 = vld [vmem:[%s300 + $0xd0] sm:$0xff]
      %v334 = vld [vmem:[%s300 + $0xd8] sm:$0xff]
      %v335 = vld [vmem:[%s300 + $0xe0] sm:$0xff]
      %v336 = vld [vmem:[%s300 + $0xe8] sm:$0xff]
      %v337 = vld [vmem:[%s300 + $0xf0] sm:$0xff]
      %v338 = vld [vmem:[%s300 + $0xf8] sm:$0xff]
      %vm339 = vcmask 130048
      %v340 = vsel %vm339, %v307, 0.0
      %341 = vadd.xlane.f32.xlu0 %v340
      %v342 = vpop.xlane.xlu0 %341
      %v343 = vsel %vm339, %v308, 0.0
      %344 = vadd.xlane.f32.xlu0 %v343
      %v345 = vpop.xlane.xlu0 %344
      %v346 = vsel %vm339, %v309, 0.0
      %347 = vadd.xlane.f32.xlu0 %v346
      %v348 = vpop.xlane.xlu0 %347
      %v349 = vsel %vm339, %v310, 0.0
      %350 = vadd.xlane.f32.xlu0 %v349
      %v351 = vpop.xlane.xlu0 %350
      %v352 = vsel %vm339, %v311, 0.0
      %353 = vadd.xlane.f32.xlu0 %v352
      %v354 = vpop.xlane.xlu0 %353
      %v355 = vsel %vm339, %v312, 0.0
      %356 = vadd.xlane.f32.xlu0 %v355
      %v357 = vpop.xlane.xlu0 %356
      %v358 = vsel %vm339, %v313, 0.0
      %359 = vadd.xlane.f32.xlu0 %v358
      %v360 = vpop.xlane.xlu0 %359
      %v361 = vsel %vm339, %v314, 0.0
      %362 = vadd.xlane.f32.xlu0 %v361
      %v363 = vpop.xlane.xlu0 %362
      %v364 = vsel %vm339, %v315, 0.0
      %365 = vadd.xlane.f32.xlu0 %v364
      %v366 = vpop.xlane.xlu0 %365
      %v367 = vsel %vm339, %v316, 0.0
      %368 = vadd.xlane.f32.xlu0 %v367
      %v369 = vpop.xlane.xlu0 %368
      %v370 = vsel %vm339, %v317, 0.0
      %371 = vadd.xlane.f32.xlu0 %v370
      %v372 = vpop.xlane.xlu0 %371
      %v373 = vsel %vm339, %v318, 0.0
      %374 = vadd.xlane.f32.xlu0 %v373
      %v375 = vpop.xlane.xlu0 %374
      %v376 = vsel %vm339, %v319, 0.0
      %377 = vadd.xlane.f32.xlu0 %v376
      %v378 = vpop.xlane.xlu0 %377
      %v379 = vsel %vm339, %v320, 0.0
      %380 = vadd.xlane.f32.xlu0 %v379
      %v381 = vpop.xlane.xlu0 %380
      %v382 = vsel %vm339, %v321, 0.0
      %383 = vadd.xlane.f32.xlu0 %v382
      %v384 = vpop.xlane.xlu0 %383
      %v385 = vsel %vm339, %v322, 0.0
      %386 = vadd.xlane.f32.xlu0 %v385
      %v387 = vpop.xlane.xlu0 %386
      %v388 = vsel %vm339, %v323, 0.0
      %389 = vadd.xlane.f32.xlu0 %v388
      %v390 = vpop.xlane.xlu0 %389
      %v391 = vsel %vm339, %v324, 0.0
      %392 = vadd.xlane.f32.xlu0 %v391
      %v393 = vpop.xlane.xlu0 %392
      %v394 = vsel %vm339, %v325, 0.0
      %395 = vadd.xlane.f32.xlu0 %v394
      %v396 = vpop.xlane.xlu0 %395
      %v397 = vsel %vm339, %v326, 0.0
      %398 = vadd.xlane.f32.xlu0 %v397
      %v399 = vpop.xlane.xlu0 %398
      %v400 = vsel %vm339, %v327, 0.0
      %401 = vadd.xlane.f32.xlu0 %v400
      %v402 = vpop.xlane.xlu0 %401
      %v403 = vsel %vm339, %v328, 0.0
      %404 = vadd.xlane.f32.xlu0 %v403
      %v405 = vpop.xlane.xlu0 %404
      %v406 = vsel %vm339, %v329, 0.0
      %407 = vadd.xlane.f32.xlu0 %v406
      %v408 = vpop.xlane.xlu0 %407
      %v409 = vsel %vm339, %v330, 0.0
      %410 = vadd.xlane.f32.xlu0 %v409
      %v411 = vpop.xlane.xlu0 %410
      %v412 = vsel %vm339, %v331, 0.0
      %413 = vadd.xlane.f32.xlu0 %v412
      %v414 = vpop.xlane.xlu0 %413
      %v415 = vsel %vm339, %v332, 0.0
      %416 = vadd.xlane.f32.xlu0 %v415
      %v417 = vpop.xlane.xlu0 %416
      %v418 = vsel %vm339, %v333, 0.0
      %419 = vadd.xlane.f32.xlu0 %v418
      %v420 = vpop.xlane.xlu0 %419
      %v421 = vsel %vm339, %v334, 0.0
      %422 = vadd.xlane.f32.xlu0 %v421
      %v423 = vpop.xlane.xlu0 %422
      %v424 = vsel %vm339, %v335, 0.0
      %425 = vadd.xlane.f32.xlu0 %v424
      %v426 = vpop.xlane.xlu0 %425
      %v427 = vsel %vm339, %v336, 0.0
      %428 = vadd.xlane.f32.xlu0 %v427
      %v429 = vpop.xlane.xlu0 %428
      %v430 = vsel %vm339, %v337, 0.0
      %431 = vadd.xlane.f32.xlu0 %v430
      %v432 = vpop.xlane.xlu0 %431
      %v433 = vsel %vm339, %v338, 0.0
      %434 = vadd.xlane.f32.xlu0 %v433
      %v435 = vpop.xlane.xlu0 %434
      %v436 = vrcp.pop 16.0
      %v437 = vmul.f32 %v342, %v436
      %v438 = vmul.f32 %v345, %v436
      %v439 = vmul.f32 %v348, %v436
      %v440 = vmul.f32 %v351, %v436
      %v441 = vmul.f32 %v354, %v436
      %v442 = vmul.f32 %v357, %v436
      %v443 = vmul.f32 %v360, %v436
      %v444 = vmul.f32 %v363, %v436
      %v445 = vmul.f32 %v366, %v436
      %v446 = vmul.f32 %v369, %v436
      %v447 = vmul.f32 %v372, %v436
      %v448 = vmul.f32 %v375, %v436
      %v449 = vmul.f32 %v378, %v436
      %v450 = vmul.f32 %v381, %v436
      %v451 = vmul.f32 %v384, %v436
      %v452 = vmul.f32 %v387, %v436
      %v453 = vmul.f32 %v390, %v436
      %v454 = vmul.f32 %v393, %v436
      %v455 = vmul.f32 %v396, %v436
      %v456 = vmul.f32 %v399, %v436
      %v457 = vmul.f32 %v402, %v436
      %v458 = vmul.f32 %v405, %v436
      %v459 = vmul.f32 %v408, %v436
      %v460 = vmul.f32 %v411, %v436
      %v461 = vmul.f32 %v414, %v436
      %v462 = vmul.f32 %v417, %v436
      %v463 = vmul.f32 %v420, %v436
      %v464 = vmul.f32 %v423, %v436
      %v465 = vmul.f32 %v426, %v436
      %v466 = vmul.f32 %v429, %v436
      %v467 = vmul.f32 %v432, %v436
      %v468 = vmul.f32 %v435, %v436
      %v469 = vsub.f32 %v307, %v437
      %v470 = vsub.f32 %v308, %v438
      %v471 = vsub.f32 %v309, %v439
      %v472 = vsub.f32 %v310, %v440
      %v473 = vsub.f32 %v311, %v441
      %v474 = vsub.f32 %v312, %v442
      %v475 = vsub.f32 %v313, %v443
      %v476 = vsub.f32 %v314, %v444
      %v477 = vsub.f32 %v315, %v445
      %v478 = vsub.f32 %v316, %v446
      %v479 = vsub.f32 %v317, %v447
      %v480 = vsub.f32 %v318, %v448
      %v481 = vsub.f32 %v319, %v449
      %v482 = vsub.f32 %v320, %v450
      %v483 = vsub.f32 %v321, %v451
      %v484 = vsub.f32 %v322, %v452
      %v485 = vsub.f32 %v323, %v453
      %v486 = vsub.f32 %v324, %v454
      %v487 = vsub.f32 %v325, %v455
      %v488 = vsub.f32 %v326, %v456
      %v489 = vsub.f32 %v327, %v457
      %v490 = vsub.f32 %v328, %v458
      %v491 = vsub.f32 %v329, %v459
      %v492 = vsub.f32 %v330, %v460
      %v493 = vsub.f32 %v331, %v461
      %v494 = vsub.f32 %v332, %v462
      %v495 = vsub.f32 %v333, %v463
      %v496 = vsub.f32 %v334, %v464
      %v497 = vsub.f32 %v335, %v465
      %v498 = vsub.f32 %v336, %v466
      %v499 = vsub.f32 %v337, %v467
      %v500 = vsub.f32 %v338, %v468
      %v501 = vmul.f32 %v469, %v469
      %v502 = vmul.f32 %v470, %v470
      %v503 = vmul.f32 %v471, %v471
      %v504 = vmul.f32 %v472, %v472
      %v505 = vmul.f32 %v473, %v473
      %v506 = vmul.f32 %v474, %v474
      %v507 = vmul.f32 %v475, %v475
      %v508 = vmul.f32 %v476, %v476
      %v509 = vmul.f32 %v477, %v477
      %v510 = vmul.f32 %v478, %v478
      %v511 = vmul.f32 %v479, %v479
      %v512 = vmul.f32 %v480, %v480
      %v513 = vmul.f32 %v481, %v481
      %v514 = vmul.f32 %v482, %v482
      %v515 = vmul.f32 %v483, %v483
      %v516 = vmul.f32 %v484, %v484
      %v517 = vmul.f32 %v485, %v485
      %v518 = vmul.f32 %v486, %v486
      %v519 = vmul.f32 %v487, %v487
      %v520 = vmul.f32 %v488, %v488
      %v521 = vmul.f32 %v489, %v489
      %v522 = vmul.f32 %v490, %v490
      %v523 = vmul.f32 %v491, %v491
      %v524 = vmul.f32 %v492, %v492
      %v525 = vmul.f32 %v493, %v493
      %v526 = vmul.f32 %v494, %v494
      %v527 = vmul.f32 %v495, %v495
      %v528 = vmul.f32 %v496, %v496
      %v529 = vmul.f32 %v497, %v497
      %v530 = vmul.f32 %v498, %v498
      %v531 = vmul.f32 %v499, %v499
      %v532 = vmul.f32 %v500, %v500
      %v533 = vsel %vm339, %v501, 0.0
      %534 = vadd.xlane.f32.xlu0 %v533
      %v535 = vpop.xlane.xlu0 %534
      %v536 = vsel %vm339, %v502, 0.0
      %537 = vadd.xlane.f32.xlu0 %v536
      %v538 = vpop.xlane.xlu0 %537
      %v539 = vsel %vm339, %v503, 0.0
      %540 = vadd.xlane.f32.xlu0 %v539
      %v541 = vpop.xlane.xlu0 %540
      %v542 = vsel %vm339, %v504, 0.0
      %543 = vadd.xlane.f32.xlu0 %v542
      %v544 = vpop.xlane.xlu0 %543
      %v545 = vsel %vm339, %v505, 0.0
      %546 = vadd.xlane.f32.xlu0 %v545
      %v547 = vpop.xlane.xlu0 %546
      %v548 = vsel %vm339, %v506, 0.0
      %549 = vadd.xlane.f32.xlu0 %v548
      %v550 = vpop.xlane.xlu0 %549
      %v551 = vsel %vm339, %v507, 0.0
      %552 = vadd.xlane.f32.xlu0 %v551
      %v553 = vpop.xlane.xlu0 %552
      %v554 = vsel %vm339, %v508, 0.0
      %555 = vadd.xlane.f32.xlu0 %v554
      %v556 = vpop.xlane.xlu0 %555
      %v557 = vsel %vm339, %v509, 0.0
      %558 = vadd.xlane.f32.xlu0 %v557
      %v559 = vpop.xlane.xlu0 %558
      %v560 = vsel %vm339, %v510, 0.0
      %561 = vadd.xlane.f32.xlu0 %v560
      %v562 = vpop.xlane.xlu0 %561
      %v563 = vsel %vm339, %v511, 0.0
      %564 = vadd.xlane.f32.xlu0 %v563
      %v565 = vpop.xlane.xlu0 %564
      %v566 = vsel %vm339, %v512, 0.0
      %567 = vadd.xlane.f32.xlu0 %v566
      %v568 = vpop.xlane.xlu0 %567
      %v569 = vsel %vm339, %v513, 0.0
      %570 = vadd.xlane.f32.xlu0 %v569
      %v571 = vpop.xlane.xlu0 %570
      %v572 = vsel %vm339, %v514, 0.0
      %573 = vadd.xlane.f32.xlu0 %v572
      %v574 = vpop.xlane.xlu0 %573
      %v575 = vsel %vm339, %v515, 0.0
      %576 = vadd.xlane.f32.xlu0 %v575
      %v577 = vpop.xlane.xlu0 %576
      %v578 = vsel %vm339, %v516, 0.0
      %579 = vadd.xlane.f32.xlu0 %v578
      %v580 = vpop.xlane.xlu0 %579
      %v581 = vsel %vm339, %v517, 0.0
      %582 = vadd.xlane.f32.xlu0 %v581
      %v583 = vpop.xlane.xlu0 %582
      %v584 = vsel %vm339, %v518, 0.0
      %585 = vadd.xlane.f32.xlu0 %v584
      %v586 = vpop.xlane.xlu0 %585
      %v587 = vsel %vm339, %v519, 0.0
      %588 = vadd.xlane.f32.xlu0 %v587
      %v589 = vpop.xlane.xlu0 %588
      %v590 = vsel %vm339, %v520, 0.0
      %591 = vadd.xlane.f32.xlu0 %v590
      %v592 = vpop.xlane.xlu0 %591
      %v593 = vsel %vm339, %v521, 0.0
      %594 = vadd.xlane.f32.xlu0 %v593
      %v595 = vpop.xlane.xlu0 %594
      %v596 = vsel %vm339, %v522, 0.0
      %597 = vadd.xlane.f32.xlu0 %v596
      %v598 = vpop.xlane.xlu0 %597
      %v599 = vsel %vm339, %v523, 0.0
      %600 = vadd.xlane.f32.xlu0 %v599
      %v601 = vpop.xlane.xlu0 %600
      %v602 = vsel %vm339, %v524, 0.0
      %603 = vadd.xlane.f32.xlu0 %v602
      %v604 = vpop.xlane.xlu0 %603
      %v605 = vsel %vm339, %v525, 0.0
      %606 = vadd.xlane.f32.xlu0 %v605
      %v607 = vpop.xlane.xlu0 %606
      %v608 = vsel %vm339, %v526, 0.0
      %609 = vadd.xlane.f32.xlu0 %v608
      %v610 = vpop.xlane.xlu0 %609
      %v611 = vsel %vm339, %v527, 0.0
      %612 = vadd.xlane.f32.xlu0 %v611
      %v613 = vpop.xlane.xlu0 %612
      %v614 = vsel %vm339, %v528, 0.0
      %615 = vadd.xlane.f32.xlu0 %v614
      %v616 = vpop.xlane.xlu0 %615
      %v617 = vsel %vm339, %v529, 0.0
      %618 = vadd.xlane.f32.xlu0 %v617
      %v619 = vpop.xlane.xlu0 %618
      %v620 = vsel %vm339, %v530, 0.0
      %621 = vadd.xlane.f32.xlu0 %v620
      %v622 = vpop.xlane.xlu0 %621
      %v623 = vsel %vm339, %v531, 0.0
      %624 = vadd.xlane.f32.xlu0 %v623
      %v625 = vpop.xlane.xlu0 %624
      %v626 = vsel %vm339, %v532, 0.0
      %627 = vadd.xlane.f32.xlu0 %v626
      %v628 = vpop.xlane.xlu0 %627
      %v629 = vmul.f32 %v535, %v436
      %v630 = vmul.f32 %v538, %v436
      %v631 = vmul.f32 %v541, %v436
      %v632 = vmul.f32 %v544, %v436
      %v633 = vmul.f32 %v547, %v436
      %v634 = vmul.f32 %v550, %v436
      %v635 = vmul.f32 %v553, %v436
      %v636 = vmul.f32 %v556, %v436
      %v637 = vmul.f32 %v559, %v436
      %v638 = vmul.f32 %v562, %v436
      %v639 = vmul.f32 %v565, %v436
      %v640 = vmul.f32 %v568, %v436
      %v641 = vmul.f32 %v571, %v436
      %v642 = vmul.f32 %v574, %v436
      %v643 = vmul.f32 %v577, %v436
      %v644 = vmul.f32 %v580, %v436
      %v645 = vmul.f32 %v583, %v436
      %v646 = vmul.f32 %v586, %v436
      %v647 = vmul.f32 %v589, %v436
      %v648 = vmul.f32 %v592, %v436
      %v649 = vmul.f32 %v595, %v436
      %v650 = vmul.f32 %v598, %v436
      %v651 = vmul.f32 %v601, %v436
      %v652 = vmul.f32 %v604, %v436
      %v653 = vmul.f32 %v607, %v436
      %v654 = vmul.f32 %v610, %v436
      %v655 = vmul.f32 %v613, %v436
      %v656 = vmul.f32 %v616, %v436
      %v657 = vmul.f32 %v619, %v436
      %v658 = vmul.f32 %v622, %v436
      %v659 = vmul.f32 %v625, %v436
      %v660 = vmul.f32 %v628, %v436
      %v661 = vadd.f32 %v629, 1e-05
      %v662 = vadd.f32 %v630, 1e-05
      %v663 = vadd.f32 %v631, 1e-05
      %v664 = vadd.f32 %v632, 1e-05
      %v665 = vadd.f32 %v633, 1e-05
      %v666 = vadd.f32 %v634, 1e-05
      %v667 = vadd.f32 %v635, 1e-05
      %v668 = vadd.f32 %v636, 1e-05
      %v669 = vadd.f32 %v637, 1e-05
      %v670 = vadd.f32 %v638, 1e-05
      %v671 = vadd.f32 %v639, 1e-05
      %v672 = vadd.f32 %v640, 1e-05
      %v673 = vadd.f32 %v641, 1e-05
      %v674 = vadd.f32 %v642, 1e-05
      %v675 = vadd.f32 %v643, 1e-05
      %v676 = vadd.f32 %v644, 1e-05
      %v677 = vadd.f32 %v645, 1e-05
      %v678 = vadd.f32 %v646, 1e-05
      %v679 = vadd.f32 %v647, 1e-05
      %v680 = vadd.f32 %v648, 1e-05
      %v681 = vadd.f32 %v649, 1e-05
      %v682 = vadd.f32 %v650, 1e-05
      %v683 = vadd.f32 %v651, 1e-05
      %v684 = vadd.f32 %v652, 1e-05
      %v685 = vadd.f32 %v653, 1e-05
      %v686 = vadd.f32 %v654, 1e-05
      %v687 = vadd.f32 %v655, 1e-05
      %v688 = vadd.f32 %v656, 1e-05
      %v689 = vadd.f32 %v657, 1e-05
      %v690 = vadd.f32 %v658, 1e-05
      %v691 = vadd.f32 %v659, 1e-05
      %v692 = vadd.f32 %v660, 1e-05
      %v693 = vrsqrt.pop %v661
      %v694 = vmul.f32 %v661, %v693
      %vm695 = vcmp.eq.f32.partialorder %v661, inf
      %v696 = vsel %vm695, %v661, %v694
      %vm697 = vcmp.eq.f32.partialorder %v661, 0.0
      %v698 = vand.u32 %v661, 2147483648
      %v699 = vsel %vm697, %v698, %v696
      %v700 = vrsqrt.pop %v662
      %v701 = vmul.f32 %v662, %v700
      %vm702 = vcmp.eq.f32.partialorder %v662, inf
      %v703 = vsel %vm702, %v662, %v701
      %vm704 = vcmp.eq.f32.partialorder %v662, 0.0
      %v705 = vand.u32 %v662, 2147483648
      %v706 = vsel %vm704, %v705, %v703
      %v707 = vrsqrt.pop %v663
      %v708 = vmul.f32 %v663, %v707
      %vm709 = vcmp.eq.f32.partialorder %v663, inf
      %v710 = vsel %vm709, %v663, %v708
      %vm711 = vcmp.eq.f32.partialorder %v663, 0.0
      %v712 = vand.u32 %v663, 2147483648
      %v713 = vsel %vm711, %v712, %v710
      %v714 = vrsqrt.pop %v664
      %v715 = vmul.f32 %v664, %v714
      %vm716 = vcmp.eq.f32.partialorder %v664, inf
      %v717 = vsel %vm716, %v664, %v715
      %vm718 = vcmp.eq.f32.partialorder %v664, 0.0
      %v719 = vand.u32 %v664, 2147483648
      %v720 = vsel %vm718, %v719, %v717
      %v721 = vrsqrt.pop %v665
      %v722 = vmul.f32 %v665, %v721
      %vm723 = vcmp.eq.f32.partialorder %v665, inf
      %v724 = vsel %vm723, %v665, %v722
      %vm725 = vcmp.eq.f32.partialorder %v665, 0.0
      %v726 = vand.u32 %v665, 2147483648
      %v727 = vsel %vm725, %v726, %v724
      %v728 = vrsqrt.pop %v666
      %v729 = vmul.f32 %v666, %v728
      %vm730 = vcmp.eq.f32.partialorder %v666, inf
      %v731 = vsel %vm730, %v666, %v729
      %vm732 = vcmp.eq.f32.partialorder %v666, 0.0
      %v733 = vand.u32 %v666, 2147483648
      %v734 = vsel %vm732, %v733, %v731
      %v735 = vrsqrt.pop %v667
      %v736 = vmul.f32 %v667, %v735
      %vm737 = vcmp.eq.f32.partialorder %v667, inf
      %v738 = vsel %vm737, %v667, %v736
      %vm739 = vcmp.eq.f32.partialorder %v667, 0.0
      %v740 = vand.u32 %v667, 2147483648
      %v741 = vsel %vm739, %v740, %v738
      %v742 = vrsqrt.pop %v668
      %v743 = vmul.f32 %v668, %v742
      %vm744 = vcmp.eq.f32.partialorder %v668, inf
      %v745 = vsel %vm744, %v668, %v743
      %vm746 = vcmp.eq.f32.partialorder %v668, 0.0
      %v747 = vand.u32 %v668, 2147483648
      %v748 = vsel %vm746, %v747, %v745
      %v749 = vrsqrt.pop %v669
      %v750 = vmul.f32 %v669, %v749
      %vm751 = vcmp.eq.f32.partialorder %v669, inf
      %v752 = vsel %vm751, %v669, %v750
      %vm753 = vcmp.eq.f32.partialorder %v669, 0.0
      %v754 = vand.u32 %v669, 2147483648
      %v755 = vsel %vm753, %v754, %v752
      %v756 = vrsqrt.pop %v670
      %v757 = vmul.f32 %v670, %v756
      %vm758 = vcmp.eq.f32.partialorder %v670, inf
      %v759 = vsel %vm758, %v670, %v757
      %vm760 = vcmp.eq.f32.partialorder %v670, 0.0
      %v761 = vand.u32 %v670, 2147483648
      %v762 = vsel %vm760, %v761, %v759
      %v763 = vrsqrt.pop %v671
      %v764 = vmul.f32 %v671, %v763
      %vm765 = vcmp.eq.f32.partialorder %v671, inf
      %v766 = vsel %vm765, %v671, %v764
      %vm767 = vcmp.eq.f32.partialorder %v671, 0.0
      %v768 = vand.u32 %v671, 2147483648
      %v769 = vsel %vm767, %v768, %v766
      %v770 = vrsqrt.pop %v672
      %v771 = vmul.f32 %v672, %v770
      %vm772 = vcmp.eq.f32.partialorder %v672, inf
      %v773 = vsel %vm772, %v672, %v771
      %vm774 = vcmp.eq.f32.partialorder %v672, 0.0
      %v775 = vand.u32 %v672, 2147483648
      %v776 = vsel %vm774, %v775, %v773
      %v777 = vrsqrt.pop %v673
      %v778 = vmul.f32 %v673, %v777
      %vm779 = vcmp.eq.f32.partialorder %v673, inf
      %v780 = vsel %vm779, %v673, %v778
      %vm781 = vcmp.eq.f32.partialorder %v673, 0.0
      %v782 = vand.u32 %v673, 2147483648
      %v783 = vsel %vm781, %v782, %v780
      %v784 = vrsqrt.pop %v674
      %v785 = vmul.f32 %v674, %v784
      %vm786 = vcmp.eq.f32.partialorder %v674, inf
      %v787 = vsel %vm786, %v674, %v785
      %vm788 = vcmp.eq.f32.partialorder %v674, 0.0
      %v789 = vand.u32 %v674, 2147483648
      %v790 = vsel %vm788, %v789, %v787
      %v791 = vrsqrt.pop %v675
      %v792 = vmul.f32 %v675, %v791
      %vm793 = vcmp.eq.f32.partialorder %v675, inf
      %v794 = vsel %vm793, %v675, %v792
      %vm795 = vcmp.eq.f32.partialorder %v675, 0.0
      %v796 = vand.u32 %v675, 2147483648
      %v797 = vsel %vm795, %v796, %v794
      %v798 = vrsqrt.pop %v676
      %v799 = vmul.f32 %v676, %v798
      %vm800 = vcmp.eq.f32.partialorder %v676, inf
      %v801 = vsel %vm800, %v676, %v799
      %vm802 = vcmp.eq.f32.partialorder %v676, 0.0
      %v803 = vand.u32 %v676, 2147483648
      %v804 = vsel %vm802, %v803, %v801
      %v805 = vrsqrt.pop %v677
      %v806 = vmul.f32 %v677, %v805
      %vm807 = vcmp.eq.f32.partialorder %v677, inf
      %v808 = vsel %vm807, %v677, %v806
      %vm809 = vcmp.eq.f32.partialorder %v677, 0.0
      %v810 = vand.u32 %v677, 2147483648
      %v811 = vsel %vm809, %v810, %v808
      %v812 = vrsqrt.pop %v678
      %v813 = vmul.f32 %v678, %v812
      %vm814 = vcmp.eq.f32.partialorder %v678, inf
      %v815 = vsel %vm814, %v678, %v813
      %vm816 = vcmp.eq.f32.partialorder %v678, 0.0
      %v817 = vand.u32 %v678, 2147483648
      %v818 = vsel %vm816, %v817, %v815
      %v819 = vrsqrt.pop %v679
      %v820 = vmul.f32 %v679, %v819
      %vm821 = vcmp.eq.f32.partialorder %v679, inf
      %v822 = vsel %vm821, %v679, %v820
      %vm823 = vcmp.eq.f32.partialorder %v679, 0.0
      %v824 = vand.u32 %v679, 2147483648
      %v825 = vsel %vm823, %v824, %v822
      %v826 = vrsqrt.pop %v680
      %v827 = vmul.f32 %v680, %v826
      %vm828 = vcmp.eq.f32.partialorder %v680, inf
      %v829 = vsel %vm828, %v680, %v827
      %vm830 = vcmp.eq.f32.partialorder %v680, 0.0
      %v831 = vand.u32 %v680, 2147483648
      %v832 = vsel %vm830, %v831, %v829
      %v833 = vrsqrt.pop %v681
      %v834 = vmul.f32 %v681, %v833
      %vm835 = vcmp.eq.f32.partialorder %v681, inf
      %v836 = vsel %vm835, %v681, %v834
      %vm837 = vcmp.eq.f32.partialorder %v681, 0.0
      %v838 = vand.u32 %v681, 2147483648
      %v839 = vsel %vm837, %v838, %v836
      %v840 = vrsqrt.pop %v682
      %v841 = vmul.f32 %v682, %v840
      %vm842 = vcmp.eq.f32.partialorder %v682, inf
      %v843 = vsel %vm842, %v682, %v841
      %vm844 = vcmp.eq.f32.partialorder %v682, 0.0
      %v845 = vand.u32 %v682, 2147483648
      %v846 = vsel %vm844, %v845, %v843
      %v847 = vrsqrt.pop %v683
      %v848 = vmul.f32 %v683, %v847
      %vm849 = vcmp.eq.f32.partialorder %v683, inf
      %v850 = vsel %vm849, %v683, %v848
      %vm851 = vcmp.eq.f32.partialorder %v683, 0.0
      %v852 = vand.u32 %v683, 2147483648
      %v853 = vsel %vm851, %v852, %v850
      %v854 = vrsqrt.pop %v684
      %v855 = vmul.f32 %v684, %v854
      %vm856 = vcmp.eq.f32.partialorder %v684, inf
      %v857 = vsel %vm856, %v684, %v855
      %vm858 = vcmp.eq.f32.partialorder %v684, 0.0
      %v859 = vand.u32 %v684, 2147483648
      %v860 = vsel %vm858, %v859, %v857
      %v861 = vrsqrt.pop %v685
      %v862 = vmul.f32 %v685, %v861
      %vm863 = vcmp.eq.f32.partialorder %v685, inf
      %v864 = vsel %vm863, %v685, %v862
      %vm865 = vcmp.eq.f32.partialorder %v685, 0.0
      %v866 = vand.u32 %v685, 2147483648
      %v867 = vsel %vm865, %v866, %v864
      %v868 = vrsqrt.pop %v686
      %v869 = vmul.f32 %v686, %v868
      %vm870 = vcmp.eq.f32.partialorder %v686, inf
      %v871 = vsel %vm870, %v686, %v869
      %vm872 = vcmp.eq.f32.partialorder %v686, 0.0
      %v873 = vand.u32 %v686, 2147483648
      %v874 = vsel %vm872, %v873, %v871
      %v875 = vrsqrt.pop %v687
      %v876 = vmul.f32 %v687, %v875
      %vm877 = vcmp.eq.f32.partialorder %v687, inf
      %v878 = vsel %vm877, %v687, %v876
      %vm879 = vcmp.eq.f32.partialorder %v687, 0.0
      %v880 = vand.u32 %v687, 2147483648
      %v881 = vsel %vm879, %v880, %v878
      %v882 = vrsqrt.pop %v688
      %v883 = vmul.f32 %v688, %v882
      %vm884 = vcmp.eq.f32.partialorder %v688, inf
      %v885 = vsel %vm884, %v688, %v883
      %vm886 = vcmp.eq.f32.partialorder %v688, 0.0
      %v887 = vand.u32 %v688, 2147483648
      %v888 = vsel %vm886, %v887, %v885
      %v889 = vrsqrt.pop %v689
      %v890 = vmul.f32 %v689, %v889
      %vm891 = vcmp.eq.f32.partialorder %v689, inf
      %v892 = vsel %vm891, %v689, %v890
      %vm893 = vcmp.eq.f32.partialorder %v689, 0.0
      %v894 = vand.u32 %v689, 2147483648
      %v895 = vsel %vm893, %v894, %v892
      %v896 = vrsqrt.pop %v690
      %v897 = vmul.f32 %v690, %v896
      %vm898 = vcmp.eq.f32.partialorder %v690, inf
      %v899 = vsel %vm898, %v690, %v897
      %vm900 = vcmp.eq.f32.partialorder %v690, 0.0
      %v901 = vand.u32 %v690, 2147483648
      %v902 = vsel %vm900, %v901, %v899
      %v903 = vrsqrt.pop %v691
      %v904 = vmul.f32 %v691, %v903
      %vm905 = vcmp.eq.f32.partialorder %v691, inf
      %v906 = vsel %vm905, %v691, %v904
      %vm907 = vcmp.eq.f32.partialorder %v691, 0.0
      %v908 = vand.u32 %v691, 2147483648
      %v909 = vsel %vm907, %v908, %v906
      %v910 = vrsqrt.pop %v692
      %v911 = vmul.f32 %v692, %v910
      %vm912 = vcmp.eq.f32.partialorder %v692, inf
      %v913 = vsel %vm912, %v692, %v911
      %vm914 = vcmp.eq.f32.partialorder %v692, 0.0
      %v915 = vand.u32 %v692, 2147483648
      %v916 = vsel %vm914, %v915, %v913
      %v917 = vrcp.pop %v699
      %v918 = vmul.f32 %v469, %v917
      %v919 = vrcp.pop %v706
      %v920 = vmul.f32 %v470, %v919
      %v921 = vrcp.pop %v713
      %v922 = vmul.f32 %v471, %v921
      %v923 = vrcp.pop %v720
      %v924 = vmul.f32 %v472, %v923
      %v925 = vrcp.pop %v727
      %v926 = vmul.f32 %v473, %v925
      %v927 = vrcp.pop %v734
      %v928 = vmul.f32 %v474, %v927
      %v929 = vrcp.pop %v741
      %v930 = vmul.f32 %v475, %v929
      %v931 = vrcp.pop %v748
      %v932 = vmul.f32 %v476, %v931
      %v933 = vrcp.pop %v755
      %v934 = vmul.f32 %v477, %v933
      %v935 = vrcp.pop %v762
      %v936 = vmul.f32 %v478, %v935
      %v937 = vrcp.pop %v769
      %v938 = vmul.f32 %v479, %v937
      %v939 = vrcp.pop %v776
      %v940 = vmul.f32 %v480, %v939
      %v941 = vrcp.pop %v783
      %v942 = vmul.f32 %v481, %v941
      %v943 = vrcp.pop %v790
      %v944 = vmul.f32 %v482, %v943
      %v945 = vrcp.pop %v797
      %v946 = vmul.f32 %v483, %v945
      %v947 = vrcp.pop %v804
      %v948 = vmul.f32 %v484, %v947
      %v949 = vrcp.pop %v811
      %v950 = vmul.f32 %v485, %v949
      %v951 = vrcp.pop %v818
      %v952 = vmul.f32 %v486, %v951
      %v953 = vrcp.pop %v825
      %v954 = vmul.f32 %v487, %v953
      %v955 = vrcp.pop %v832
      %v956 = vmul.f32 %v488, %v955
      %v957 = vrcp.pop %v839
      %v958 = vmul.f32 %v489, %v957
      %v959 = vrcp.pop %v846
      %v960 = vmul.f32 %v490, %v959
      %v961 = vrcp.pop %v853
      %v962 = vmul.f32 %v491, %v961
      %v963 = vrcp.pop %v860
      %v964 = vmul.f32 %v492, %v963
      %v965 = vrcp.pop %v867
      %v966 = vmul.f32 %v493, %v965
      %v967 = vrcp.pop %v874
      %v968 = vmul.f32 %v494, %v967
      %v969 = vrcp.pop %v881
      %v970 = vmul.f32 %v495, %v969
      %v971 = vrcp.pop %v888
      %v972 = vmul.f32 %v496, %v971
      %v973 = vrcp.pop %v895
      %v974 = vmul.f32 %v497, %v973
      %v975 = vrcp.pop %v902
      %v976 = vmul.f32 %v498, %v975
      %v977 = vrcp.pop %v909
      %v978 = vmul.f32 %v499, %v977
      %v979 = vrcp.pop %v916
      %v980 = vmul.f32 %v500, %v979
      %v981 = vld [vmem:[%s1] sm:$0x1]
      %v983 = vlaneseq
      %v984 = vshrl.u32 %v983, 7
      %v985 = vsub.s32 0, %v984
      %v986 = vrot.slane %v981, %v985
      %v988 = vmul.f32 %v918, %v986
      %v989 = vmul.f32 %v920, %v986
      %v990 = vmul.f32 %v922, %v986
      %v991 = vmul.f32 %v924, %v986
      %v992 = vmul.f32 %v926, %v986
      %v993 = vmul.f32 %v928, %v986
      %v994 = vmul.f32 %v930, %v986
      %v995 = vmul.f32 %v932, %v986
      %v996 = vmul.f32 %v934, %v986
      %v997 = vmul.f32 %v936, %v986
      %v998 = vmul.f32 %v938, %v986
      %v999 = vmul.f32 %v940, %v986
      %v1000 = vmul.f32 %v942, %v986
      %v1001 = vmul.f32 %v944, %v986
      %v1002 = vmul.f32 %v946, %v986
      %v1003 = vmul.f32 %v948, %v986
      %v1004 = vmul.f32 %v950, %v986
      %v1005 = vmul.f32 %v952, %v986
      %v1006 = vmul.f32 %v954, %v986
      %v1007 = vmul.f32 %v956, %v986
      %v1008 = vmul.f32 %v958, %v986
      %v1009 = vmul.f32 %v960, %v986
      %v1010 = vmul.f32 %v962, %v986
      %v1011 = vmul.f32 %v964, %v986
      %v1012 = vmul.f32 %v966, %v986
      %v1013 = vmul.f32 %v968, %v986
      %v1014 = vmul.f32 %v970, %v986
      %v1015 = vmul.f32 %v972, %v986
      %v1016 = vmul.f32 %v974, %v986
      %v1017 = vmul.f32 %v976, %v986
      %v1018 = vmul.f32 %v978, %v986
      %v1019 = vmul.f32 %v980, %v986
      %v1020 = vld [vmem:[%s2] sm:$0x1]
      %v1022 = vlaneseq
      %v1023 = vshrl.u32 %v1022, 7
      %v1024 = vsub.s32 0, %v1023
      %v1025 = vrot.slane %v1020, %v1024
      %v1027 = vadd.f32 %v988, %v1025
      %v1028 = vadd.f32 %v989, %v1025
      %v1029 = vadd.f32 %v990, %v1025
      %v1030 = vadd.f32 %v991, %v1025
      %v1031 = vadd.f32 %v992, %v1025
      %v1032 = vadd.f32 %v993, %v1025
      %v1033 = vadd.f32 %v994, %v1025
      %v1034 = vadd.f32 %v995, %v1025
      %v1035 = vadd.f32 %v996, %v1025
      %v1036 = vadd.f32 %v997, %v1025
      %v1037 = vadd.f32 %v998, %v1025
      %v1038 = vadd.f32 %v999, %v1025
      %v1039 = vadd.f32 %v1000, %v1025
      %v1040 = vadd.f32 %v1001, %v1025
      %v1041 = vadd.f32 %v1002, %v1025
      %v1042 = vadd.f32 %v1003, %v1025
      %v1043 = vadd.f32 %v1004, %v1025
      %v1044 = vadd.f32 %v1005, %v1025
      %v1045 = vadd.f32 %v1006, %v1025
      %v1046 = vadd.f32 %v1007, %v1025
      %v1047 = vadd.f32 %v1008, %v1025
      %v1048 = vadd.f32 %v1009, %v1025
      %v1049 = vadd.f32 %v1010, %v1025
      %v1050 = vadd.f32 %v1011, %v1025
      %v1051 = vadd.f32 %v1012, %v1025
      %v1052 = vadd.f32 %v1013, %v1025
      %v1053 = vadd.f32 %v1014, %v1025
      %v1054 = vadd.f32 %v1015, %v1025
      %v1055 = vadd.f32 %v1016, %v1025
      %v1056 = vadd.f32 %v1017, %v1025
      %v1057 = vadd.f32 %v1018, %v1025
      %v1058 = vadd.f32 %v1019, %v1025
      %v1059 = vpack.c.bf16 %v1028, %v1027
      %v1060 = vpack.c.bf16 %v1030, %v1029
      %v1061 = vpack.c.bf16 %v1032, %v1031
      %v1062 = vpack.c.bf16 %v1034, %v1033
      %v1063 = vpack.c.bf16 %v1036, %v1035
      %v1064 = vpack.c.bf16 %v1038, %v1037
      %v1065 = vpack.c.bf16 %v1040, %v1039
      %v1066 = vpack.c.bf16 %v1042, %v1041
      %v1067 = vpack.c.bf16 %v1044, %v1043
      %v1068 = vpack.c.bf16 %v1046, %v1045
      %v1069 = vpack.c.bf16 %v1048, %v1047
      %v1070 = vpack.c.bf16 %v1050, %v1049
      %v1071 = vpack.c.bf16 %v1052, %v1051
      %v1072 = vpack.c.bf16 %v1054, %v1053
      %v1073 = vpack.c.bf16 %v1056, %v1055
      %v1074 = vpack.c.bf16 %v1058, %v1057
      %v1075 = vld [vmem:[%s3] sm:$0xf]
      %v1076 = vld [vmem:[%s3 + $0x4] sm:$0xf]
      %v1079 = vunpack.c.l.b16 %v1075
      %v1080 = vunpack.c.l.b16 %v1076
      %v1081 = vpack.c.b16 %v1080, %v1079
      %v1084 = vsel %vm339, %v1059, 0
      %v1087 = vsel %vm339, %v1060, 0
      %v1090 = vsel %vm339, %v1061, 0
      %v1093 = vsel %vm339, %v1062, 0
      %v1096 = vsel %vm339, %v1063, 0
      %v1099 = vsel %vm339, %v1064, 0
      %v1102 = vsel %vm339, %v1065, 0
      %v1105 = vsel %vm339, %v1066, 0
      %v1108 = vsel %vm339, %v1067, 0
      %v1111 = vsel %vm339, %v1068, 0
      %v1114 = vsel %vm339, %v1069, 0
      %v1117 = vsel %vm339, %v1070, 0
      %v1120 = vsel %vm339, %v1071, 0
      %v1123 = vsel %vm339, %v1072, 0
      %v1126 = vsel %vm339, %v1073, 0
      %v1129 = vsel %vm339, %v1074, 0
      %1131 = vmatprep.subr.bf16.mxu0 0
      %1132 = vmatpush1.bf16.msra.mxu0 %v1081
      %1133 = vmatprep.subr.bf16.mxu0 0
      %1134 = vmatpush1.bf16.msra.mxu0 0
      %1135 = vmatprep.subr.bf16.mxu0 0
      %1136 = vmatpush1.bf16.msra.mxu0 0
      %1137 = vmatprep.subr.bf16.mxu0 0
      %1138 = vmatpush1.bf16.msra.mxu0 0
      %1139 = vmatprep.subr.bf16.mxu0 0
      %1140 = vmatpush1.bf16.msra.mxu0 0
      %1141 = vmatprep.subr.bf16.mxu0 0
      %1142 = vmatpush1.bf16.msra.mxu0 0
      %1143 = vmatprep.subr.bf16.mxu0 0
      %1144 = vmatpush1.bf16.msra.mxu0 0
      %1145 = vmatprep.subr.bf16.mxu0 0
      %1146 = vmatpush1.bf16.msra.mxu0 0
      %1147 = vmatprep.subr.bf16.mxu0 0
      %1148 = vmatpush1.bf16.msra.mxu0 0
      %1149 = vmatprep.subr.bf16.mxu0 0
      %1150 = vmatpush1.bf16.msra.mxu0 0
      %1151 = vmatprep.subr.bf16.mxu0 0
      %1152 = vmatpush1.bf16.msra.mxu0 0
      %1153 = vmatprep.subr.bf16.mxu0 0
      %1154 = vmatpush1.bf16.msra.mxu0 0
      %1155 = vmatprep.subr.bf16.mxu0 0
      %1156 = vmatpush1.bf16.msra.mxu0 0
      %1157 = vmatprep.subr.bf16.mxu0 0
      %1158 = vmatpush1.bf16.msra.mxu0 0
      %1159 = vmatprep.subr.bf16.mxu0 0
      %1160 = vmatpush1.bf16.msra.mxu0 0
      %1161 = vmatprep.subr.bf16.mxu0 0
      %1162 = vmatpush1.bf16.msra.mxu0 0
      %1163 = vmatprep.mubr.bf16.mxu0 0
      %1164 = vmatmul.mubr.bf16.gmra.mrb[0].mxu0 %v1084
      %v1165 = vpop.f32.mrb[0].mxu0
      %v1166 = vadd.f32 0.0, %v1165
      %v1167 = vpop.f32.mrb[0].mxu0
      %v1168 = vpop.f32.mrb[0].mxu0
      %v1169 = vadd.f32 0.0, %v1168
      %v1170 = vpop.f32.mrb[0].mxu0
      %1171 = vmatprep.mubr.bf16.mxu0 0
      %1172 = vmatmul.mubr.bf16.gmra.mrb[0].mxu0 %v1087
      %v1173 = vpop.f32.mrb[0].mxu0
      %v1174 = vadd.f32 0.0, %v1173
      %v1175 = vpop.f32.mrb[0].mxu0
      %v1176 = vpop.f32.mrb[0].mxu0
      %v1177 = vadd.f32 0.0, %v1176
      %v1178 = vpop.f32.mrb[0].mxu0
      %1179 = vmatprep.mubr.bf16.mxu0 0
      %1180 = vmatmul.mubr.bf16.gmra.mrb[0].mxu0 %v1090
      %v1181 = vpop.f32.mrb[0].mxu0
      %v1182 = vadd.f32 0.0, %v1181
      %v1183 = vpop.f32.mrb[0].mxu0
      %v1184 = vpop.f32.mrb[0].mxu0
      %v1185 = vadd.f32 0.0, %v1184
      %v1186 = vpop.f32.mrb[0].mxu0
      %1187 = vmatprep.mubr.bf16.mxu0 0
      %1188 = vmatmul.mubr.bf16.gmra.mrb[0].mxu0 %v1093
      %v1189 = vpop.f32.mrb[0].mxu0
      %v1190 = vadd.f32 0.0, %v1189
      %v1191 = vpop.f32.mrb[0].mxu0
      %v1192 = vpop.f32.mrb[0].mxu0
      %v1193 = vadd.f32 0.0, %v1192
      %v1194 = vpop.f32.mrb[0].mxu0
      %1195 = vmatprep.mubr.bf16.mxu0 0
      %1196 = vmatmul.mubr.bf16.gmra.mrb[0].mxu0 %v1096
      %v1197 = vpop.f32.mrb[0].mxu0
      %v1198 = vadd.f32 0.0, %v1197
      %v1199 = vpop.f32.mrb[0].mxu0
      %v1200 = vpop.f32.mrb[0].mxu0
      %v1201 = vadd.f32 0.0, %v1200
      %v1202 = vpop.f32.mrb[0].mxu0
      %1203 = vmatprep.mubr.bf16.mxu0 0
      %1204 = vmatmul.mubr.bf16.gmra.mrb[0].mxu0 %v1099
      %v1205 = vpop.f32.mrb[0].mxu0
      %v1206 = vadd.f32 0.0, %v1205
      %v1207 = vpop.f32.mrb[0].mxu0
      %v1208 = vpop.f32.mrb[0].mxu0
      %v1209 = vadd.f32 0.0, %v1208
      %v1210 = vpop.f32.mrb[0].mxu0
      %1211 = vmatprep.mubr.bf16.mxu0 0
      %1212 = vmatmul.mubr.bf16.gmra.mrb[0].mxu0 %v1102
      %v1213 = vpop.f32.mrb[0].mxu0
      %v1214 = vadd.f32 0.0, %v1213
      %v1215 = vpop.f32.mrb[0].mxu0
      %v1216 = vpop.f32.mrb[0].mxu0
      %v1217 = vadd.f32 0.0, %v1216
      %v1218 = vpop.f32.mrb[0].mxu0
      %1219 = vmatprep.mubr.bf16.mxu0 0
      %1220 = vmatmul.mubr.bf16.gmra.mrb[0].mxu0 %v1105
      %v1221 = vpop.f32.mrb[0].mxu0
      %v1222 = vadd.f32 0.0, %v1221
      %v1223 = vpop.f32.mrb[0].mxu0
      %v1224 = vpop.f32.mrb[0].mxu0
      %v1225 = vadd.f32 0.0, %v1224
      %v1226 = vpop.f32.mrb[0].mxu0
      %1227 = vmatprep.mubr.bf16.mxu0 0
      %1228 = vmatmul.mubr.bf16.gmra.mrb[0].mxu0 %v1108
      %v1229 = vpop.f32.mrb[0].mxu0
      %v1230 = vadd.f32 0.0, %v1229
      %v1231 = vpop.f32.mrb[0].mxu0
      %v1232 = vpop.f32.mrb[0].mxu0
      %v1233 = vadd.f32 0.0, %v1232
      %v1234 = vpop.f32.mrb[0].mxu0
      %1235 = vmatprep.mubr.bf16.mxu0 0
      %1236 = vmatmul.mubr.bf16.gmra.mrb[0].mxu0 %v1111
      %v1237 = vpop.f32.mrb[0].mxu0
      %v1238 = vadd.f32 0.0, %v1237
      %v1239 = vpop.f32.mrb[0].mxu0
      %v1240 = vpop.f32.mrb[0].mxu0
      %v1241 = vadd.f32 0.0, %v1240
      %v1242 = vpop.f32.mrb[0].mxu0
      %1243 = vmatprep.mubr.bf16.mxu0 0
      %1244 = vmatmul.mubr.bf16.gmra.mrb[0].mxu0 %v1114
      %v1245 = vpop.f32.mrb[0].mxu0
      %v1246 = vadd.f32 0.0, %v1245
      %v1247 = vpop.f32.mrb[0].mxu0
      %v1248 = vpop.f32.mrb[0].mxu0
      %v1249 = vadd.f32 0.0, %v1248
      %v1250 = vpop.f32.mrb[0].mxu0
      %1251 = vmatprep.mubr.bf16.mxu0 0
      %1252 = vmatmul.mubr.bf16.gmra.mrb[0].mxu0 %v1117
      %v1253 = vpop.f32.mrb[0].mxu0
      %v1254 = vadd.f32 0.0, %v1253
      %v1255 = vpop.f32.mrb[0].mxu0
      %v1256 = vpop.f32.mrb[0].mxu0
      %v1257 = vadd.f32 0.0, %v1256
      %v1258 = vpop.f32.mrb[0].mxu0
      %1259 = vmatprep.mubr.bf16.mxu0 0
      %1260 = vmatmul.mubr.bf16.gmra.mrb[0].mxu0 %v1120
      %v1261 = vpop.f32.mrb[0].mxu0
      %v1262 = vadd.f32 0.0, %v1261
      %v1263 = vpop.f32.mrb[0].mxu0
      %v1264 = vpop.f32.mrb[0].mxu0
      %v1265 = vadd.f32 0.0, %v1264
      %v1266 = vpop.f32.mrb[0].mxu0
      %1267 = vmatprep.mubr.bf16.mxu0 0
      %1268 = vmatmul.mubr.bf16.gmra.mrb[0].mxu0 %v1123
      %v1269 = vpop.f32.mrb[0].mxu0
      %v1270 = vadd.f32 0.0, %v1269
      %v1271 = vpop.f32.mrb[0].mxu0
      %v1272 = vpop.f32.mrb[0].mxu0
      %v1273 = vadd.f32 0.0, %v1272
      %v1274 = vpop.f32.mrb[0].mxu0
      %1275 = vmatprep.mubr.bf16.mxu0 0
      %1276 = vmatmul.mubr.bf16.gmra.mrb[0].mxu0 %v1126
      %v1277 = vpop.f32.mrb[0].mxu0
      %v1278 = vadd.f32 0.0, %v1277
      %v1279 = vpop.f32.mrb[0].mxu0
      %v1280 = vpop.f32.mrb[0].mxu0
      %v1281 = vadd.f32 0.0, %v1280
      %v1282 = vpop.f32.mrb[0].mxu0
      %1283 = vmatprep.mubr.bf16.mxu0 0
      %1284 = vmatmul.mubr.bf16.gmra.mrb[0].mxu0 %v1129
      %v1285 = vpop.f32.mrb[0].mxu0
      %v1286 = vadd.f32 0.0, %v1285
      %v1287 = vpop.f32.mrb[0].mxu0
      %v1288 = vpop.f32.mrb[0].mxu0
      %v1289 = vadd.f32 0.0, %v1288
      %v1290 = vpop.f32.mrb[0].mxu0
      %1291 = vdwg.mxu0
      %v1292 = vld [vmem:[%s4] sm:$0xf]
      %v1293 = vld [vmem:[%s4 + $0x4] sm:$0xf]
      %v1296 = vunpack.c.l.b16 %v1292
      %v1297 = vunpack.c.l.b16 %v1293
      %v1298 = vpack.c.b16 %v1297, %v1296
      %1300 = vmatprep.subr.bf16.mxu0 0
      %1301 = vmatpush1.bf16.msra.mxu0 %v1298
      %1302 = vmatprep.subr.bf16.mxu0 0
      %1303 = vmatpush1.bf16.msra.mxu0 0
      %1304 = vmatprep.subr.bf16.mxu0 0
      %1305 = vmatpush1.bf16.msra.mxu0 0
      %1306 = vmatprep.subr.bf16.mxu0 0
      %1307 = vmatpush1.bf16.msra.mxu0 0
      %1308 = vmatprep.subr.bf16.mxu0 0
      %1309 = vmatpush1.bf16.msra.mxu0 0
      %1310 = vmatprep.subr.bf16.mxu0 0
      %1311 = vmatpush1.bf16.msra.mxu0 0
      %1312 = vmatprep.subr.bf16.mxu0 0
      %1313 = vmatpush1.bf16.msra.mxu0 0
      %1314 = vmatprep.subr.bf16.mxu0 0
      %1315 = vmatpush1.bf16.msra.mxu0 0
      %1316 = vmatprep.subr.bf16.mxu0 0
      %1317 = vmatpush1.bf16.msra.mxu0 0
      %1318 = vmatprep.subr.bf16.mxu0 0
      %1319 = vmatpush1.bf16.msra.mxu0 0
      %1320 = vmatprep.subr.bf16.mxu0 0
      %1321 = vmatpush1.bf16.msra.mxu0 0
      %1322 = vmatprep.subr.bf16.mxu0 0
      %1323 = vmatpush1.bf16.msra.mxu0 0
      %1324 = vmatprep.subr.bf16.mxu0 0
      %1325 = vmatpush1.bf16.msra.mxu0 0
      %1326 = vmatprep.subr.bf16.mxu0 0
      %1327 = vmatpush1.bf16.msra.mxu0 0
      %1328 = vmatprep.subr.bf16.mxu0 0
      %1329 = vmatpush1.bf16.msra.mxu0 0
      %1330 = vmatprep.subr.bf16.mxu0 0
      %1331 = vmatpush1.bf16.msra.mxu0 0
      %1332 = vmatprep.mubr.bf16.mxu0 0
      %1333 = vmatmul.mubr.bf16.gmra.mrb[0].mxu0 %v1084
      %v1334 = vpop.f32.mrb[0].mxu0
      %v1335 = vadd.f32 0.0, %v1334
      %v1336 = vpop.f32.mrb[0].mxu0
      %v1337 = vpop.f32.mrb[0].mxu0
      %v1338 = vadd.f32 0.0, %v1337
      %v1339 = vpop.f32.mrb[0].mxu0
      %1340 = vmatprep.mubr.bf16.mxu0 0
      %1341 = vmatmul.mubr.bf16.gmra.mrb[0].mxu0 %v1087
      %v1342 = vpop.f32.mrb[0].mxu0
      %v1343 = vadd.f32 0.0, %v1342
      %v1344 = vpop.f32.mrb[0].mxu0
      %v1345 = vpop.f32.mrb[0].mxu0
      %v1346 = vadd.f32 0.0, %v1345
      %v1347 = vpop.f32.mrb[0].mxu0
      %1348 = vmatprep.mubr.bf16.mxu0 0
      %1349 = vmatmul.mubr.bf16.gmra.mrb[0].mxu0 %v1090
      %v1350 = vpop.f32.mrb[0].mxu0
      %v1351 = vadd.f32 0.0, %v1350
      %v1352 = vpop.f32.mrb[0].mxu0
      %v1353 = vpop.f32.mrb[0].mxu0
      %v1354 = vadd.f32 0.0, %v1353
      %v1355 = vpop.f32.mrb[0].mxu0
      %1356 = vmatprep.mubr.bf16.mxu0 0
      %1357 = vmatmul.mubr.bf16.gmra.mrb[0].mxu0 %v1093
      %v1358 = vpop.f32.mrb[0].mxu0
      %v1359 = vadd.f32 0.0, %v1358
      %v1360 = vpop.f32.mrb[0].mxu0
      %v1361 = vpop.f32.mrb[0].mxu0
      %v1362 = vadd.f32 0.0, %v1361
      %v1363 = vpop.f32.mrb[0].mxu0
      %1364 = vmatprep.mubr.bf16.mxu0 0
      %1365 = vmatmul.mubr.bf16.gmra.mrb[0].mxu0 %v1096
      %v1366 = vpop.f32.mrb[0].mxu0
      %v1367 = vadd.f32 0.0, %v1366
      %v1368 = vpop.f32.mrb[0].mxu0
      %v1369 = vpop.f32.mrb[0].mxu0
      %v1370 = vadd.f32 0.0, %v1369
      %v1371 = vpop.f32.mrb[0].mxu0
      %1372 = vmatprep.mubr.bf16.mxu0 0
      %1373 = vmatmul.mubr.bf16.gmra.mrb[0].mxu0 %v1099
      %v1374 = vpop.f32.mrb[0].mxu0
      %v1375 = vadd.f32 0.0, %v1374
      %v1376 = vpop.f32.mrb[0].mxu0
      %v1377 = vpop.f32.mrb[0].mxu0
      %v1378 = vadd.f32 0.0, %v1377
      %v1379 = vpop.f32.mrb[0].mxu0
      %1380 = vmatprep.mubr.bf16.mxu0 0
      %1381 = vmatmul.mubr.bf16.gmra.mrb[0].mxu0 %v1102
      %v1382 = vpop.f32.mrb[0].mxu0
      %v1383 = vadd.f32 0.0, %v1382
      %v1384 = vpop.f32.mrb[0].mxu0
      %v1385 = vpop.f32.mrb[0].mxu0
      %v1386 = vadd.f32 0.0, %v1385
      %v1387 = vpop.f32.mrb[0].mxu0
      %1388 = vmatprep.mubr.bf16.mxu0 0
      %1389 = vmatmul.mubr.bf16.gmra.mrb[0].mxu0 %v1105
      %v1390 = vpop.f32.mrb[0].mxu0
      %v1391 = vadd.f32 0.0, %v1390
      %v1392 = vpop.f32.mrb[0].mxu0
      %v1393 = vpop.f32.mrb[0].mxu0
      %v1394 = vadd.f32 0.0, %v1393
      %v1395 = vpop.f32.mrb[0].mxu0
      %1396 = vmatprep.mubr.bf16.mxu0 0
      %1397 = vmatmul.mubr.bf16.gmra.mrb[0].mxu0 %v1108
      %v1398 = vpop.f32.mrb[0].mxu0
      %v1399 = vadd.f32 0.0, %v1398
      %v1400 = vpop.f32.mrb[0].mxu0
      %v1401 = vpop.f32.mrb[0].mxu0
      %v1402 = vadd.f32 0.0, %v1401
      %v1403 = vpop.f32.mrb[0].mxu0
      %1404 = vmatprep.mubr.bf16.mxu0 0
      %1405 = vmatmul.mubr.bf16.gmra.mrb[0].mxu0 %v1111
      %v1406 = vpop.f32.mrb[0].mxu0
      %v1407 = vadd.f32 0.0, %v1406
      %v1408 = vpop.f32.mrb[0].mxu0
      %v1409 = vpop.f32.mrb[0].mxu0
      %v1410 = vadd.f32 0.0, %v1409
      %v1411 = vpop.f32.mrb[0].mxu0
      %1412 = vmatprep.mubr.bf16.mxu0 0
      %1413 = vmatmul.mubr.bf16.gmra.mrb[0].mxu0 %v1114
      %v1414 = vpop.f32.mrb[0].mxu0
      %v1415 = vadd.f32 0.0, %v1414
      %v1416 = vpop.f32.mrb[0].mxu0
      %v1417 = vpop.f32.mrb[0].mxu0
      %v1418 = vadd.f32 0.0, %v1417
      %v1419 = vpop.f32.mrb[0].mxu0
      %1420 = vmatprep.mubr.bf16.mxu0 0
      %1421 = vmatmul.mubr.bf16.gmra.mrb[0].mxu0 %v1117
      %v1422 = vpop.f32.mrb[0].mxu0
      %v1423 = vadd.f32 0.0, %v1422
      %v1424 = vpop.f32.mrb[0].mxu0
      %v1425 = vpop.f32.mrb[0].mxu0
      %v1426 = vadd.f32 0.0, %v1425
      %v1427 = vpop.f32.mrb[0].mxu0
      %1428 = vmatprep.mubr.bf16.mxu0 0
      %1429 = vmatmul.mubr.bf16.gmra.mrb[0].mxu0 %v1120
      %v1430 = vpop.f32.mrb[0].mxu0
      %v1431 = vadd.f32 0.0, %v1430
      %v1432 = vpop.f32.mrb[0].mxu0
      %v1433 = vpop.f32.mrb[0].mxu0
      %v1434 = vadd.f32 0.0, %v1433
      %v1435 = vpop.f32.mrb[0].mxu0
      %1436 = vmatprep.mubr.bf16.mxu0 0
      %1437 = vmatmul.mubr.bf16.gmra.mrb[0].mxu0 %v1123
      %v1438 = vpop.f32.mrb[0].mxu0
      %v1439 = vadd.f32 0.0, %v1438
      %v1440 = vpop.f32.mrb[0].mxu0
      %v1441 = vpop.f32.mrb[0].mxu0
      %v1442 = vadd.f32 0.0, %v1441
      %v1443 = vpop.f32.mrb[0].mxu0
      %1444 = vmatprep.mubr.bf16.mxu0 0
      %1445 = vmatmul.mubr.bf16.gmra.mrb[0].mxu0 %v1126
      %v1446 = vpop.f32.mrb[0].mxu0
      %v1447 = vadd.f32 0.0, %v1446
      %v1448 = vpop.f32.mrb[0].mxu0
      %v1449 = vpop.f32.mrb[0].mxu0
      %v1450 = vadd.f32 0.0, %v1449
      %v1451 = vpop.f32.mrb[0].mxu0
      %1452 = vmatprep.mubr.bf16.mxu0 0
      %1453 = vmatmul.mubr.bf16.gmra.mrb[0].mxu0 %v1129
      %v1454 = vpop.f32.mrb[0].mxu0
      %v1455 = vadd.f32 0.0, %v1454
      %v1456 = vpop.f32.mrb[0].mxu0
      %v1457 = vpop.f32.mrb[0].mxu0
      %v1458 = vadd.f32 0.0, %v1457
      %v1459 = vpop.f32.mrb[0].mxu0
      %1460 = vdwg.mxu0
      %vm1461 = vcmask 343040
      %1462 = vst.msk [vmem:[#allocation2] sm:$0xff] %vm1461, 0.0
      %1463 = vst.msk [vmem:[#allocation2 + $0x8] sm:$0xff] %vm1461, 0.0
      %vm1464 = vcmask 336896
      %1465 = vst.msk [vmem:[#allocation2 + $0x10] sm:$0x3] %vm1464, 0.0
      %1466 = vst.msk [vmem:[#allocation2 + $0x18] sm:$0xff] %vm1461, 0.0
      %1467 = vst.msk [vmem:[#allocation2 + $0x20] sm:$0xff] %vm1461, 0.0
      %1468 = vst.msk [vmem:[#allocation2 + $0x28] sm:$0x3] %vm1464, 0.0
      %1469 = vst.msk [vmem:[#allocation2 + $0x30] sm:$0xff] %vm1461, 0.0
      %1470 = vst.msk [vmem:[#allocation2 + $0x38] sm:$0xff] %vm1461, 0.0
      %1471 = vst.msk [vmem:[#allocation2 + $0x40] sm:$0x3] %vm1464, 0.0
      %1472 = vst.msk [vmem:[#allocation2 + $0x48] sm:$0xff] %vm1461, 0.0
      %1473 = vst.msk [vmem:[#allocation2 + $0x50] sm:$0xff] %vm1461, 0.0
      %1474 = vst.msk [vmem:[#allocation2 + $0x58] sm:$0x3] %vm1464, 0.0
      %1475 = vst.msk [vmem:[#allocation2 + $0x60] sm:$0xff] %vm1461, 0.0
      %1476 = vst.msk [vmem:[#allocation2 + $0x68] sm:$0xff] %vm1461, 0.0
      %1477 = vst.msk [vmem:[#allocation2 + $0x70] sm:$0x3] %vm1464, 0.0
      %1478 = vst.msk [vmem:[#allocation2 + $0x78] sm:$0xff] %vm1461, 0.0
      %1479 = vst.msk [vmem:[#allocation2 + $0x80] sm:$0xff] %vm1461, 0.0
      %1480 = vst.msk [vmem:[#allocation2 + $0x88] sm:$0x3] %vm1464, 0.0
      %1481 = vst.msk [vmem:[#allocation2 + $0x90] sm:$0xff] %vm1461, 0.0
      %1482 = vst.msk [vmem:[#allocation2 + $0x98] sm:$0xff] %vm1461, 0.0
      %1483 = vst.msk [vmem:[#allocation2 + $0xa0] sm:$0x3] %vm1464, 0.0
      %1484 = vst.msk [vmem:[#allocation2 + $0xa8] sm:$0xff] %vm1461, 0.0
      %1485 = vst.msk [vmem:[#allocation2 + $0xb0] sm:$0xff] %vm1461, 0.0
      %1486 = vst.msk [vmem:[#allocation2 + $0xb8] sm:$0x3] %vm1464, 0.0
      %1487 = vst.msk [vmem:[#allocation2 + $0xc0] sm:$0xff] %vm1461, 0.0
      %1488 = vst.msk [vmem:[#allocation2 + $0xc8] sm:$0xff] %vm1461, 0.0
      %1489 = vst.msk [vmem:[#allocation2 + $0xd0] sm:$0x3] %vm1464, 0.0
      %1490 = vst.msk [vmem:[#allocation2 + $0xd8] sm:$0xff] %vm1461, 0.0
      %1491 = vst.msk [vmem:[#allocation2 + $0xe0] sm:$0xff] %vm1461, 0.0
      %1492 = vst.msk [vmem:[#allocation2 + $0xe8] sm:$0x3] %vm1464, 0.0
      %1493 = vst.msk [vmem:[#allocation2 + $0xf0] sm:$0xff] %vm1461, 0.0
      %1494 = vst.msk [vmem:[#allocation2 + $0xf8] sm:$0xff] %vm1461, 0.0
      %1495 = vst.msk [vmem:[#allocation2 + $0x100] sm:$0x3] %vm1464, 0.0
      %1496 = vst.msk [vmem:[#allocation2 + $0x108] sm:$0xff] %vm1461, 0.0
      %1497 = vst.msk [vmem:[#allocation2 + $0x110] sm:$0xff] %vm1461, 0.0
      %1498 = vst.msk [vmem:[#allocation2 + $0x118] sm:$0x3] %vm1464, 0.0
      %1499 = vst.msk [vmem:[#allocation2 + $0x120] sm:$0xff] %vm1461, 0.0
      %1500 = vst.msk [vmem:[#allocation2 + $0x128] sm:$0xff] %vm1461, 0.0
      %1501 = vst.msk [vmem:[#allocation2 + $0x130] sm:$0x3] %vm1464, 0.0
      %1502 = vst.msk [vmem:[#allocation2 + $0x138] sm:$0xff] %vm1461, 0.0
      %1503 = vst.msk [vmem:[#allocation2 + $0x140] sm:$0xff] %vm1461, 0.0
      %1504 = vst.msk [vmem:[#allocation2 + $0x148] sm:$0x3] %vm1464, 0.0
      %1505 = vst.msk [vmem:[#allocation2 + $0x150] sm:$0xff] %vm1461, 0.0
      %1506 = vst.msk [vmem:[#allocation2 + $0x158] sm:$0xff] %vm1461, 0.0
      %1507 = vst.msk [vmem:[#allocation2 + $0x160] sm:$0x3] %vm1464, 0.0
      %1508 = vst.msk [vmem:[#allocation2 + $0x168] sm:$0xff] %vm1461, 0.0
      %1509 = vst.msk [vmem:[#allocation2 + $0x170] sm:$0xff] %vm1461, 0.0
      %1510 = vst.msk [vmem:[#allocation2 + $0x178] sm:$0x3] %vm1464, 0.0
      %1511 = vst.msk [vmem:[#allocation2 + $0x180] sm:$0xff] %vm1461, 0.0
      %1512 = vst.msk [vmem:[#allocation2 + $0x188] sm:$0xff] %vm1461, 0.0
      %1513 = vst.msk [vmem:[#allocation2 + $0x190] sm:$0x3] %vm1464, 0.0
      %1514 = vst.msk [vmem:[#allocation2 + $0x198] sm:$0xff] %vm1461, 0.0
      %1515 = vst.msk [vmem:[#allocation2 + $0x1a0] sm:$0xff] %vm1461, 0.0
      %1516 = vst.msk [vmem:[#allocation2 + $0x1a8] sm:$0x3] %vm1464, 0.0
      %1517 = vst.msk [vmem:[#allocation3] sm:$0xff] %vm1461, 0.0
      %1518 = vst.msk [vmem:[#allocation3 + $0x8] sm:$0xff] %vm1461, 0.0
      %1519 = vst.msk [vmem:[#allocation3 + $0x10] sm:$0x3] %vm1464, 0.0
      %1520 = vst.msk [vmem:[#allocation3 + $0x18] sm:$0xff] %vm1461, 0.0
      %1521 = vst.msk [vmem:[#allocation3 + $0x20] sm:$0xff] %vm1461, 0.0
      %1522 = vst.msk [vmem:[#allocation3 + $0x28] sm:$0x3] %vm1464, 0.0
      %1523 = vst.msk [vmem:[#allocation3 + $0x30] sm:$0xff] %vm1461, 0.0
      %1524 = vst.msk [vmem:[#allocation3 + $0x38] sm:$0xff] %vm1461, 0.0
      %1525 = vst.msk [vmem:[#allocation3 + $0x40] sm:$0x3] %vm1464, 0.0
      %1526 = vst.msk [vmem:[#allocation3 + $0x48] sm:$0xff] %vm1461, 0.0
      %1527 = vst.msk [vmem:[#allocation3 + $0x50] sm:$0xff] %vm1461, 0.0
      %1528 = vst.msk [vmem:[#allocation3 + $0x58] sm:$0x3] %vm1464, 0.0
      %1529 = vst.msk [vmem:[#allocation3 + $0x60] sm:$0xff] %vm1461, 0.0
      %1530 = vst.msk [vmem:[#allocation3 + $0x68] sm:$0xff] %vm1461, 0.0
      %1531 = vst.msk [vmem:[#allocation3 + $0x70] sm:$0x3] %vm1464, 0.0
      %1532 = vst.msk [vmem:[#allocation3 + $0x78] sm:$0xff] %vm1461, 0.0
      %1533 = vst.msk [vmem:[#allocation3 + $0x80] sm:$0xff] %vm1461, 0.0
      %1534 = vst.msk [vmem:[#allocation3 + $0x88] sm:$0x3] %vm1464, 0.0
      %1535 = vst.msk [vmem:[#allocation3 + $0x90] sm:$0xff] %vm1461, 0.0
      %1536 = vst.msk [vmem:[#allocation3 + $0x98] sm:$0xff] %vm1461, 0.0
      %1537 = vst.msk [vmem:[#allocation3 + $0xa0] sm:$0x3] %vm1464, 0.0
      %1538 = vst.msk [vmem:[#allocation3 + $0xa8] sm:$0xff] %vm1461, 0.0
      %1539 = vst.msk [vmem:[#allocation3 + $0xb0] sm:$0xff] %vm1461, 0.0
      %1540 = vst.msk [vmem:[#allocation3 + $0xb8] sm:$0x3] %vm1464, 0.0
      %1541 = vst.msk [vmem:[#allocation3 + $0xc0] sm:$0xff] %vm1461, 0.0
      %1542 = vst.msk [vmem:[#allocation3 + $0xc8] sm:$0xff] %vm1461, 0.0
      %1543 = vst.msk [vmem:[#allocation3 + $0xd0] sm:$0x3] %vm1464, 0.0
      %1544 = vst.msk [vmem:[#allocation3 + $0xd8] sm:$0xff] %vm1461, 0.0
      %1545 = vst.msk [vmem:[#allocation3 + $0xe0] sm:$0xff] %vm1461, 0.0
      %1546 = vst.msk [vmem:[#allocation3 + $0xe8] sm:$0x3] %vm1464, 0.0
      %1547 = vst.msk [vmem:[#allocation3 + $0xf0] sm:$0xff] %vm1461, 0.0
      %1548 = vst.msk [vmem:[#allocation3 + $0xf8] sm:$0xff] %vm1461, 0.0
      %1549 = vst.msk [vmem:[#allocation3 + $0x100] sm:$0x3] %vm1464, 0.0
      %1550 = vst.msk [vmem:[#allocation3 + $0x108] sm:$0xff] %vm1461, 0.0
      %1551 = vst.msk [vmem:[#allocation3 + $0x110] sm:$0xff] %vm1461, 0.0
      %1552 = vst.msk [vmem:[#allocation3 + $0x118] sm:$0x3] %vm1464, 0.0
      %1553 = vst.msk [vmem:[#allocation3 + $0x120] sm:$0xff] %vm1461, 0.0
      %1554 = vst.msk [vmem:[#allocation3 + $0x128] sm:$0xff] %vm1461, 0.0
      %1555 = vst.msk [vmem:[#allocation3 + $0x130] sm:$0x3] %vm1464, 0.0
      %1556 = vst.msk [vmem:[#allocation3 + $0x138] sm:$0xff] %vm1461, 0.0
      %1557 = vst.msk [vmem:[#allocation3 + $0x140] sm:$0xff] %vm1461, 0.0
      %1558 = vst.msk [vmem:[#allocation3 + $0x148] sm:$0x3] %vm1464, 0.0
      %1559 = vst.msk [vmem:[#allocation3 + $0x150] sm:$0xff] %vm1461, 0.0
      %1560 = vst.msk [vmem:[#allocation3 + $0x158] sm:$0xff] %vm1461, 0.0
      %1561 = vst.msk [vmem:[#allocation3 + $0x160] sm:$0x3] %vm1464, 0.0
      %1562 = vst.msk [vmem:[#allocation3 + $0x168] sm:$0xff] %vm1461, 0.0
      %1563 = vst.msk [vmem:[#allocation3 + $0x170] sm:$0xff] %vm1461, 0.0
      %1564 = vst.msk [vmem:[#allocation3 + $0x178] sm:$0x3] %vm1464, 0.0
      %1565 = vst.msk [vmem:[#allocation3 + $0x180] sm:$0xff] %vm1461, 0.0
      %1566 = vst.msk [vmem:[#allocation3 + $0x188] sm:$0xff] %vm1461, 0.0
      %1567 = vst.msk [vmem:[#allocation3 + $0x190] sm:$0x3] %vm1464, 0.0
      %1568 = vst.msk [vmem:[#allocation3 + $0x198] sm:$0xff] %vm1461, 0.0
      %1569 = vst.msk [vmem:[#allocation3 + $0x1a0] sm:$0xff] %vm1461, 0.0
      %1570 = vst.msk [vmem:[#allocation3 + $0x1a8] sm:$0x3] %vm1464, 0.0
      %s1571 = scalar_lea.vmem [#allocation2], 24
      %1572 = vst.msk [vmem:[%s1571 + $0x1] sm:$0xff] %vm1461, %v1166
      %1573 = vst.msk [vmem:[%s1571 + $0x9] sm:$0xff] %vm1461, %v1169
      %1574 = vst.msk [vmem:[%s1571 + $0x19] sm:$0xff] %vm1461, %v1174
      %1575 = vst.msk [vmem:[%s1571 + $0x21] sm:$0xff] %vm1461, %v1177
      %1576 = vst.msk [vmem:[%s1571 + $0x31] sm:$0xff] %vm1461, %v1182
      %1577 = vst.msk [vmem:[%s1571 + $0x39] sm:$0xff] %vm1461, %v1185
      %1578 = vst.msk [vmem:[%s1571 + $0x49] sm:$0xff] %vm1461, %v1190
      %1579 = vst.msk [vmem:[%s1571 + $0x51] sm:$0xff] %vm1461, %v1193
      %1580 = vst.msk [vmem:[%s1571 + $0x61] sm:$0xff] %vm1461, %v1198
      %1581 = vst.msk [vmem:[%s1571 + $0x69] sm:$0xff] %vm1461, %v1201
      %1582 = vst.msk [vmem:[%s1571 + $0x79] sm:$0xff] %vm1461, %v1206
      %1583 = vst.msk [vmem:[%s1571 + $0x81] sm:$0xff] %vm1461, %v1209
      %1584 = vst.msk [vmem:[%s1571 + $0x91] sm:$0xff] %vm1461, %v1214
      %1585 = vst.msk [vmem:[%s1571 + $0x99] sm:$0xff] %vm1461, %v1217
      %1586 = vst.msk [vmem:[%s1571 + $0xa9] sm:$0xff] %vm1461, %v1222
      %1587 = vst.msk [vmem:[%s1571 + $0xb1] sm:$0xff] %vm1461, %v1225
      %1588 = vst.msk [vmem:[%s1571 + $0xc1] sm:$0xff] %vm1461, %v1230
      %1589 = vst.msk [vmem:[%s1571 + $0xc9] sm:$0xff] %vm1461, %v1233
      %1590 = vst.msk [vmem:[%s1571 + $0xd9] sm:$0xff] %vm1461, %v1238
      %1591 = vst.msk [vmem:[%s1571 + $0xe1] sm:$0xff] %vm1461, %v1241
      %1592 = vst.msk [vmem:[%s1571 + $0xf1] sm:$0xff] %vm1461, %v1246
      %1593 = vst.msk [vmem:[%s1571 + $0xf9] sm:$0xff] %vm1461, %v1249
      %1594 = vst.msk [vmem:[%s1571 + $0x109] sm:$0xff] %vm1461, %v1254
      %1595 = vst.msk [vmem:[%s1571 + $0x111] sm:$0xff] %vm1461, %v1257
      %1596 = vst.msk [vmem:[%s1571 + $0x121] sm:$0xff] %vm1461, %v1262
      %1597 = vst.msk [vmem:[%s1571 + $0x129] sm:$0xff] %vm1461, %v1265
      %1598 = vst.msk [vmem:[%s1571 + $0x139] sm:$0xff] %vm1461, %v1270
      %1599 = vst.msk [vmem:[%s1571 + $0x141] sm:$0xff] %vm1461, %v1273
      %1600 = vst.msk [vmem:[%s1571 + $0x151] sm:$0xff] %vm1461, %v1278
      %1601 = vst.msk [vmem:[%s1571 + $0x159] sm:$0xff] %vm1461, %v1281
      %1602 = vst.msk [vmem:[%s1571 + $0x169] sm:$0xff] %vm1461, %v1286
      %1603 = vst.msk [vmem:[%s1571 + $0x171] sm:$0xff] %vm1461, %v1289
      %s1604 = scalar_lea.vmem [#allocation3], 24
      %1605 = vst.msk [vmem:[%s1604 + $0x1] sm:$0xff] %vm1461, %v1335
      %1606 = vst.msk [vmem:[%s1604 + $0x9] sm:$0xff] %vm1461, %v1338
      %1607 = vst.msk [vmem:[%s1604 + $0x19] sm:$0xff] %vm1461, %v1343
      %1608 = vst.msk [vmem:[%s1604 + $0x21] sm:$0xff] %vm1461, %v1346
      %1609 = vst.msk [vmem:[%s1604 + $0x31] sm:$0xff] %vm1461, %v1351
      %1610 = vst.msk [vmem:[%s1604 + $0x39] sm:$0xff] %vm1461, %v1354
      %1611 = vst.msk [vmem:[%s1604 + $0x49] sm:$0xff] %vm1461, %v1359
      %1612 = vst.msk [vmem:[%s1604 + $0x51] sm:$0xff] %vm1461, %v1362
      %1613 = vst.msk [vmem:[%s1604 + $0x61] sm:$0xff] %vm1461, %v1367
      %1614 = vst.msk [vmem:[%s1604 + $0x69] sm:$0xff] %vm1461, %v1370
      %1615 = vst.msk [vmem:[%s1604 + $0x79] sm:$0xff] %vm1461, %v1375
      %1616 = vst.msk [vmem:[%s1604 + $0x81] sm:$0xff] %vm1461, %v1378
      %1617 = vst.msk [vmem:[%s1604 + $0x91] sm:$0xff] %vm1461, %v1383
      %1618 = vst.msk [vmem:[%s1604 + $0x99] sm:$0xff] %vm1461, %v1386
      %1619 = vst.msk [vmem:[%s1604 + $0xa9] sm:$0xff] %vm1461, %v1391
      %1620 = vst.msk [vmem:[%s1604 + $0xb1] sm:$0xff] %vm1461, %v1394
      %1621 = vst.msk [vmem:[%s1604 + $0xc1] sm:$0xff] %vm1461, %v1399
      %1622 = vst.msk [vmem:[%s1604 + $0xc9] sm:$0xff] %vm1461, %v1402
      %1623 = vst.msk [vmem:[%s1604 + $0xd9] sm:$0xff] %vm1461, %v1407
      %1624 = vst.msk [vmem:[%s1604 + $0xe1] sm:$0xff] %vm1461, %v1410
      %1625 = vst.msk [vmem:[%s1604 + $0xf1] sm:$0xff] %vm1461, %v1415
      %1626 = vst.msk [vmem:[%s1604 + $0xf9] sm:$0xff] %vm1461, %v1418
      %1627 = vst.msk [vmem:[%s1604 + $0x109] sm:$0xff] %vm1461, %v1423
      %1628 = vst.msk [vmem:[%s1604 + $0x111] sm:$0xff] %vm1461, %v1426
      %1629 = vst.msk [vmem:[%s1604 + $0x121] sm:$0xff] %vm1461, %v1431
      %1630 = vst.msk [vmem:[%s1604 + $0x129] sm:$0xff] %vm1461, %v1434
      %1631 = vst.msk [vmem:[%s1604 + $0x139] sm:$0xff] %vm1461, %v1439
      %1632 = vst.msk [vmem:[%s1604 + $0x141] sm:$0xff] %vm1461, %v1442
      %1633 = vst.msk [vmem:[%s1604 + $0x151] sm:$0xff] %vm1461, %v1447
      %1634 = vst.msk [vmem:[%s1604 + $0x159] sm:$0xff] %vm1461, %v1450
      %1635 = vst.msk [vmem:[%s1604 + $0x169] sm:$0xff] %vm1461, %v1455
      %1636 = vst.msk [vmem:[%s1604 + $0x171] sm:$0xff] %vm1461, %v1458
      %v1637 = vld [vmem:[%s5] sm:$0x7]
      %v1638 = vld [vmem:[%s5 + $0x4] sm:$0x7]
      %v1639 = vld [vmem:[%s5 + $0x8] sm:$0x7]
      %v1640 = vld [vmem:[%s6] sm:$0x7]
      %v1641 = vld [vmem:[%s6 + $0x4] sm:$0x7]
      %v1642 = vld [vmem:[%s6 + $0x8] sm:$0x7]
      %v1643 = vld [vmem:[#allocation2] sm:$0xff]
      %v1644 = vld [vmem:[#allocation2 + $0x8] sm:$0xff]
      %v1645 = vld [vmem:[#allocation2 + $0x18] sm:$0xff]
      %v1646 = vld [vmem:[#allocation2 + $0x20] sm:$0xff]
      %v1647 = vld [vmem:[#allocation2 + $0x30] sm:$0xff]
      %v1648 = vld [vmem:[#allocation2 + $0x38] sm:$0xff]
      %v1649 = vld [vmem:[#allocation2 + $0x48] sm:$0xff]
      %v1650 = vld [vmem:[#allocation2 + $0x50] sm:$0xff]
      %v1651 = vld [vmem:[#allocation2 + $0x60] sm:$0xff]
      %v1652 = vld [vmem:[#allocation2 + $0x68] sm:$0xff]
      %v1653 = vld [vmem:[#allocation2 + $0x78] sm:$0xff]
      %v1654 = vld [vmem:[#allocation2 + $0x80] sm:$0xff]
      %v1655 = vld [vmem:[#allocation2 + $0x90] sm:$0xff]
      %v1656 = vld [vmem:[#allocation2 + $0x98] sm:$0xff]
      %v1657 = vld [vmem:[#allocation2 + $0xa8] sm:$0xff]
      %v1658 = vld [vmem:[#allocation2 + $0xb0] sm:$0xff]
      %v1659 = vld [vmem:[#allocation2 + $0xc0] sm:$0xff]
      %v1660 = vld [vmem:[#allocation2 + $0xc8] sm:$0xff]
      %v1661 = vld [vmem:[#allocation2 + $0xd8] sm:$0xff]
      %v1662 = vld [vmem:[#allocation2 + $0xe0] sm:$0xff]
      %v1663 = vld [vmem:[#allocation2 + $0xf0] sm:$0xff]
      %v1664 = vld [vmem:[#allocation2 + $0xf8] sm:$0xff]
      %v1665 = vld [vmem:[#allocation2 + $0x108] sm:$0xff]
      %v1666 = vld [vmem:[#allocation2 + $0x110] sm:$0xff]
      %v1667 = vld [vmem:[#allocation2 + $0x120] sm:$0xff]
      %v1668 = vld [vmem:[#allocation2 + $0x128] sm:$0xff]
      %v1669 = vld [vmem:[#allocation2 + $0x138] sm:$0xff]
      %v1670 = vld [vmem:[#allocation2 + $0x140] sm:$0xff]
      %v1671 = vld [vmem:[#allocation2 + $0x150] sm:$0xff]
      %v1672 = vld [vmem:[#allocation2 + $0x158] sm:$0xff]
      %v1673 = vld [vmem:[#allocation2 + $0x168] sm:$0xff]
      %v1674 = vld [vmem:[#allocation2 + $0x170] sm:$0xff]
      %v1675 = vlaneseq
      %v1676 = vshrl.u32 %v1675, 7
      %v1677 = vsub.s32 0, %v1676
      %v1678 = vrot.slane %v1637, %v1677
      %v1679 = vmul.f32 %v1643, %v1678
      %v1680 = vmul.f32 %v1644, %v1678
      %v1681 = vmul.f32 %v1645, %v1678
      %v1682 = vmul.f32 %v1646, %v1678
      %v1683 = vmul.f32 %v1647, %v1678
      %v1684 = vmul.f32 %v1648, %v1678
      %v1685 = vmul.f32 %v1649, %v1678
      %v1686 = vmul.f32 %v1650, %v1678
      %v1687 = vmul.f32 %v1651, %v1678
      %v1688 = vmul.f32 %v1652, %v1678
      %v1689 = vmul.f32 %v1653, %v1678
      %v1690 = vmul.f32 %v1654, %v1678
      %v1691 = vmul.f32 %v1655, %v1678
      %v1692 = vmul.f32 %v1656, %v1678
      %v1693 = vmul.f32 %v1657, %v1678
      %v1694 = vmul.f32 %v1658, %v1678
      %v1695 = vmul.f32 %v1659, %v1678
      %v1696 = vmul.f32 %v1660, %v1678
      %v1697 = vmul.f32 %v1661, %v1678
      %v1698 = vmul.f32 %v1662, %v1678
      %v1699 = vmul.f32 %v1663, %v1678
      %v1700 = vmul.f32 %v1664, %v1678
      %v1701 = vmul.f32 %v1665, %v1678
      %v1702 = vmul.f32 %v1666, %v1678
      %v1703 = vmul.f32 %v1667, %v1678
      %v1704 = vmul.f32 %v1668, %v1678
      %v1705 = vmul.f32 %v1669, %v1678
      %v1706 = vmul.f32 %v1670, %v1678
      %v1707 = vmul.f32 %v1671, %v1678
      %v1708 = vmul.f32 %v1672, %v1678
      %v1709 = vmul.f32 %v1673, %v1678
      %v1710 = vmul.f32 %v1674, %v1678
      %v1711 = vadd.f32 %v1679, 0.0
      %v1712 = vadd.f32 %v1680, 0.0
      %v1713 = vadd.f32 %v1681, 0.0
      %v1714 = vadd.f32 %v1682, 0.0
      %v1715 = vadd.f32 %v1683, 0.0
      %v1716 = vadd.f32 %v1684, 0.0
      %v1717 = vadd.f32 %v1685, 0.0
      %v1718 = vadd.f32 %v1686, 0.0
      %v1719 = vadd.f32 %v1687, 0.0
      %v1720 = vadd.f32 %v1688, 0.0
      %v1721 = vadd.f32 %v1689, 0.0
      %v1722 = vadd.f32 %v1690, 0.0
      %v1723 = vadd.f32 %v1691, 0.0
      %v1724 = vadd.f32 %v1692, 0.0
      %v1725 = vadd.f32 %v1693, 0.0
      %v1726 = vadd.f32 %v1694, 0.0
      %v1727 = vadd.f32 %v1695, 0.0
      %v1728 = vadd.f32 %v1696, 0.0
      %v1729 = vadd.f32 %v1697, 0.0
      %v1730 = vadd.f32 %v1698, 0.0
      %v1731 = vadd.f32 %v1699, 0.0
      %v1732 = vadd.f32 %v1700, 0.0
      %v1733 = vadd.f32 %v1701, 0.0
      %v1734 = vadd.f32 %v1702, 0.0
      %v1735 = vadd.f32 %v1703, 0.0
      %v1736 = vadd.f32 %v1704, 0.0
      %v1737 = vadd.f32 %v1705, 0.0
      %v1738 = vadd.f32 %v1706, 0.0
      %v1739 = vadd.f32 %v1707, 0.0
      %v1740 = vadd.f32 %v1708, 0.0
      %v1741 = vadd.f32 %v1709, 0.0
      %v1742 = vadd.f32 %v1710, 0.0
      %v1743 = vld [vmem:[#allocation3] sm:$0xff]
      %v1744 = vld [vmem:[#allocation3 + $0x8] sm:$0xff]
      %v1745 = vld [vmem:[#allocation3 + $0x18] sm:$0xff]
      %v1746 = vld [vmem:[#allocation3 + $0x20] sm:$0xff]
      %v1747 = vld [vmem:[#allocation3 + $0x30] sm:$0xff]
      %v1748 = vld [vmem:[#allocation3 + $0x38] sm:$0xff]
      %v1749 = vld [vmem:[#allocation3 + $0x48] sm:$0xff]
      %v1750 = vld [vmem:[#allocation3 + $0x50] sm:$0xff]
      %v1751 = vld [vmem:[#allocation3 + $0x60] sm:$0xff]
      %v1752 = vld [vmem:[#allocation3 + $0x68] sm:$0xff]
      %v1753 = vld [vmem:[#allocation3 + $0x78] sm:$0xff]
      %v1754 = vld [vmem:[#allocation3 + $0x80] sm:$0xff]
      %v1755 = vld [vmem:[#allocation3 + $0x90] sm:$0xff]
      %v1756 = vld [vmem:[#allocation3 + $0x98] sm:$0xff]
      %v1757 = vld [vmem:[#allocation3 + $0xa8] sm:$0xff]
      %v1758 = vld [vmem:[#allocation3 + $0xb0] sm:$0xff]
      %v1759 = vld [vmem:[#allocation3 + $0xc0] sm:$0xff]
      %v1760 = vld [vmem:[#allocation3 + $0xc8] sm:$0xff]
      %v1761 = vld [vmem:[#allocation3 + $0xd8] sm:$0xff]
      %v1762 = vld [vmem:[#allocation3 + $0xe0] sm:$0xff]
      %v1763 = vld [vmem:[#allocation3 + $0xf0] sm:$0xff]
      %v1764 = vld [vmem:[#allocation3 + $0xf8] sm:$0xff]
      %v1765 = vld [vmem:[#allocation3 + $0x108] sm:$0xff]
      %v1766 = vld [vmem:[#allocation3 + $0x110] sm:$0xff]
      %v1767 = vld [vmem:[#allocation3 + $0x120] sm:$0xff]
      %v1768 = vld [vmem:[#allocation3 + $0x128] sm:$0xff]
      %v1769 = vld [vmem:[#allocation3 + $0x138] sm:$0xff]
      %v1770 = vld [vmem:[#allocation3 + $0x140] sm:$0xff]
      %v1771 = vld [vmem:[#allocation3 + $0x150] sm:$0xff]
      %v1772 = vld [vmem:[#allocation3 + $0x158] sm:$0xff]
      %v1773 = vld [vmem:[#allocation3 + $0x168] sm:$0xff]
      %v1774 = vld [vmem:[#allocation3 + $0x170] sm:$0xff]
      %v1775 = vlaneseq
      %v1776 = vshrl.u32 %v1775, 7
      %v1777 = vsub.s32 0, %v1776
      %v1778 = vrot.slane %v1640, %v1777
      %v1779 = vmul.f32 %v1743, %v1778
      %v1780 = vmul.f32 %v1744, %v1778
      %v1781 = vmul.f32 %v1745, %v1778
      %v1782 = vmul.f32 %v1746, %v1778
      %v1783 = vmul.f32 %v1747, %v1778
      %v1784 = vmul.f32 %v1748, %v1778
      %v1785 = vmul.f32 %v1749, %v1778
      %v1786 = vmul.f32 %v1750, %v1778
      %v1787 = vmul.f32 %v1751, %v1778
      %v1788 = vmul.f32 %v1752, %v1778
      %v1789 = vmul.f32 %v1753, %v1778
      %v1790 = vmul.f32 %v1754, %v1778
      %v1791 = vmul.f32 %v1755, %v1778
      %v1792 = vmul.f32 %v1756, %v1778
      %v1793 = vmul.f32 %v1757, %v1778
      %v1794 = vmul.f32 %v1758, %v1778
      %v1795 = vmul.f32 %v1759, %v1778
      %v1796 = vmul.f32 %v1760, %v1778
      %v1797 = vmul.f32 %v1761, %v1778
      %v1798 = vmul.f32 %v1762, %v1778
      %v1799 = vmul.f32 %v1763, %v1778
      %v1800 = vmul.f32 %v1764, %v1778
      %v1801 = vmul.f32 %v1765, %v1778
      %v1802 = vmul.f32 %v1766, %v1778
      %v1803 = vmul.f32 %v1767, %v1778
      %v1804 = vmul.f32 %v1768, %v1778
      %v1805 = vmul.f32 %v1769, %v1778
      %v1806 = vmul.f32 %v1770, %v1778
      %v1807 = vmul.f32 %v1771, %v1778
      %v1808 = vmul.f32 %v1772, %v1778
      %v1809 = vmul.f32 %v1773, %v1778
      %v1810 = vmul.f32 %v1774, %v1778
      %v1811 = vadd.f32 %v1779, 0.0
      %v1812 = vadd.f32 %v1780, 0.0
      %v1813 = vadd.f32 %v1781, 0.0
      %v1814 = vadd.f32 %v1782, 0.0
      %v1815 = vadd.f32 %v1783, 0.0
      %v1816 = vadd.f32 %v1784, 0.0
      %v1817 = vadd.f32 %v1785, 0.0
      %v1818 = vadd.f32 %v1786, 0.0
      %v1819 = vadd.f32 %v1787, 0.0
      %v1820 = vadd.f32 %v1788, 0.0
      %v1821 = vadd.f32 %v1789, 0.0
      %v1822 = vadd.f32 %v1790, 0.0
      %v1823 = vadd.f32 %v1791, 0.0
      %v1824 = vadd.f32 %v1792, 0.0
      %v1825 = vadd.f32 %v1793, 0.0
      %v1826 = vadd.f32 %v1794, 0.0
      %v1827 = vadd.f32 %v1795, 0.0
      %v1828 = vadd.f32 %v1796, 0.0
      %v1829 = vadd.f32 %v1797, 0.0
      %v1830 = vadd.f32 %v1798, 0.0
      %v1831 = vadd.f32 %v1799, 0.0
      %v1832 = vadd.f32 %v1800, 0.0
      %v1833 = vadd.f32 %v1801, 0.0
      %v1834 = vadd.f32 %v1802, 0.0
      %v1835 = vadd.f32 %v1803, 0.0
      %v1836 = vadd.f32 %v1804, 0.0
      %v1837 = vadd.f32 %v1805, 0.0
      %v1838 = vadd.f32 %v1806, 0.0
      %v1839 = vadd.f32 %v1807, 0.0
      %v1840 = vadd.f32 %v1808, 0.0
      %v1841 = vadd.f32 %v1809, 0.0
      %v1842 = vadd.f32 %v1810, 0.0
      %v1843 = vld [vmem:[#allocation2 + $0x1] sm:$0xff]
      %v1844 = vld [vmem:[#allocation2 + $0x9] sm:$0xff]
      %v1845 = vld [vmem:[#allocation2 + $0x19] sm:$0xff]
      %v1846 = vld [vmem:[#allocation2 + $0x21] sm:$0xff]
      %v1847 = vld [vmem:[#allocation2 + $0x31] sm:$0xff]
      %v1848 = vld [vmem:[#allocation2 + $0x39] sm:$0xff]
      %v1849 = vld [vmem:[#allocation2 + $0x49] sm:$0xff]
      %v1850 = vld [vmem:[#allocation2 + $0x51] sm:$0xff]
      %v1851 = vld [vmem:[#allocation2 + $0x61] sm:$0xff]
      %v1852 = vld [vmem:[#allocation2 + $0x69] sm:$0xff]
      %v1853 = vld [vmem:[#allocation2 + $0x79] sm:$0xff]
      %v1854 = vld [vmem:[#allocation2 + $0x81] sm:$0xff]
      %v1855 = vld [vmem:[#allocation2 + $0x91] sm:$0xff]
      %v1856 = vld [vmem:[#allocation2 + $0x99] sm:$0xff]
      %v1857 = vld [vmem:[#allocation2 + $0xa9] sm:$0xff]
      %v1858 = vld [vmem:[#allocation2 + $0xb1] sm:$0xff]
      %v1859 = vld [vmem:[#allocation2 + $0xc1] sm:$0xff]
      %v1860 = vld [vmem:[#allocation2 + $0xc9] sm:$0xff]
      %v1861 = vld [vmem:[#allocation2 + $0xd9] sm:$0xff]
      %v1862 = vld [vmem:[#allocation2 + $0xe1] sm:$0xff]
      %v1863 = vld [vmem:[#allocation2 + $0xf1] sm:$0xff]
      %v1864 = vld [vmem:[#allocation2 + $0xf9] sm:$0xff]
      %v1865 = vld [vmem:[#allocation2 + $0x109] sm:$0xff]
      %v1866 = vld [vmem:[#allocation2 + $0x111] sm:$0xff]
      %v1867 = vld [vmem:[#allocation2 + $0x121] sm:$0xff]
      %v1868 = vld [vmem:[#allocation2 + $0x129] sm:$0xff]
      %v1869 = vld [vmem:[#allocation2 + $0x139] sm:$0xff]
      %v1870 = vld [vmem:[#allocation2 + $0x141] sm:$0xff]
      %v1871 = vld [vmem:[#allocation2 + $0x151] sm:$0xff]
      %v1872 = vld [vmem:[#allocation2 + $0x159] sm:$0xff]
      %v1873 = vld [vmem:[#allocation2 + $0x169] sm:$0xff]
      %v1874 = vld [vmem:[#allocation2 + $0x171] sm:$0xff]
      %v1875 = vlaneseq
      %v1876 = vshrl.u32 %v1875, 7
      %v1877 = vsub.s32 1, %v1876
      %v1878 = vrot.slane %v1637, %v1877
      %v1879 = vmul.f32 %v1843, %v1878
      %v1880 = vmul.f32 %v1844, %v1878
      %v1881 = vmul.f32 %v1845, %v1878
      %v1882 = vmul.f32 %v1846, %v1878
      %v1883 = vmul.f32 %v1847, %v1878
      %v1884 = vmul.f32 %v1848, %v1878
      %v1885 = vmul.f32 %v1849, %v1878
      %v1886 = vmul.f32 %v1850, %v1878
      %v1887 = vmul.f32 %v1851, %v1878
      %v1888 = vmul.f32 %v1852, %v1878
      %v1889 = vmul.f32 %v1853, %v1878
      %v1890 = vmul.f32 %v1854, %v1878
      %v1891 = vmul.f32 %v1855, %v1878
      %v1892 = vmul.f32 %v1856, %v1878
      %v1893 = vmul.f32 %v1857, %v1878
      %v1894 = vmul.f32 %v1858, %v1878
      %v1895 = vmul.f32 %v1859, %v1878
      %v1896 = vmul.f32 %v1860, %v1878
      %v1897 = vmul.f32 %v1861, %v1878
      %v1898 = vmul.f32 %v1862, %v1878
      %v1899 = vmul.f32 %v1863, %v1878
      %v1900 = vmul.f32 %v1864, %v1878
      %v1901 = vmul.f32 %v1865, %v1878
      %v1902 = vmul.f32 %v1866, %v1878
      %v1903 = vmul.f32 %v1867, %v1878
      %v1904 = vmul.f32 %v1868, %v1878
      %v1905 = vmul.f32 %v1869, %v1878
      %v1906 = vmul.f32 %v1870, %v1878
      %v1907 = vmul.f32 %v1871, %v1878
      %v1908 = vmul.f32 %v1872, %v1878
      %v1909 = vmul.f32 %v1873, %v1878
      %v1910 = vmul.f32 %v1874, %v1878
      %v1911 = vadd.f32 %v1711, %v1879
      %v1912 = vadd.f32 %v1712, %v1880
      %v1913 = vadd.f32 %v1713, %v1881
      %v1914 = vadd.f32 %v1714, %v1882
      %v1915 = vadd.f32 %v1715, %v1883
      %v1916 = vadd.f32 %v1716, %v1884
      %v1917 = vadd.f32 %v1717, %v1885
      %v1918 = vadd.f32 %v1718, %v1886
      %v1919 = vadd.f32 %v1719, %v1887
      %v1920 = vadd.f32 %v1720, %v1888
      %v1921 = vadd.f32 %v1721, %v1889
      %v1922 = vadd.f32 %v1722, %v1890
      %v1923 = vadd.f32 %v1723, %v1891
      %v1924 = vadd.f32 %v1724, %v1892
      %v1925 = vadd.f32 %v1725, %v1893
      %v1926 = vadd.f32 %v1726, %v1894
      %v1927 = vadd.f32 %v1727, %v1895
      %v1928 = vadd.f32 %v1728, %v1896
      %v1929 = vadd.f32 %v1729, %v1897
      %v1930 = vadd.f32 %v1730, %v1898
      %v1931 = vadd.f32 %v1731, %v1899
      %v1932 = vadd.f32 %v1732, %v1900
      %v1933 = vadd.f32 %v1733, %v1901
      %v1934 = vadd.f32 %v1734, %v1902
      %v1935 = vadd.f32 %v1735, %v1903
      %v1936 = vadd.f32 %v1736, %v1904
      %v1937 = vadd.f32 %v1737, %v1905
      %v1938 = vadd.f32 %v1738, %v1906
      %v1939 = vadd.f32 %v1739, %v1907
      %v1940 = vadd.f32 %v1740, %v1908
      %v1941 = vadd.f32 %v1741, %v1909
      %v1942 = vadd.f32 %v1742, %v1910
      %v1943 = vld [vmem:[#allocation3 + $0x1] sm:$0xff]
      %v1944 = vld [vmem:[#allocation3 + $0x9] sm:$0xff]
      %v1945 = vld [vmem:[#allocation3 + $0x19] sm:$0xff]
      %v1946 = vld [vmem:[#allocation3 + $0x21] sm:$0xff]
      %v1947 = vld [vmem:[#allocation3 + $0x31] sm:$0xff]
      %v1948 = vld [vmem:[#allocation3 + $0x39] sm:$0xff]
      %v1949 = vld [vmem:[#allocation3 + $0x49] sm:$0xff]
      %v1950 = vld [vmem:[#allocation3 + $0x51] sm:$0xff]
      %v1951 = vld [vmem:[#allocation3 + $0x61] sm:$0xff]
      %v1952 = vld [vmem:[#allocation3 + $0x69] sm:$0xff]
      %v1953 = vld [vmem:[#allocation3 + $0x79] sm:$0xff]
      %v1954 = vld [vmem:[#allocation3 + $0x81] sm:$0xff]
      %v1955 = vld [vmem:[#allocation3 + $0x91] sm:$0xff]
      %v1956 = vld [vmem:[#allocation3 + $0x99] sm:$0xff]
      %v1957 = vld [vmem:[#allocation3 + $0xa9] sm:$0xff]
      %v1958 = vld [vmem:[#allocation3 + $0xb1] sm:$0xff]
      %v1959 = vld [vmem:[#allocation3 + $0xc1] sm:$0xff]
      %v1960 = vld [vmem:[#allocation3 + $0xc9] sm:$0xff]
      %v1961 = vld [vmem:[#allocation3 + $0xd9] sm:$0xff]
      %v1962 = vld [vmem:[#allocation3 + $0xe1] sm:$0xff]
      %v1963 = vld [vmem:[#allocation3 + $0xf1] sm:$0xff]
      %v1964 = vld [vmem:[#allocation3 + $0xf9] sm:$0xff]
      %v1965 = vld [vmem:[#allocation3 + $0x109] sm:$0xff]
      %v1966 = vld [vmem:[#allocation3 + $0x111] sm:$0xff]
      %v1967 = vld [vmem:[#allocation3 + $0x121] sm:$0xff]
      %v1968 = vld [vmem:[#allocation3 + $0x129] sm:$0xff]
      %v1969 = vld [vmem:[#allocation3 + $0x139] sm:$0xff]
      %v1970 = vld [vmem:[#allocation3 + $0x141] sm:$0xff]
      %v1971 = vld [vmem:[#allocation3 + $0x151] sm:$0xff]
      %v1972 = vld [vmem:[#allocation3 + $0x159] sm:$0xff]
      %v1973 = vld [vmem:[#allocation3 + $0x169] sm:$0xff]
      %v1974 = vld [vmem:[#allocation3 + $0x171] sm:$0xff]
      %v1975 = vlaneseq
      %v1976 = vshrl.u32 %v1975, 7
      %v1977 = vsub.s32 1, %v1976
      %v1978 = vrot.slane %v1640, %v1977
      %v1979 = vmul.f32 %v1943, %v1978
      %v1980 = vmul.f32 %v1944, %v1978
      %v1981 = vmul.f32 %v1945, %v1978
      %v1982 = vmul.f32 %v1946, %v1978
      %v1983 = vmul.f32 %v1947, %v1978
      %v1984 = vmul.f32 %v1948, %v1978
      %v1985 = vmul.f32 %v1949, %v1978
      %v1986 = vmul.f32 %v1950, %v1978
      %v1987 = vmul.f32 %v1951, %v1978
      %v1988 = vmul.f32 %v1952, %v1978
      %v1989 = vmul.f32 %v1953, %v1978
      %v1990 = vmul.f32 %v1954, %v1978
      %v1991 = vmul.f32 %v1955, %v1978
      %v1992 = vmul.f32 %v1956, %v1978
      %v1993 = vmul.f32 %v1957, %v1978
      %v1994 = vmul.f32 %v1958, %v1978
      %v1995 = vmul.f32 %v1959, %v1978
      %v1996 = vmul.f32 %v1960, %v1978
      %v1997 = vmul.f32 %v1961, %v1978
      %v1998 = vmul.f32 %v1962, %v1978
      %v1999 = vmul.f32 %v1963, %v1978
      %v2000 = vmul.f32 %v1964, %v1978
      %v2001 = vmul.f32 %v1965, %v1978
      %v2002 = vmul.f32 %v1966, %v1978
      %v2003 = vmul.f32 %v1967, %v1978
      %v2004 = vmul.f32 %v1968, %v1978
      %v2005 = vmul.f32 %v1969, %v1978
      %v2006 = vmul.f32 %v1970, %v1978
      %v2007 = vmul.f32 %v1971, %v1978
      %v2008 = vmul.f32 %v1972, %v1978
      %v2009 = vmul.f32 %v1973, %v1978
      %v2010 = vmul.f32 %v1974, %v1978
      %v2011 = vadd.f32 %v1811, %v1979
      %v2012 = vadd.f32 %v1812, %v1980
      %v2013 = vadd.f32 %v1813, %v1981
      %v2014 = vadd.f32 %v1814, %v1982
      %v2015 = vadd.f32 %v1815, %v1983
      %v2016 = vadd.f32 %v1816, %v1984
      %v2017 = vadd.f32 %v1817, %v1985
      %v2018 = vadd.f32 %v1818, %v1986
      %v2019 = vadd.f32 %v1819, %v1987
      %v2020 = vadd.f32 %v1820, %v1988
      %v2021 = vadd.f32 %v1821, %v1989
      %v2022 = vadd.f32 %v1822, %v1990
      %v2023 = vadd.f32 %v1823, %v1991
      %v2024 = vadd.f32 %v1824, %v1992
      %v2025 = vadd.f32 %v1825, %v1993
      %v2026 = vadd.f32 %v1826, %v1994
      %v2027 = vadd.f32 %v1827, %v1995
      %v2028 = vadd.f32 %v1828, %v1996
      %v2029 = vadd.f32 %v1829, %v1997
      %v2030 = vadd.f32 %v1830, %v1998
      %v2031 = vadd.f32 %v1831, %v1999
      %v2032 = vadd.f32 %v1832, %v2000
      %v2033 = vadd.f32 %v1833, %v2001
      %v2034 = vadd.f32 %v1834, %v2002
      %v2035 = vadd.f32 %v1835, %v2003
      %v2036 = vadd.f32 %v1836, %v2004
      %v2037 = vadd.f32 %v1837, %v2005
      %v2038 = vadd.f32 %v1838, %v2006
      %v2039 = vadd.f32 %v1839, %v2007
      %v2040 = vadd.f32 %v1840, %v2008
      %v2041 = vadd.f32 %v1841, %v2009
      %v2042 = vadd.f32 %v1842, %v2010
      %v2043 = vld [vmem:[#allocation2 + $0x2] sm:$0xff]
      %v2044 = vld [vmem:[#allocation2 + $0xa] sm:$0xff]
      %v2045 = vld [vmem:[#allocation2 + $0x1a] sm:$0xff]
      %v2046 = vld [vmem:[#allocation2 + $0x22] sm:$0xff]
      %v2047 = vld [vmem:[#allocation2 + $0x32] sm:$0xff]
      %v2048 = vld [vmem:[#allocation2 + $0x3a] sm:$0xff]
      %v2049 = vld [vmem:[#allocation2 + $0x4a] sm:$0xff]
      %v2050 = vld [vmem:[#allocation2 + $0x52] sm:$0xff]
      %v2051 = vld [vmem:[#allocation2 + $0x62] sm:$0xff]
      %v2052 = vld [vmem:[#allocation2 + $0x6a] sm:$0xff]
      %v2053 = vld [vmem:[#allocation2 + $0x7a] sm:$0xff]
      %v2054 = vld [vmem:[#allocation2 + $0x82] sm:$0xff]
      %v2055 = vld [vmem:[#allocation2 + $0x92] sm:$0xff]
      %v2056 = vld [vmem:[#allocation2 + $0x9a] sm:$0xff]
      %v2057 = vld [vmem:[#allocation2 + $0xaa] sm:$0xff]
      %v2058 = vld [vmem:[#allocation2 + $0xb2] sm:$0xff]
      %v2059 = vld [vmem:[#allocation2 + $0xc2] sm:$0xff]
      %v2060 = vld [vmem:[#allocation2 + $0xca] sm:$0xff]
      %v2061 = vld [vmem:[#allocation2 + $0xda] sm:$0xff]
      %v2062 = vld [vmem:[#allocation2 + $0xe2] sm:$0xff]
      %v2063 = vld [vmem:[#allocation2 + $0xf2] sm:$0xff]
      %v2064 = vld [vmem:[#allocation2 + $0xfa] sm:$0xff]
      %v2065 = vld [vmem:[#allocation2 + $0x10a] sm:$0xff]
      %v2066 = vld [vmem:[#allocation2 + $0x112] sm:$0xff]
      %v2067 = vld [vmem:[#allocation2 + $0x122] sm:$0xff]
      %v2068 = vld [vmem:[#allocation2 + $0x12a] sm:$0xff]
      %v2069 = vld [vmem:[#allocation2 + $0x13a] sm:$0xff]
      %v2070 = vld [vmem:[#allocation2 + $0x142] sm:$0xff]
      %v2071 = vld [vmem:[#allocation2 + $0x152] sm:$0xff]
      %v2072 = vld [vmem:[#allocation2 + $0x15a] sm:$0xff]
      %v2073 = vld [vmem:[#allocation2 + $0x16a] sm:$0xff]
      %v2074 = vld [vmem:[#allocation2 + $0x172] sm:$0xff]
      %v2075 = vlaneseq
      %v2076 = vshrl.u32 %v2075, 7
      %v2077 = vsub.s32 2, %v2076
      %v2078 = vrot.slane %v1637, %v2077
      %v2079 = vmul.f32 %v2043, %v2078
      %v2080 = vmul.f32 %v2044, %v2078
      %v2081 = vmul.f32 %v2045, %v2078
      %v2082 = vmul.f32 %v2046, %v2078
      %v2083 = vmul.f32 %v2047, %v2078
      %v2084 = vmul.f32 %v2048, %v2078
      %v2085 = vmul.f32 %v2049, %v2078
      %v2086 = vmul.f32 %v2050, %v2078
      %v2087 = vmul.f32 %v2051, %v2078
      %v2088 = vmul.f32 %v2052, %v2078
      %v2089 = vmul.f32 %v2053, %v2078
      %v2090 = vmul.f32 %v2054, %v2078
      %v2091 = vmul.f32 %v2055, %v2078
      %v2092 = vmul.f32 %v2056, %v2078
      %v2093 = vmul.f32 %v2057, %v2078
      %v2094 = vmul.f32 %v2058, %v2078
      %v2095 = vmul.f32 %v2059, %v2078
      %v2096 = vmul.f32 %v2060, %v2078
      %v2097 = vmul.f32 %v2061, %v2078
      %v2098 = vmul.f32 %v2062, %v2078
      %v2099 = vmul.f32 %v2063, %v2078
      %v2100 = vmul.f32 %v2064, %v2078
      %v2101 = vmul.f32 %v2065, %v2078
      %v2102 = vmul.f32 %v2066, %v2078
      %v2103 = vmul.f32 %v2067, %v2078
      %v2104 = vmul.f32 %v2068, %v2078
      %v2105 = vmul.f32 %v2069, %v2078
      %v2106 = vmul.f32 %v2070, %v2078
      %v2107 = vmul.f32 %v2071, %v2078
      %v2108 = vmul.f32 %v2072, %v2078
      %v2109 = vmul.f32 %v2073, %v2078
      %v2110 = vmul.f32 %v2074, %v2078
      %v2111 = vadd.f32 %v1911, %v2079
      %v2112 = vadd.f32 %v1912, %v2080
      %v2113 = vadd.f32 %v1913, %v2081
      %v2114 = vadd.f32 %v1914, %v2082
      %v2115 = vadd.f32 %v1915, %v2083
      %v2116 = vadd.f32 %v1916, %v2084
      %v2117 = vadd.f32 %v1917, %v2085
      %v2118 = vadd.f32 %v1918, %v2086
      %v2119 = vadd.f32 %v1919, %v2087
      %v2120 = vadd.f32 %v1920, %v2088
      %v2121 = vadd.f32 %v1921, %v2089
      %v2122 = vadd.f32 %v1922, %v2090
      %v2123 = vadd.f32 %v1923, %v2091
      %v2124 = vadd.f32 %v1924, %v2092
      %v2125 = vadd.f32 %v1925, %v2093
      %v2126 = vadd.f32 %v1926, %v2094
      %v2127 = vadd.f32 %v1927, %v2095
      %v2128 = vadd.f32 %v1928, %v2096
      %v2129 = vadd.f32 %v1929, %v2097
      %v2130 = vadd.f32 %v1930, %v2098
      %v2131 = vadd.f32 %v1931, %v2099
      %v2132 = vadd.f32 %v1932, %v2100
      %v2133 = vadd.f32 %v1933, %v2101
      %v2134 = vadd.f32 %v1934, %v2102
      %v2135 = vadd.f32 %v1935, %v2103
      %v2136 = vadd.f32 %v1936, %v2104
      %v2137 = vadd.f32 %v1937, %v2105
      %v2138 = vadd.f32 %v1938, %v2106
      %v2139 = vadd.f32 %v1939, %v2107
      %v2140 = vadd.f32 %v1940, %v2108
      %v2141 = vadd.f32 %v1941, %v2109
      %v2142 = vadd.f32 %v1942, %v2110
      %v2143 = vld [vmem:[#allocation3 + $0x2] sm:$0xff]
      %v2144 = vld [vmem:[#allocation3 + $0xa] sm:$0xff]
      %v2145 = vld [vmem:[#allocation3 + $0x1a] sm:$0xff]
      %v2146 = vld [vmem:[#allocation3 + $0x22] sm:$0xff]
      %v2147 = vld [vmem:[#allocation3 + $0x32] sm:$0xff]
      %v2148 = vld [vmem:[#allocation3 + $0x3a] sm:$0xff]
      %v2149 = vld [vmem:[#allocation3 + $0x4a] sm:$0xff]
      %v2150 = vld [vmem:[#allocation3 + $0x52] sm:$0xff]
      %v2151 = vld [vmem:[#allocation3 + $0x62] sm:$0xff]
      %v2152 = vld [vmem:[#allocation3 + $0x6a] sm:$0xff]
      %v2153 = vld [vmem:[#allocation3 + $0x7a] sm:$0xff]
      %v2154 = vld [vmem:[#allocation3 + $0x82] sm:$0xff]
      %v2155 = vld [vmem:[#allocation3 + $0x92] sm:$0xff]
      %v2156 = vld [vmem:[#allocation3 + $0x9a] sm:$0xff]
      %v2157 = vld [vmem:[#allocation3 + $0xaa] sm:$0xff]
      %v2158 = vld [vmem:[#allocation3 + $0xb2] sm:$0xff]
      %v2159 = vld [vmem:[#allocation3 + $0xc2] sm:$0xff]
      %v2160 = vld [vmem:[#allocation3 + $0xca] sm:$0xff]
      %v2161 = vld [vmem:[#allocation3 + $0xda] sm:$0xff]
      %v2162 = vld [vmem:[#allocation3 + $0xe2] sm:$0xff]
      %v2163 = vld [vmem:[#allocation3 + $0xf2] sm:$0xff]
      %v2164 = vld [vmem:[#allocation3 + $0xfa] sm:$0xff]
      %v2165 = vld [vmem:[#allocation3 + $0x10a] sm:$0xff]
      %v2166 = vld [vmem:[#allocation3 + $0x112] sm:$0xff]
      %v2167 = vld [vmem:[#allocation3 + $0x122] sm:$0xff]
      %v2168 = vld [vmem:[#allocation3 + $0x12a] sm:$0xff]
      %v2169 = vld [vmem:[#allocation3 + $0x13a] sm:$0xff]
      %v2170 = vld [vmem:[#allocation3 + $0x142] sm:$0xff]
      %v2171 = vld [vmem:[#allocation3 + $0x152] sm:$0xff]
      %v2172 = vld [vmem:[#allocation3 + $0x15a] sm:$0xff]
      %v2173 = vld [vmem:[#allocation3 + $0x16a] sm:$0xff]
      %v2174 = vld [vmem:[#allocation3 + $0x172] sm:$0xff]
      %v2175 = vlaneseq
      %v2176 = vshrl.u32 %v2175, 7
      %v2177 = vsub.s32 2, %v2176
      %v2178 = vrot.slane %v1640, %v2177
      %v2179 = vmul.f32 %v2143, %v2178
      %v2180 = vmul.f32 %v2144, %v2178
      %v2181 = vmul.f32 %v2145, %v2178
      %v2182 = vmul.f32 %v2146, %v2178
      %v2183 = vmul.f32 %v2147, %v2178
      %v2184 = vmul.f32 %v2148, %v2178
      %v2185 = vmul.f32 %v2149, %v2178
      %v2186 = vmul.f32 %v2150, %v2178
      %v2187 = vmul.f32 %v2151, %v2178
      %v2188 = vmul.f32 %v2152, %v2178
      %v2189 = vmul.f32 %v2153, %v2178
      %v2190 = vmul.f32 %v2154, %v2178
      %v2191 = vmul.f32 %v2155, %v2178
      %v2192 = vmul.f32 %v2156, %v2178
      %v2193 = vmul.f32 %v2157, %v2178
      %v2194 = vmul.f32 %v2158, %v2178
      %v2195 = vmul.f32 %v2159, %v2178
      %v2196 = vmul.f32 %v2160, %v2178
      %v2197 = vmul.f32 %v2161, %v2178
      %v2198 = vmul.f32 %v2162, %v2178
      %v2199 = vmul.f32 %v2163, %v2178
      %v2200 = vmul.f32 %v2164, %v2178
      %v2201 = vmul.f32 %v2165, %v2178
      %v2202 = vmul.f32 %v2166, %v2178
      %v2203 = vmul.f32 %v2167, %v2178
      %v2204 = vmul.f32 %v2168, %v2178
      %v2205 = vmul.f32 %v2169, %v2178
      %v2206 = vmul.f32 %v2170, %v2178
      %v2207 = vmul.f32 %v2171, %v2178
      %v2208 = vmul.f32 %v2172, %v2178
      %v2209 = vmul.f32 %v2173, %v2178
      %v2210 = vmul.f32 %v2174, %v2178
      %v2211 = vadd.f32 %v2011, %v2179
      %v2212 = vadd.f32 %v2012, %v2180
      %v2213 = vadd.f32 %v2013, %v2181
      %v2214 = vadd.f32 %v2014, %v2182
      %v2215 = vadd.f32 %v2015, %v2183
      %v2216 = vadd.f32 %v2016, %v2184
      %v2217 = vadd.f32 %v2017, %v2185
      %v2218 = vadd.f32 %v2018, %v2186
      %v2219 = vadd.f32 %v2019, %v2187
      %v2220 = vadd.f32 %v2020, %v2188
      %v2221 = vadd.f32 %v2021, %v2189
      %v2222 = vadd.f32 %v2022, %v2190
      %v2223 = vadd.f32 %v2023, %v2191
      %v2224 = vadd.f32 %v2024, %v2192
      %v2225 = vadd.f32 %v2025, %v2193
      %v2226 = vadd.f32 %v2026, %v2194
      %v2227 = vadd.f32 %v2027, %v2195
      %v2228 = vadd.f32 %v2028, %v2196
      %v2229 = vadd.f32 %v2029, %v2197
      %v2230 = vadd.f32 %v2030, %v2198
      %v2231 = vadd.f32 %v2031, %v2199
      %v2232 = vadd.f32 %v2032, %v2200
      %v2233 = vadd.f32 %v2033, %v2201
      %v2234 = vadd.f32 %v2034, %v2202
      %v2235 = vadd.f32 %v2035, %v2203
      %v2236 = vadd.f32 %v2036, %v2204
      %v2237 = vadd.f32 %v2037, %v2205
      %v2238 = vadd.f32 %v2038, %v2206
      %v2239 = vadd.f32 %v2039, %v2207
      %v2240 = vadd.f32 %v2040, %v2208
      %v2241 = vadd.f32 %v2041, %v2209
      %v2242 = vadd.f32 %v2042, %v2210
      %v2243 = vld [vmem:[%s1571] sm:$0xff]
      %v2244 = vld [vmem:[%s1571 + $0x8] sm:$0xff]
      %v2245 = vld [vmem:[%s1571 + $0x18] sm:$0xff]
      %v2246 = vld [vmem:[%s1571 + $0x20] sm:$0xff]
      %v2247 = vld [vmem:[%s1571 + $0x30] sm:$0xff]
      %v2248 = vld [vmem:[%s1571 + $0x38] sm:$0xff]
      %v2249 = vld [vmem:[%s1571 + $0x48] sm:$0xff]
      %v2250 = vld [vmem:[%s1571 + $0x50] sm:$0xff]
      %v2251 = vld [vmem:[%s1571 + $0x60] sm:$0xff]
      %v2252 = vld [vmem:[%s1571 + $0x68] sm:$0xff]
      %v2253 = vld [vmem:[%s1571 + $0x78] sm:$0xff]
      %v2254 = vld [vmem:[%s1571 + $0x80] sm:$0xff]
      %v2255 = vld [vmem:[%s1571 + $0x90] sm:$0xff]
      %v2256 = vld [vmem:[%s1571 + $0x98] sm:$0xff]
      %v2257 = vld [vmem:[%s1571 + $0xa8] sm:$0xff]
      %v2258 = vld [vmem:[%s1571 + $0xb0] sm:$0xff]
      %v2259 = vld [vmem:[%s1571 + $0xc0] sm:$0xff]
      %v2260 = vld [vmem:[%s1571 + $0xc8] sm:$0xff]
      %v2261 = vld [vmem:[%s1571 + $0xd8] sm:$0xff]
      %v2262 = vld [vmem:[%s1571 + $0xe0] sm:$0xff]
      %v2263 = vld [vmem:[%s1571 + $0xf0] sm:$0xff]
      %v2264 = vld [vmem:[%s1571 + $0xf8] sm:$0xff]
      %v2265 = vld [vmem:[%s1571 + $0x108] sm:$0xff]
      %v2266 = vld [vmem:[%s1571 + $0x110] sm:$0xff]
      %v2267 = vld [vmem:[%s1571 + $0x120] sm:$0xff]
      %v2268 = vld [vmem:[%s1571 + $0x128] sm:$0xff]
      %v2269 = vld [vmem:[%s1571 + $0x138] sm:$0xff]
      %v2270 = vld [vmem:[%s1571 + $0x140] sm:$0xff]
      %v2271 = vld [vmem:[%s1571 + $0x150] sm:$0xff]
      %v2272 = vld [vmem:[%s1571 + $0x158] sm:$0xff]
      %v2273 = vld [vmem:[%s1571 + $0x168] sm:$0xff]
      %v2274 = vld [vmem:[%s1571 + $0x170] sm:$0xff]
      %v2275 = vlaneseq
      %v2276 = vshrl.u32 %v2275, 7
      %v2277 = vsub.s32 0, %v2276
      %v2278 = vrot.slane %v1638, %v2277
      %v2279 = vmul.f32 %v2243, %v2278
      %v2280 = vmul.f32 %v2244, %v2278
      %v2281 = vmul.f32 %v2245, %v2278
      %v2282 = vmul.f32 %v2246, %v2278
      %v2283 = vmul.f32 %v2247, %v2278
      %v2284 = vmul.f32 %v2248, %v2278
      %v2285 = vmul.f32 %v2249, %v2278
      %v2286 = vmul.f32 %v2250, %v2278
      %v2287 = vmul.f32 %v2251, %v2278
      %v2288 = vmul.f32 %v2252, %v2278
      %v2289 = vmul.f32 %v2253, %v2278
      %v2290 = vmul.f32 %v2254, %v2278
      %v2291 = vmul.f32 %v2255, %v2278
      %v2292 = vmul.f32 %v2256, %v2278
      %v2293 = vmul.f32 %v2257, %v2278
      %v2294 = vmul.f32 %v2258, %v2278
      %v2295 = vmul.f32 %v2259, %v2278
      %v2296 = vmul.f32 %v2260, %v2278
      %v2297 = vmul.f32 %v2261, %v2278
      %v2298 = vmul.f32 %v2262, %v2278
      %v2299 = vmul.f32 %v2263, %v2278
      %v2300 = vmul.f32 %v2264, %v2278
      %v2301 = vmul.f32 %v2265, %v2278
      %v2302 = vmul.f32 %v2266, %v2278
      %v2303 = vmul.f32 %v2267, %v2278
      %v2304 = vmul.f32 %v2268, %v2278
      %v2305 = vmul.f32 %v2269, %v2278
      %v2306 = vmul.f32 %v2270, %v2278
      %v2307 = vmul.f32 %v2271, %v2278
      %v2308 = vmul.f32 %v2272, %v2278
      %v2309 = vmul.f32 %v2273, %v2278
      %v2310 = vmul.f32 %v2274, %v2278
      %v2311 = vadd.f32 %v2111, %v2279
      %v2312 = vadd.f32 %v2112, %v2280
      %v2313 = vadd.f32 %v2113, %v2281
      %v2314 = vadd.f32 %v2114, %v2282
      %v2315 = vadd.f32 %v2115, %v2283
      %v2316 = vadd.f32 %v2116, %v2284
      %v2317 = vadd.f32 %v2117, %v2285
      %v2318 = vadd.f32 %v2118, %v2286
      %v2319 = vadd.f32 %v2119, %v2287
      %v2320 = vadd.f32 %v2120, %v2288
      %v2321 = vadd.f32 %v2121, %v2289
      %v2322 = vadd.f32 %v2122, %v2290
      %v2323 = vadd.f32 %v2123, %v2291
      %v2324 = vadd.f32 %v2124, %v2292
      %v2325 = vadd.f32 %v2125, %v2293
      %v2326 = vadd.f32 %v2126, %v2294
      %v2327 = vadd.f32 %v2127, %v2295
      %v2328 = vadd.f32 %v2128, %v2296
      %v2329 = vadd.f32 %v2129, %v2297
      %v2330 = vadd.f32 %v2130, %v2298
      %v2331 = vadd.f32 %v2131, %v2299
      %v2332 = vadd.f32 %v2132, %v2300
      %v2333 = vadd.f32 %v2133, %v2301
      %v2334 = vadd.f32 %v2134, %v2302
      %v2335 = vadd.f32 %v2135, %v2303
      %v2336 = vadd.f32 %v2136, %v2304
      %v2337 = vadd.f32 %v2137, %v2305
      %v2338 = vadd.f32 %v2138, %v2306
      %v2339 = vadd.f32 %v2139, %v2307
      %v2340 = vadd.f32 %v2140, %v2308
      %v2341 = vadd.f32 %v2141, %v2309
      %v2342 = vadd.f32 %v2142, %v2310
      %v2343 = vld [vmem:[%s1604] sm:$0xff]
      %v2344 = vld [vmem:[%s1604 + $0x8] sm:$0xff]
      %v2345 = vld [vmem:[%s1604 + $0x18] sm:$0xff]
      %v2346 = vld [vmem:[%s1604 + $0x20] sm:$0xff]
      %v2347 = vld [vmem:[%s1604 + $0x30] sm:$0xff]
      %v2348 = vld [vmem:[%s1604 + $0x38] sm:$0xff]
      %v2349 = vld [vmem:[%s1604 + $0x48] sm:$0xff]
      %v2350 = vld [vmem:[%s1604 + $0x50] sm:$0xff]
      %v2351 = vld [vmem:[%s1604 + $0x60] sm:$0xff]
      %v2352 = vld [vmem:[%s1604 + $0x68] sm:$0xff]
      %v2353 = vld [vmem:[%s1604 + $0x78] sm:$0xff]
      %v2354 = vld [vmem:[%s1604 + $0x80] sm:$0xff]
      %v2355 = vld [vmem:[%s1604 + $0x90] sm:$0xff]
      %v2356 = vld [vmem:[%s1604 + $0x98] sm:$0xff]
      %v2357 = vld [vmem:[%s1604 + $0xa8] sm:$0xff]
      %v2358 = vld [vmem:[%s1604 + $0xb0] sm:$0xff]
      %v2359 = vld [vmem:[%s1604 + $0xc0] sm:$0xff]
      %v2360 = vld [vmem:[%s1604 + $0xc8] sm:$0xff]
      %v2361 = vld [vmem:[%s1604 + $0xd8] sm:$0xff]
      %v2362 = vld [vmem:[%s1604 + $0xe0] sm:$0xff]
      %v2363 = vld [vmem:[%s1604 + $0xf0] sm:$0xff]
      %v2364 = vld [vmem:[%s1604 + $0xf8] sm:$0xff]
      %v2365 = vld [vmem:[%s1604 + $0x108] sm:$0xff]
      %v2366 = vld [vmem:[%s1604 + $0x110] sm:$0xff]
      %v2367 = vld [vmem:[%s1604 + $0x120] sm:$0xff]
      %v2368 = vld [vmem:[%s1604 + $0x128] sm:$0xff]
      %v2369 = vld [vmem:[%s1604 + $0x138] sm:$0xff]
      %v2370 = vld [vmem:[%s1604 + $0x140] sm:$0xff]
      %v2371 = vld [vmem:[%s1604 + $0x150] sm:$0xff]
      %v2372 = vld [vmem:[%s1604 + $0x158] sm:$0xff]
      %v2373 = vld [vmem:[%s1604 + $0x168] sm:$0xff]
      %v2374 = vld [vmem:[%s1604 + $0x170] sm:$0xff]
      %v2375 = vlaneseq
      %v2376 = vshrl.u32 %v2375, 7
      %v2377 = vsub.s32 0, %v2376
      %v2378 = vrot.slane %v1641, %v2377
      %v2379 = vmul.f32 %v2343, %v2378
      %v2380 = vmul.f32 %v2344, %v2378
      %v2381 = vmul.f32 %v2345, %v2378
      %v2382 = vmul.f32 %v2346, %v2378
      %v2383 = vmul.f32 %v2347, %v2378
      %v2384 = vmul.f32 %v2348, %v2378
      %v2385 = vmul.f32 %v2349, %v2378
      %v2386 = vmul.f32 %v2350, %v2378
      %v2387 = vmul.f32 %v2351, %v2378
      %v2388 = vmul.f32 %v2352, %v2378
      %v2389 = vmul.f32 %v2353, %v2378
      %v2390 = vmul.f32 %v2354, %v2378
      %v2391 = vmul.f32 %v2355, %v2378
      %v2392 = vmul.f32 %v2356, %v2378
      %v2393 = vmul.f32 %v2357, %v2378
      %v2394 = vmul.f32 %v2358, %v2378
      %v2395 = vmul.f32 %v2359, %v2378
      %v2396 = vmul.f32 %v2360, %v2378
      %v2397 = vmul.f32 %v2361, %v2378
      %v2398 = vmul.f32 %v2362, %v2378
      %v2399 = vmul.f32 %v2363, %v2378
      %v2400 = vmul.f32 %v2364, %v2378
      %v2401 = vmul.f32 %v2365, %v2378
      %v2402 = vmul.f32 %v2366, %v2378
      %v2403 = vmul.f32 %v2367, %v2378
      %v2404 = vmul.f32 %v2368, %v2378
      %v2405 = vmul.f32 %v2369, %v2378
      %v2406 = vmul.f32 %v2370, %v2378
      %v2407 = vmul.f32 %v2371, %v2378
      %v2408 = vmul.f32 %v2372, %v2378
      %v2409 = vmul.f32 %v2373, %v2378
      %v2410 = vmul.f32 %v2374, %v2378
      %v2411 = vadd.f32 %v2211, %v2379
      %v2412 = vadd.f32 %v2212, %v2380
      %v2413 = vadd.f32 %v2213, %v2381
      %v2414 = vadd.f32 %v2214, %v2382
      %v2415 = vadd.f32 %v2215, %v2383
      %v2416 = vadd.f32 %v2216, %v2384
      %v2417 = vadd.f32 %v2217, %v2385
      %v2418 = vadd.f32 %v2218, %v2386
      %v2419 = vadd.f32 %v2219, %v2387
      %v2420 = vadd.f32 %v2220, %v2388
      %v2421 = vadd.f32 %v2221, %v2389
      %v2422 = vadd.f32 %v2222, %v2390
      %v2423 = vadd.f32 %v2223, %v2391
      %v2424 = vadd.f32 %v2224, %v2392
      %v2425 = vadd.f32 %v2225, %v2393
      %v2426 = vadd.f32 %v2226, %v2394
      %v2427 = vadd.f32 %v2227, %v2395
      %v2428 = vadd.f32 %v2228, %v2396
      %v2429 = vadd.f32 %v2229, %v2397
      %v2430 = vadd.f32 %v2230, %v2398
      %v2431 = vadd.f32 %v2231, %v2399
      %v2432 = vadd.f32 %v2232, %v2400
      %v2433 = vadd.f32 %v2233, %v2401
      %v2434 = vadd.f32 %v2234, %v2402
      %v2435 = vadd.f32 %v2235, %v2403
      %v2436 = vadd.f32 %v2236, %v2404
      %v2437 = vadd.f32 %v2237, %v2405
      %v2438 = vadd.f32 %v2238, %v2406
      %v2439 = vadd.f32 %v2239, %v2407
      %v2440 = vadd.f32 %v2240, %v2408
      %v2441 = vadd.f32 %v2241, %v2409
      %v2442 = vadd.f32 %v2242, %v2410
      %v2443 = vld [vmem:[%s1571 + $0x1] sm:$0xff]
      %v2444 = vld [vmem:[%s1571 + $0x9] sm:$0xff]
      %v2445 = vld [vmem:[%s1571 + $0x19] sm:$0xff]
      %v2446 = vld [vmem:[%s1571 + $0x21] sm:$0xff]
      %v2447 = vld [vmem:[%s1571 + $0x31] sm:$0xff]
      %v2448 = vld [vmem:[%s1571 + $0x39] sm:$0xff]
      %v2449 = vld [vmem:[%s1571 + $0x49] sm:$0xff]
      %v2450 = vld [vmem:[%s1571 + $0x51] sm:$0xff]
      %v2451 = vld [vmem:[%s1571 + $0x61] sm:$0xff]
      %v2452 = vld [vmem:[%s1571 + $0x69] sm:$0xff]
      %v2453 = vld [vmem:[%s1571 + $0x79] sm:$0xff]
      %v2454 = vld [vmem:[%s1571 + $0x81] sm:$0xff]
      %v2455 = vld [vmem:[%s1571 + $0x91] sm:$0xff]
      %v2456 = vld [vmem:[%s1571 + $0x99] sm:$0xff]
      %v2457 = vld [vmem:[%s1571 + $0xa9] sm:$0xff]
      %v2458 = vld [vmem:[%s1571 + $0xb1] sm:$0xff]
      %v2459 = vld [vmem:[%s1571 + $0xc1] sm:$0xff]
      %v2460 = vld [vmem:[%s1571 + $0xc9] sm:$0xff]
      %v2461 = vld [vmem:[%s1571 + $0xd9] sm:$0xff]
      %v2462 = vld [vmem:[%s1571 + $0xe1] sm:$0xff]
      %v2463 = vld [vmem:[%s1571 + $0xf1] sm:$0xff]
      %v2464 = vld [vmem:[%s1571 + $0xf9] sm:$0xff]
      %v2465 = vld [vmem:[%s1571 + $0x109] sm:$0xff]
      %v2466 = vld [vmem:[%s1571 + $0x111] sm:$0xff]
      %v2467 = vld [vmem:[%s1571 + $0x121] sm:$0xff]
      %v2468 = vld [vmem:[%s1571 + $0x129] sm:$0xff]
      %v2469 = vld [vmem:[%s1571 + $0x139] sm:$0xff]
      %v2470 = vld [vmem:[%s1571 + $0x141] sm:$0xff]
      %v2471 = vld [vmem:[%s1571 + $0x151] sm:$0xff]
      %v2472 = vld [vmem:[%s1571 + $0x159] sm:$0xff]
      %v2473 = vld [vmem:[%s1571 + $0x169] sm:$0xff]
      %v2474 = vld [vmem:[%s1571 + $0x171] sm:$0xff]
      %v2475 = vlaneseq
      %v2476 = vshrl.u32 %v2475, 7
      %v2477 = vsub.s32 1, %v2476
      %v2478 = vrot.slane %v1638, %v2477
      %v2479 = vmul.f32 %v2443, %v2478
      %v2480 = vmul.f32 %v2444, %v2478
      %v2481 = vmul.f32 %v2445, %v2478
      %v2482 = vmul.f32 %v2446, %v2478
      %v2483 = vmul.f32 %v2447, %v2478
      %v2484 = vmul.f32 %v2448, %v2478
      %v2485 = vmul.f32 %v2449, %v2478
      %v2486 = vmul.f32 %v2450, %v2478
      %v2487 = vmul.f32 %v2451, %v2478
      %v2488 = vmul.f32 %v2452, %v2478
      %v2489 = vmul.f32 %v2453, %v2478
      %v2490 = vmul.f32 %v2454, %v2478
      %v2491 = vmul.f32 %v2455, %v2478
      %v2492 = vmul.f32 %v2456, %v2478
      %v2493 = vmul.f32 %v2457, %v2478
      %v2494 = vmul.f32 %v2458, %v2478
      %v2495 = vmul.f32 %v2459, %v2478
      %v2496 = vmul.f32 %v2460, %v2478
      %v2497 = vmul.f32 %v2461, %v2478
      %v2498 = vmul.f32 %v2462, %v2478
      %v2499 = vmul.f32 %v2463, %v2478
      %v2500 = vmul.f32 %v2464, %v2478
      %v2501 = vmul.f32 %v2465, %v2478
      %v2502 = vmul.f32 %v2466, %v2478
      %v2503 = vmul.f32 %v2467, %v2478
      %v2504 = vmul.f32 %v2468, %v2478
      %v2505 = vmul.f32 %v2469, %v2478
      %v2506 = vmul.f32 %v2470, %v2478
      %v2507 = vmul.f32 %v2471, %v2478
      %v2508 = vmul.f32 %v2472, %v2478
      %v2509 = vmul.f32 %v2473, %v2478
      %v2510 = vmul.f32 %v2474, %v2478
      %v2511 = vadd.f32 %v2311, %v2479
      %v2512 = vadd.f32 %v2312, %v2480
      %v2513 = vadd.f32 %v2313, %v2481
      %v2514 = vadd.f32 %v2314, %v2482
      %v2515 = vadd.f32 %v2315, %v2483
      %v2516 = vadd.f32 %v2316, %v2484
      %v2517 = vadd.f32 %v2317, %v2485
      %v2518 = vadd.f32 %v2318, %v2486
      %v2519 = vadd.f32 %v2319, %v2487
      %v2520 = vadd.f32 %v2320, %v2488
      %v2521 = vadd.f32 %v2321, %v2489
      %v2522 = vadd.f32 %v2322, %v2490
      %v2523 = vadd.f32 %v2323, %v2491
      %v2524 = vadd.f32 %v2324, %v2492
      %v2525 = vadd.f32 %v2325, %v2493
      %v2526 = vadd.f32 %v2326, %v2494
      %v2527 = vadd.f32 %v2327, %v2495
      %v2528 = vadd.f32 %v2328, %v2496
      %v2529 = vadd.f32 %v2329, %v2497
      %v2530 = vadd.f32 %v2330, %v2498
      %v2531 = vadd.f32 %v2331, %v2499
      %v2532 = vadd.f32 %v2332, %v2500
      %v2533 = vadd.f32 %v2333, %v2501
      %v2534 = vadd.f32 %v2334, %v2502
      %v2535 = vadd.f32 %v2335, %v2503
      %v2536 = vadd.f32 %v2336, %v2504
      %v2537 = vadd.f32 %v2337, %v2505
      %v2538 = vadd.f32 %v2338, %v2506
      %v2539 = vadd.f32 %v2339, %v2507
      %v2540 = vadd.f32 %v2340, %v2508
      %v2541 = vadd.f32 %v2341, %v2509
      %v2542 = vadd.f32 %v2342, %v2510
      %v2543 = vld [vmem:[%s1604 + $0x1] sm:$0xff]
      %v2544 = vld [vmem:[%s1604 + $0x9] sm:$0xff]
      %v2545 = vld [vmem:[%s1604 + $0x19] sm:$0xff]
      %v2546 = vld [vmem:[%s1604 + $0x21] sm:$0xff]
      %v2547 = vld [vmem:[%s1604 + $0x31] sm:$0xff]
      %v2548 = vld [vmem:[%s1604 + $0x39] sm:$0xff]
      %v2549 = vld [vmem:[%s1604 + $0x49] sm:$0xff]
      %v2550 = vld [vmem:[%s1604 + $0x51] sm:$0xff]
      %v2551 = vld [vmem:[%s1604 + $0x61] sm:$0xff]
      %v2552 = vld [vmem:[%s1604 + $0x69] sm:$0xff]
      %v2553 = vld [vmem:[%s1604 + $0x79] sm:$0xff]
      %v2554 = vld [vmem:[%s1604 + $0x81] sm:$0xff]
      %v2555 = vld [vmem:[%s1604 + $0x91] sm:$0xff]
      %v2556 = vld [vmem:[%s1604 + $0x99] sm:$0xff]
      %v2557 = vld [vmem:[%s1604 + $0xa9] sm:$0xff]
      %v2558 = vld [vmem:[%s1604 + $0xb1] sm:$0xff]
      %v2559 = vld [vmem:[%s1604 + $0xc1] sm:$0xff]
      %v2560 = vld [vmem:[%s1604 + $0xc9] sm:$0xff]
      %v2561 = vld [vmem:[%s1604 + $0xd9] sm:$0xff]
      %v2562 = vld [vmem:[%s1604 + $0xe1] sm:$0xff]
      %v2563 = vld [vmem:[%s1604 + $0xf1] sm:$0xff]
      %v2564 = vld [vmem:[%s1604 + $0xf9] sm:$0xff]
      %v2565 = vld [vmem:[%s1604 + $0x109] sm:$0xff]
      %v2566 = vld [vmem:[%s1604 + $0x111] sm:$0xff]
      %v2567 = vld [vmem:[%s1604 + $0x121] sm:$0xff]
      %v2568 = vld [vmem:[%s1604 + $0x129] sm:$0xff]
      %v2569 = vld [vmem:[%s1604 + $0x139] sm:$0xff]
      %v2570 = vld [vmem:[%s1604 + $0x141] sm:$0xff]
      %v2571 = vld [vmem:[%s1604 + $0x151] sm:$0xff]
      %v2572 = vld [vmem:[%s1604 + $0x159] sm:$0xff]
      %v2573 = vld [vmem:[%s1604 + $0x169] sm:$0xff]
      %v2574 = vld [vmem:[%s1604 + $0x171] sm:$0xff]
      %v2575 = vlaneseq
      %v2576 = vshrl.u32 %v2575, 7
      %v2577 = vsub.s32 1, %v2576
      %v2578 = vrot.slane %v1641, %v2577
      %v2579 = vmul.f32 %v2543, %v2578
      %v2580 = vmul.f32 %v2544, %v2578
      %v2581 = vmul.f32 %v2545, %v2578
      %v2582 = vmul.f32 %v2546, %v2578
      %v2583 = vmul.f32 %v2547, %v2578
      %v2584 = vmul.f32 %v2548, %v2578
      %v2585 = vmul.f32 %v2549, %v2578
      %v2586 = vmul.f32 %v2550, %v2578
      %v2587 = vmul.f32 %v2551, %v2578
      %v2588 = vmul.f32 %v2552, %v2578
      %v2589 = vmul.f32 %v2553, %v2578
      %v2590 = vmul.f32 %v2554, %v2578
      %v2591 = vmul.f32 %v2555, %v2578
      %v2592 = vmul.f32 %v2556, %v2578
      %v2593 = vmul.f32 %v2557, %v2578
      %v2594 = vmul.f32 %v2558, %v2578
      %v2595 = vmul.f32 %v2559, %v2578
      %v2596 = vmul.f32 %v2560, %v2578
      %v2597 = vmul.f32 %v2561, %v2578
      %v2598 = vmul.f32 %v2562, %v2578
      %v2599 = vmul.f32 %v2563, %v2578
      %v2600 = vmul.f32 %v2564, %v2578
      %v2601 = vmul.f32 %v2565, %v2578
      %v2602 = vmul.f32 %v2566, %v2578
      %v2603 = vmul.f32 %v2567, %v2578
      %v2604 = vmul.f32 %v2568, %v2578
      %v2605 = vmul.f32 %v2569, %v2578
      %v2606 = vmul.f32 %v2570, %v2578
      %v2607 = vmul.f32 %v2571, %v2578
      %v2608 = vmul.f32 %v2572, %v2578
      %v2609 = vmul.f32 %v2573, %v2578
      %v2610 = vmul.f32 %v2574, %v2578
      %v2611 = vadd.f32 %v2411, %v2579
      %v2612 = vadd.f32 %v2412, %v2580
      %v2613 = vadd.f32 %v2413, %v2581
      %v2614 = vadd.f32 %v2414, %v2582
      %v2615 = vadd.f32 %v2415, %v2583
      %v2616 = vadd.f32 %v2416, %v2584
      %v2617 = vadd.f32 %v2417, %v2585
      %v2618 = vadd.f32 %v2418, %v2586
      %v2619 = vadd.f32 %v2419, %v2587
      %v2620 = vadd.f32 %v2420, %v2588
      %v2621 = vadd.f32 %v2421, %v2589
      %v2622 = vadd.f32 %v2422, %v2590
      %v2623 = vadd.f32 %v2423, %v2591
      %v2624 = vadd.f32 %v2424, %v2592
      %v2625 = vadd.f32 %v2425, %v2593
      %v2626 = vadd.f32 %v2426, %v2594
      %v2627 = vadd.f32 %v2427, %v2595
      %v2628 = vadd.f32 %v2428, %v2596
      %v2629 = vadd.f32 %v2429, %v2597
      %v2630 = vadd.f32 %v2430, %v2598
      %v2631 = vadd.f32 %v2431, %v2599
      %v2632 = vadd.f32 %v2432, %v2600
      %v2633 = vadd.f32 %v2433, %v2601
      %v2634 = vadd.f32 %v2434, %v2602
      %v2635 = vadd.f32 %v2435, %v2603
      %v2636 = vadd.f32 %v2436, %v2604
      %v2637 = vadd.f32 %v2437, %v2605
      %v2638 = vadd.f32 %v2438, %v2606
      %v2639 = vadd.f32 %v2439, %v2607
      %v2640 = vadd.f32 %v2440, %v2608
      %v2641 = vadd.f32 %v2441, %v2609
      %v2642 = vadd.f32 %v2442, %v2610
      %v2643 = vld [vmem:[%s1571 + $0x2] sm:$0xff]
      %v2644 = vld [vmem:[%s1571 + $0xa] sm:$0xff]
      %v2645 = vld [vmem:[%s1571 + $0x1a] sm:$0xff]
      %v2646 = vld [vmem:[%s1571 + $0x22] sm:$0xff]
      %v2647 = vld [vmem:[%s1571 + $0x32] sm:$0xff]
      %v2648 = vld [vmem:[%s1571 + $0x3a] sm:$0xff]
      %v2649 = vld [vmem:[%s1571 + $0x4a] sm:$0xff]
      %v2650 = vld [vmem:[%s1571 + $0x52] sm:$0xff]
      %v2651 = vld [vmem:[%s1571 + $0x62] sm:$0xff]
      %v2652 = vld [vmem:[%s1571 + $0x6a] sm:$0xff]
      %v2653 = vld [vmem:[%s1571 + $0x7a] sm:$0xff]
      %v2654 = vld [vmem:[%s1571 + $0x82] sm:$0xff]
      %v2655 = vld [vmem:[%s1571 + $0x92] sm:$0xff]
      %v2656 = vld [vmem:[%s1571 + $0x9a] sm:$0xff]
      %v2657 = vld [vmem:[%s1571 + $0xaa] sm:$0xff]
      %v2658 = vld [vmem:[%s1571 + $0xb2] sm:$0xff]
      %v2659 = vld [vmem:[%s1571 + $0xc2] sm:$0xff]
      %v2660 = vld [vmem:[%s1571 + $0xca] sm:$0xff]
      %v2661 = vld [vmem:[%s1571 + $0xda] sm:$0xff]
      %v2662 = vld [vmem:[%s1571 + $0xe2] sm:$0xff]
      %v2663 = vld [vmem:[%s1571 + $0xf2] sm:$0xff]
      %v2664 = vld [vmem:[%s1571 + $0xfa] sm:$0xff]
      %v2665 = vld [vmem:[%s1571 + $0x10a] sm:$0xff]
      %v2666 = vld [vmem:[%s1571 + $0x112] sm:$0xff]
      %v2667 = vld [vmem:[%s1571 + $0x122] sm:$0xff]
      %v2668 = vld [vmem:[%s1571 + $0x12a] sm:$0xff]
      %v2669 = vld [vmem:[%s1571 + $0x13a] sm:$0xff]
      %v2670 = vld [vmem:[%s1571 + $0x142] sm:$0xff]
      %v2671 = vld [vmem:[%s1571 + $0x152] sm:$0xff]
      %v2672 = vld [vmem:[%s1571 + $0x15a] sm:$0xff]
      %v2673 = vld [vmem:[%s1571 + $0x16a] sm:$0xff]
      %v2674 = vld [vmem:[%s1571 + $0x172] sm:$0xff]
      %v2675 = vlaneseq
      %v2676 = vshrl.u32 %v2675, 7
      %v2677 = vsub.s32 2, %v2676
      %v2678 = vrot.slane %v1638, %v2677
      %v2679 = vmul.f32 %v2643, %v2678
      %v2680 = vmul.f32 %v2644, %v2678
      %v2681 = vmul.f32 %v2645, %v2678
      %v2682 = vmul.f32 %v2646, %v2678
      %v2683 = vmul.f32 %v2647, %v2678
      %v2684 = vmul.f32 %v2648, %v2678
      %v2685 = vmul.f32 %v2649, %v2678
      %v2686 = vmul.f32 %v2650, %v2678
      %v2687 = vmul.f32 %v2651, %v2678
      %v2688 = vmul.f32 %v2652, %v2678
      %v2689 = vmul.f32 %v2653, %v2678
      %v2690 = vmul.f32 %v2654, %v2678
      %v2691 = vmul.f32 %v2655, %v2678
      %v2692 = vmul.f32 %v2656, %v2678
      %v2693 = vmul.f32 %v2657, %v2678
      %v2694 = vmul.f32 %v2658, %v2678
      %v2695 = vmul.f32 %v2659, %v2678
      %v2696 = vmul.f32 %v2660, %v2678
      %v2697 = vmul.f32 %v2661, %v2678
      %v2698 = vmul.f32 %v2662, %v2678
      %v2699 = vmul.f32 %v2663, %v2678
      %v2700 = vmul.f32 %v2664, %v2678
      %v2701 = vmul.f32 %v2665, %v2678
      %v2702 = vmul.f32 %v2666, %v2678
      %v2703 = vmul.f32 %v2667, %v2678
      %v2704 = vmul.f32 %v2668, %v2678
      %v2705 = vmul.f32 %v2669, %v2678
      %v2706 = vmul.f32 %v2670, %v2678
      %v2707 = vmul.f32 %v2671, %v2678
      %v2708 = vmul.f32 %v2672, %v2678
      %v2709 = vmul.f32 %v2673, %v2678
      %v2710 = vmul.f32 %v2674, %v2678
      %v2711 = vadd.f32 %v2511, %v2679
      %v2712 = vadd.f32 %v2512, %v2680
      %v2713 = vadd.f32 %v2513, %v2681
      %v2714 = vadd.f32 %v2514, %v2682
      %v2715 = vadd.f32 %v2515, %v2683
      %v2716 = vadd.f32 %v2516, %v2684
      %v2717 = vadd.f32 %v2517, %v2685
      %v2718 = vadd.f32 %v2518, %v2686
      %v2719 = vadd.f32 %v2519, %v2687
      %v2720 = vadd.f32 %v2520, %v2688
      %v2721 = vadd.f32 %v2521, %v2689
      %v2722 = vadd.f32 %v2522, %v2690
      %v2723 = vadd.f32 %v2523, %v2691
      %v2724 = vadd.f32 %v2524, %v2692
      %v2725 = vadd.f32 %v2525, %v2693
      %v2726 = vadd.f32 %v2526, %v2694
      %v2727 = vadd.f32 %v2527, %v2695
      %v2728 = vadd.f32 %v2528, %v2696
      %v2729 = vadd.f32 %v2529, %v2697
      %v2730 = vadd.f32 %v2530, %v2698
      %v2731 = vadd.f32 %v2531, %v2699
      %v2732 = vadd.f32 %v2532, %v2700
      %v2733 = vadd.f32 %v2533, %v2701
      %v2734 = vadd.f32 %v2534, %v2702
      %v2735 = vadd.f32 %v2535, %v2703
      %v2736 = vadd.f32 %v2536, %v2704
      %v2737 = vadd.f32 %v2537, %v2705
      %v2738 = vadd.f32 %v2538, %v2706
      %v2739 = vadd.f32 %v2539, %v2707
      %v2740 = vadd.f32 %v2540, %v2708
      %v2741 = vadd.f32 %v2541, %v2709
      %v2742 = vadd.f32 %v2542, %v2710
      %v2743 = vld [vmem:[%s1604 + $0x2] sm:$0xff]
      %v2744 = vld [vmem:[%s1604 + $0xa] sm:$0xff]
      %v2745 = vld [vmem:[%s1604 + $0x1a] sm:$0xff]
      %v2746 = vld [vmem:[%s1604 + $0x22] sm:$0xff]
      %v2747 = vld [vmem:[%s1604 + $0x32] sm:$0xff]
      %v2748 = vld [vmem:[%s1604 + $0x3a] sm:$0xff]
      %v2749 = vld [vmem:[%s1604 + $0x4a] sm:$0xff]
      %v2750 = vld [vmem:[%s1604 + $0x52] sm:$0xff]
      %v2751 = vld [vmem:[%s1604 + $0x62] sm:$0xff]
      %v2752 = vld [vmem:[%s1604 + $0x6a] sm:$0xff]
      %v2753 = vld [vmem:[%s1604 + $0x7a] sm:$0xff]
      %v2754 = vld [vmem:[%s1604 + $0x82] sm:$0xff]
      %v2755 = vld [vmem:[%s1604 + $0x92] sm:$0xff]
      %v2756 = vld [vmem:[%s1604 + $0x9a] sm:$0xff]
      %v2757 = vld [vmem:[%s1604 + $0xaa] sm:$0xff]
      %v2758 = vld [vmem:[%s1604 + $0xb2] sm:$0xff]
      %v2759 = vld [vmem:[%s1604 + $0xc2] sm:$0xff]
      %v2760 = vld [vmem:[%s1604 + $0xca] sm:$0xff]
      %v2761 = vld [vmem:[%s1604 + $0xda] sm:$0xff]
      %v2762 = vld [vmem:[%s1604 + $0xe2] sm:$0xff]
      %v2763 = vld [vmem:[%s1604 + $0xf2] sm:$0xff]
      %v2764 = vld [vmem:[%s1604 + $0xfa] sm:$0xff]
      %v2765 = vld [vmem:[%s1604 + $0x10a] sm:$0xff]
      %v2766 = vld [vmem:[%s1604 + $0x112] sm:$0xff]
      %v2767 = vld [vmem:[%s1604 + $0x122] sm:$0xff]
      %v2768 = vld [vmem:[%s1604 + $0x12a] sm:$0xff]
      %v2769 = vld [vmem:[%s1604 + $0x13a] sm:$0xff]
      %v2770 = vld [vmem:[%s1604 + $0x142] sm:$0xff]
      %v2771 = vld [vmem:[%s1604 + $0x152] sm:$0xff]
      %v2772 = vld [vmem:[%s1604 + $0x15a] sm:$0xff]
      %v2773 = vld [vmem:[%s1604 + $0x16a] sm:$0xff]
      %v2774 = vld [vmem:[%s1604 + $0x172] sm:$0xff]
      %v2775 = vlaneseq
      %v2776 = vshrl.u32 %v2775, 7
      %v2777 = vsub.s32 2, %v2776
      %v2778 = vrot.slane %v1641, %v2777
      %v2779 = vmul.f32 %v2743, %v2778
      %v2780 = vmul.f32 %v2744, %v2778
      %v2781 = vmul.f32 %v2745, %v2778
      %v2782 = vmul.f32 %v2746, %v2778
      %v2783 = vmul.f32 %v2747, %v2778
      %v2784 = vmul.f32 %v2748, %v2778
      %v2785 = vmul.f32 %v2749, %v2778
      %v2786 = vmul.f32 %v2750, %v2778
      %v2787 = vmul.f32 %v2751, %v2778
      %v2788 = vmul.f32 %v2752, %v2778
      %v2789 = vmul.f32 %v2753, %v2778
      %v2790 = vmul.f32 %v2754, %v2778
      %v2791 = vmul.f32 %v2755, %v2778
      %v2792 = vmul.f32 %v2756, %v2778
      %v2793 = vmul.f32 %v2757, %v2778
      %v2794 = vmul.f32 %v2758, %v2778
      %v2795 = vmul.f32 %v2759, %v2778
      %v2796 = vmul.f32 %v2760, %v2778
      %v2797 = vmul.f32 %v2761, %v2778
      %v2798 = vmul.f32 %v2762, %v2778
      %v2799 = vmul.f32 %v2763, %v2778
      %v2800 = vmul.f32 %v2764, %v2778
      %v2801 = vmul.f32 %v2765, %v2778
      %v2802 = vmul.f32 %v2766, %v2778
      %v2803 = vmul.f32 %v2767, %v2778
      %v2804 = vmul.f32 %v2768, %v2778
      %v2805 = vmul.f32 %v2769, %v2778
      %v2806 = vmul.f32 %v2770, %v2778
      %v2807 = vmul.f32 %v2771, %v2778
      %v2808 = vmul.f32 %v2772, %v2778
      %v2809 = vmul.f32 %v2773, %v2778
      %v2810 = vmul.f32 %v2774, %v2778
      %v2811 = vadd.f32 %v2611, %v2779
      %v2812 = vadd.f32 %v2612, %v2780
      %v2813 = vadd.f32 %v2613, %v2781
      %v2814 = vadd.f32 %v2614, %v2782
      %v2815 = vadd.f32 %v2615, %v2783
      %v2816 = vadd.f32 %v2616, %v2784
      %v2817 = vadd.f32 %v2617, %v2785
      %v2818 = vadd.f32 %v2618, %v2786
      %v2819 = vadd.f32 %v2619, %v2787
      %v2820 = vadd.f32 %v2620, %v2788
      %v2821 = vadd.f32 %v2621, %v2789
      %v2822 = vadd.f32 %v2622, %v2790
      %v2823 = vadd.f32 %v2623, %v2791
      %v2824 = vadd.f32 %v2624, %v2792
      %v2825 = vadd.f32 %v2625, %v2793
      %v2826 = vadd.f32 %v2626, %v2794
      %v2827 = vadd.f32 %v2627, %v2795
      %v2828 = vadd.f32 %v2628, %v2796
      %v2829 = vadd.f32 %v2629, %v2797
      %v2830 = vadd.f32 %v2630, %v2798
      %v2831 = vadd.f32 %v2631, %v2799
      %v2832 = vadd.f32 %v2632, %v2800
      %v2833 = vadd.f32 %v2633, %v2801
      %v2834 = vadd.f32 %v2634, %v2802
      %v2835 = vadd.f32 %v2635, %v2803
      %v2836 = vadd.f32 %v2636, %v2804
      %v2837 = vadd.f32 %v2637, %v2805
      %v2838 = vadd.f32 %v2638, %v2806
      %v2839 = vadd.f32 %v2639, %v2807
      %v2840 = vadd.f32 %v2640, %v2808
      %v2841 = vadd.f32 %v2641, %v2809
      %v2842 = vadd.f32 %v2642, %v2810
      %s2843 = scalar_lea.vmem [#allocation2], 48
      %v2844 = vld [vmem:[%s2843] sm:$0xff]
      %v2845 = vld [vmem:[%s2843 + $0x8] sm:$0xff]
      %v2846 = vld [vmem:[%s2843 + $0x18] sm:$0xff]
      %v2847 = vld [vmem:[%s2843 + $0x20] sm:$0xff]
      %v2848 = vld [vmem:[%s2843 + $0x30] sm:$0xff]
      %v2849 = vld [vmem:[%s2843 + $0x38] sm:$0xff]
      %v2850 = vld [vmem:[%s2843 + $0x48] sm:$0xff]
      %v2851 = vld [vmem:[%s2843 + $0x50] sm:$0xff]
      %v2852 = vld [vmem:[%s2843 + $0x60] sm:$0xff]
      %v2853 = vld [vmem:[%s2843 + $0x68] sm:$0xff]
      %v2854 = vld [vmem:[%s2843 + $0x78] sm:$0xff]
      %v2855 = vld [vmem:[%s2843 + $0x80] sm:$0xff]
      %v2856 = vld [vmem:[%s2843 + $0x90] sm:$0xff]
      %v2857 = vld [vmem:[%s2843 + $0x98] sm:$0xff]
      %v2858 = vld [vmem:[%s2843 + $0xa8] sm:$0xff]
      %v2859 = vld [vmem:[%s2843 + $0xb0] sm:$0xff]
      %v2860 = vld [vmem:[%s2843 + $0xc0] sm:$0xff]
      %v2861 = vld [vmem:[%s2843 + $0xc8] sm:$0xff]
      %v2862 = vld [vmem:[%s2843 + $0xd8] sm:$0xff]
      %v2863 = vld [vmem:[%s2843 + $0xe0] sm:$0xff]
      %v2864 = vld [vmem:[%s2843 + $0xf0] sm:$0xff]
      %v2865 = vld [vmem:[%s2843 + $0xf8] sm:$0xff]
      %v2866 = vld [vmem:[%s2843 + $0x108] sm:$0xff]
      %v2867 = vld [vmem:[%s2843 + $0x110] sm:$0xff]
      %v2868 = vld [vmem:[%s2843 + $0x120] sm:$0xff]
      %v2869 = vld [vmem:[%s2843 + $0x128] sm:$0xff]
      %v2870 = vld [vmem:[%s2843 + $0x138] sm:$0xff]
      %v2871 = vld [vmem:[%s2843 + $0x140] sm:$0xff]
      %v2872 = vld [vmem:[%s2843 + $0x150] sm:$0xff]
      %v2873 = vld [vmem:[%s2843 + $0x158] sm:$0xff]
      %v2874 = vld [vmem:[%s2843 + $0x168] sm:$0xff]
      %v2875 = vld [vmem:[%s2843 + $0x170] sm:$0xff]
      %v2876 = vlaneseq
      %v2877 = vshrl.u32 %v2876, 7
      %v2878 = vsub.s32 0, %v2877
      %v2879 = vrot.slane %v1639, %v2878
      %v2880 = vmul.f32 %v2844, %v2879
      %v2881 = vmul.f32 %v2845, %v2879
      %v2882 = vmul.f32 %v2846, %v2879
      %v2883 = vmul.f32 %v2847, %v2879
      %v2884 = vmul.f32 %v2848, %v2879
      %v2885 = vmul.f32 %v2849, %v2879
      %v2886 = vmul.f32 %v2850, %v2879
      %v2887 = vmul.f32 %v2851, %v2879
      %v2888 = vmul.f32 %v2852, %v2879
      %v2889 = vmul.f32 %v2853, %v2879
      %v2890 = vmul.f32 %v2854, %v2879
      %v2891 = vmul.f32 %v2855, %v2879
      %v2892 = vmul.f32 %v2856, %v2879
      %v2893 = vmul.f32 %v2857, %v2879
      %v2894 = vmul.f32 %v2858, %v2879
      %v2895 = vmul.f32 %v2859, %v2879
      %v2896 = vmul.f32 %v2860, %v2879
      %v2897 = vmul.f32 %v2861, %v2879
      %v2898 = vmul.f32 %v2862, %v2879
      %v2899 = vmul.f32 %v2863, %v2879
      %v2900 = vmul.f32 %v2864, %v2879
      %v2901 = vmul.f32 %v2865, %v2879
      %v2902 = vmul.f32 %v2866, %v2879
      %v2903 = vmul.f32 %v2867, %v2879
      %v2904 = vmul.f32 %v2868, %v2879
      %v2905 = vmul.f32 %v2869, %v2879
      %v2906 = vmul.f32 %v2870, %v2879
      %v2907 = vmul.f32 %v2871, %v2879
      %v2908 = vmul.f32 %v2872, %v2879
      %v2909 = vmul.f32 %v2873, %v2879
      %v2910 = vmul.f32 %v2874, %v2879
      %v2911 = vmul.f32 %v2875, %v2879
      %v2912 = vadd.f32 %v2711, %v2880
      %v2913 = vadd.f32 %v2712, %v2881
      %v2914 = vadd.f32 %v2713, %v2882
      %v2915 = vadd.f32 %v2714, %v2883
      %v2916 = vadd.f32 %v2715, %v2884
      %v2917 = vadd.f32 %v2716, %v2885
      %v2918 = vadd.f32 %v2717, %v2886
      %v2919 = vadd.f32 %v2718, %v2887
      %v2920 = vadd.f32 %v2719, %v2888
      %v2921 = vadd.f32 %v2720, %v2889
      %v2922 = vadd.f32 %v2721, %v2890
      %v2923 = vadd.f32 %v2722, %v2891
      %v2924 = vadd.f32 %v2723, %v2892
      %v2925 = vadd.f32 %v2724, %v2893
      %v2926 = vadd.f32 %v2725, %v2894
      %v2927 = vadd.f32 %v2726, %v2895
      %v2928 = vadd.f32 %v2727, %v2896
      %v2929 = vadd.f32 %v2728, %v2897
      %v2930 = vadd.f32 %v2729, %v2898
      %v2931 = vadd.f32 %v2730, %v2899
      %v2932 = vadd.f32 %v2731, %v2900
      %v2933 = vadd.f32 %v2732, %v2901
      %v2934 = vadd.f32 %v2733, %v2902
      %v2935 = vadd.f32 %v2734, %v2903
      %v2936 = vadd.f32 %v2735, %v2904
      %v2937 = vadd.f32 %v2736, %v2905
      %v2938 = vadd.f32 %v2737, %v2906
      %v2939 = vadd.f32 %v2738, %v2907
      %v2940 = vadd.f32 %v2739, %v2908
      %v2941 = vadd.f32 %v2740, %v2909
      %v2942 = vadd.f32 %v2741, %v2910
      %v2943 = vadd.f32 %v2742, %v2911
      %s2944 = scalar_lea.vmem [#allocation3], 48
      %v2945 = vld [vmem:[%s2944] sm:$0xff]
      %v2946 = vld [vmem:[%s2944 + $0x8] sm:$0xff]
      %v2947 = vld [vmem:[%s2944 + $0x18] sm:$0xff]
      %v2948 = vld [vmem:[%s2944 + $0x20] sm:$0xff]
      %v2949 = vld [vmem:[%s2944 + $0x30] sm:$0xff]
      %v2950 = vld [vmem:[%s2944 + $0x38] sm:$0xff]
      %v2951 = vld [vmem:[%s2944 + $0x48] sm:$0xff]
      %v2952 = vld [vmem:[%s2944 + $0x50] sm:$0xff]
      %v2953 = vld [vmem:[%s2944 + $0x60] sm:$0xff]
      %v2954 = vld [vmem:[%s2944 + $0x68] sm:$0xff]
      %v2955 = vld [vmem:[%s2944 + $0x78] sm:$0xff]
      %v2956 = vld [vmem:[%s2944 + $0x80] sm:$0xff]
      %v2957 = vld [vmem:[%s2944 + $0x90] sm:$0xff]
      %v2958 = vld [vmem:[%s2944 + $0x98] sm:$0xff]
      %v2959 = vld [vmem:[%s2944 + $0xa8] sm:$0xff]
      %v2960 = vld [vmem:[%s2944 + $0xb0] sm:$0xff]
      %v2961 = vld [vmem:[%s2944 + $0xc0] sm:$0xff]
      %v2962 = vld [vmem:[%s2944 + $0xc8] sm:$0xff]
      %v2963 = vld [vmem:[%s2944 + $0xd8] sm:$0xff]
      %v2964 = vld [vmem:[%s2944 + $0xe0] sm:$0xff]
      %v2965 = vld [vmem:[%s2944 + $0xf0] sm:$0xff]
      %v2966 = vld [vmem:[%s2944 + $0xf8] sm:$0xff]
      %v2967 = vld [vmem:[%s2944 + $0x108] sm:$0xff]
      %v2968 = vld [vmem:[%s2944 + $0x110] sm:$0xff]
      %v2969 = vld [vmem:[%s2944 + $0x120] sm:$0xff]
      %v2970 = vld [vmem:[%s2944 + $0x128] sm:$0xff]
      %v2971 = vld [vmem:[%s2944 + $0x138] sm:$0xff]
      %v2972 = vld [vmem:[%s2944 + $0x140] sm:$0xff]
      %v2973 = vld [vmem:[%s2944 + $0x150] sm:$0xff]
      %v2974 = vld [vmem:[%s2944 + $0x158] sm:$0xff]
      %v2975 = vld [vmem:[%s2944 + $0x168] sm:$0xff]
      %v2976 = vld [vmem:[%s2944 + $0x170] sm:$0xff]
      %v2977 = vlaneseq
      %v2978 = vshrl.u32 %v2977, 7
      %v2979 = vsub.s32 0, %v2978
      %v2980 = vrot.slane %v1642, %v2979
      %v2981 = vmul.f32 %v2945, %v2980
      %v2982 = vmul.f32 %v2946, %v2980
      %v2983 = vmul.f32 %v2947, %v2980
      %v2984 = vmul.f32 %v2948, %v2980
      %v2985 = vmul.f32 %v2949, %v2980
      %v2986 = vmul.f32 %v2950, %v2980
      %v2987 = vmul.f32 %v2951, %v2980
      %v2988 = vmul.f32 %v2952, %v2980
      %v2989 = vmul.f32 %v2953, %v2980
      %v2990 = vmul.f32 %v2954, %v2980
      %v2991 = vmul.f32 %v2955, %v2980
      %v2992 = vmul.f32 %v2956, %v2980
      %v2993 = vmul.f32 %v2957, %v2980
      %v2994 = vmul.f32 %v2958, %v2980
      %v2995 = vmul.f32 %v2959, %v2980
      %v2996 = vmul.f32 %v2960, %v2980
      %v2997 = vmul.f32 %v2961, %v2980
      %v2998 = vmul.f32 %v2962, %v2980
      %v2999 = vmul.f32 %v2963, %v2980
      %v3000 = vmul.f32 %v2964, %v2980
      %v3001 = vmul.f32 %v2965, %v2980
      %v3002 = vmul.f32 %v2966, %v2980
      %v3003 = vmul.f32 %v2967, %v2980
      %v3004 = vmul.f32 %v2968, %v2980
      %v3005 = vmul.f32 %v2969, %v2980
      %v3006 = vmul.f32 %v2970, %v2980
      %v3007 = vmul.f32 %v2971, %v2980
      %v3008 = vmul.f32 %v2972, %v2980
      %v3009 = vmul.f32 %v2973, %v2980
      %v3010 = vmul.f32 %v2974, %v2980
      %v3011 = vmul.f32 %v2975, %v2980
      %v3012 = vmul.f32 %v2976, %v2980
      %v3013 = vadd.f32 %v2811, %v2981
      %v3014 = vadd.f32 %v2812, %v2982
      %v3015 = vadd.f32 %v2813, %v2983
      %v3016 = vadd.f32 %v2814, %v2984
      %v3017 = vadd.f32 %v2815, %v2985
      %v3018 = vadd.f32 %v2816, %v2986
      %v3019 = vadd.f32 %v2817, %v2987
      %v3020 = vadd.f32 %v2818, %v2988
      %v3021 = vadd.f32 %v2819, %v2989
      %v3022 = vadd.f32 %v2820, %v2990
      %v3023 = vadd.f32 %v2821, %v2991
      %v3024 = vadd.f32 %v2822, %v2992
      %v3025 = vadd.f32 %v2823, %v2993
      %v3026 = vadd.f32 %v2824, %v2994
      %v3027 = vadd.f32 %v2825, %v2995
      %v3028 = vadd.f32 %v2826, %v2996
      %v3029 = vadd.f32 %v2827, %v2997
      %v3030 = vadd.f32 %v2828, %v2998
      %v3031 = vadd.f32 %v2829, %v2999
      %v3032 = vadd.f32 %v2830, %v3000
      %v3033 = vadd.f32 %v2831, %v3001
      %v3034 = vadd.f32 %v2832, %v3002
      %v3035 = vadd.f32 %v2833, %v3003
      %v3036 = vadd.f32 %v2834, %v3004
      %v3037 = vadd.f32 %v2835, %v3005
      %v3038 = vadd.f32 %v2836, %v3006
      %v3039 = vadd.f32 %v2837, %v3007
      %v3040 = vadd.f32 %v2838, %v3008
      %v3041 = vadd.f32 %v2839, %v3009
      %v3042 = vadd.f32 %v2840, %v3010
      %v3043 = vadd.f32 %v2841, %v3011
      %v3044 = vadd.f32 %v2842, %v3012
      %v3045 = vld [vmem:[%s2843 + $0x1] sm:$0xff]
      %v3046 = vld [vmem:[%s2843 + $0x9] sm:$0xff]
      %v3047 = vld [vmem:[%s2843 + $0x19] sm:$0xff]
      %v3048 = vld [vmem:[%s2843 + $0x21] sm:$0xff]
      %v3049 = vld [vmem:[%s2843 + $0x31] sm:$0xff]
      %v3050 = vld [vmem:[%s2843 + $0x39] sm:$0xff]
      %v3051 = vld [vmem:[%s2843 + $0x49] sm:$0xff]
      %v3052 = vld [vmem:[%s2843 + $0x51] sm:$0xff]
      %v3053 = vld [vmem:[%s2843 + $0x61] sm:$0xff]
      %v3054 = vld [vmem:[%s2843 + $0x69] sm:$0xff]
      %v3055 = vld [vmem:[%s2843 + $0x79] sm:$0xff]
      %v3056 = vld [vmem:[%s2843 + $0x81] sm:$0xff]
      %v3057 = vld [vmem:[%s2843 + $0x91] sm:$0xff]
      %v3058 = vld [vmem:[%s2843 + $0x99] sm:$0xff]
      %v3059 = vld [vmem:[%s2843 + $0xa9] sm:$0xff]
      %v3060 = vld [vmem:[%s2843 + $0xb1] sm:$0xff]
      %v3061 = vld [vmem:[%s2843 + $0xc1] sm:$0xff]
      %v3062 = vld [vmem:[%s2843 + $0xc9] sm:$0xff]
      %v3063 = vld [vmem:[%s2843 + $0xd9] sm:$0xff]
      %v3064 = vld [vmem:[%s2843 + $0xe1] sm:$0xff]
      %v3065 = vld [vmem:[%s2843 + $0xf1] sm:$0xff]
      %v3066 = vld [vmem:[%s2843 + $0xf9] sm:$0xff]
      %v3067 = vld [vmem:[%s2843 + $0x109] sm:$0xff]
      %v3068 = vld [vmem:[%s2843 + $0x111] sm:$0xff]
      %v3069 = vld [vmem:[%s2843 + $0x121] sm:$0xff]
      %v3070 = vld [vmem:[%s2843 + $0x129] sm:$0xff]
      %v3071 = vld [vmem:[%s2843 + $0x139] sm:$0xff]
      %v3072 = vld [vmem:[%s2843 + $0x141] sm:$0xff]
      %v3073 = vld [vmem:[%s2843 + $0x151] sm:$0xff]
      %v3074 = vld [vmem:[%s2843 + $0x159] sm:$0xff]
      %v3075 = vld [vmem:[%s2843 + $0x169] sm:$0xff]
      %v3076 = vld [vmem:[%s2843 + $0x171] sm:$0xff]
      %v3077 = vlaneseq
      %v3078 = vshrl.u32 %v3077, 7
      %v3079 = vsub.s32 1, %v3078
      %v3080 = vrot.slane %v1639, %v3079
      %v3081 = vmul.f32 %v3045, %v3080
      %v3082 = vmul.f32 %v3046, %v3080
      %v3083 = vmul.f32 %v3047, %v3080
      %v3084 = vmul.f32 %v3048, %v3080
      %v3085 = vmul.f32 %v3049, %v3080
      %v3086 = vmul.f32 %v3050, %v3080
      %v3087 = vmul.f32 %v3051, %v3080
      %v3088 = vmul.f32 %v3052, %v3080
      %v3089 = vmul.f32 %v3053, %v3080
      %v3090 = vmul.f32 %v3054, %v3080
      %v3091 = vmul.f32 %v3055, %v3080
      %v3092 = vmul.f32 %v3056, %v3080
      %v3093 = vmul.f32 %v3057, %v3080
      %v3094 = vmul.f32 %v3058, %v3080
      %v3095 = vmul.f32 %v3059, %v3080
      %v3096 = vmul.f32 %v3060, %v3080
      %v3097 = vmul.f32 %v3061, %v3080
      %v3098 = vmul.f32 %v3062, %v3080
      %v3099 = vmul.f32 %v3063, %v3080
      %v3100 = vmul.f32 %v3064, %v3080
      %v3101 = vmul.f32 %v3065, %v3080
      %v3102 = vmul.f32 %v3066, %v3080
      %v3103 = vmul.f32 %v3067, %v3080
      %v3104 = vmul.f32 %v3068, %v3080
      %v3105 = vmul.f32 %v3069, %v3080
      %v3106 = vmul.f32 %v3070, %v3080
      %v3107 = vmul.f32 %v3071, %v3080
      %v3108 = vmul.f32 %v3072, %v3080
      %v3109 = vmul.f32 %v3073, %v3080
      %v3110 = vmul.f32 %v3074, %v3080
      %v3111 = vmul.f32 %v3075, %v3080
      %v3112 = vmul.f32 %v3076, %v3080
      %v3113 = vadd.f32 %v2912, %v3081
      %v3114 = vadd.f32 %v2913, %v3082
      %v3115 = vadd.f32 %v2914, %v3083
      %v3116 = vadd.f32 %v2915, %v3084
      %v3117 = vadd.f32 %v2916, %v3085
      %v3118 = vadd.f32 %v2917, %v3086
      %v3119 = vadd.f32 %v2918, %v3087
      %v3120 = vadd.f32 %v2919, %v3088
      %v3121 = vadd.f32 %v2920, %v3089
      %v3122 = vadd.f32 %v2921, %v3090
      %v3123 = vadd.f32 %v2922, %v3091
      %v3124 = vadd.f32 %v2923, %v3092
      %v3125 = vadd.f32 %v2924, %v3093
      %v3126 = vadd.f32 %v2925, %v3094
      %v3127 = vadd.f32 %v2926, %v3095
      %v3128 = vadd.f32 %v2927, %v3096
      %v3129 = vadd.f32 %v2928, %v3097
      %v3130 = vadd.f32 %v2929, %v3098
      %v3131 = vadd.f32 %v2930, %v3099
      %v3132 = vadd.f32 %v2931, %v3100
      %v3133 = vadd.f32 %v2932, %v3101
      %v3134 = vadd.f32 %v2933, %v3102
      %v3135 = vadd.f32 %v2934, %v3103
      %v3136 = vadd.f32 %v2935, %v3104
      %v3137 = vadd.f32 %v2936, %v3105
      %v3138 = vadd.f32 %v2937, %v3106
      %v3139 = vadd.f32 %v2938, %v3107
      %v3140 = vadd.f32 %v2939, %v3108
      %v3141 = vadd.f32 %v2940, %v3109
      %v3142 = vadd.f32 %v2941, %v3110
      %v3143 = vadd.f32 %v2942, %v3111
      %v3144 = vadd.f32 %v2943, %v3112
      %v3145 = vld [vmem:[%s2944 + $0x1] sm:$0xff]
      %v3146 = vld [vmem:[%s2944 + $0x9] sm:$0xff]
      %v3147 = vld [vmem:[%s2944 + $0x19] sm:$0xff]
      %v3148 = vld [vmem:[%s2944 + $0x21] sm:$0xff]
      %v3149 = vld [vmem:[%s2944 + $0x31] sm:$0xff]
      %v3150 = vld [vmem:[%s2944 + $0x39] sm:$0xff]
      %v3151 = vld [vmem:[%s2944 + $0x49] sm:$0xff]
      %v3152 = vld [vmem:[%s2944 + $0x51] sm:$0xff]
      %v3153 = vld [vmem:[%s2944 + $0x61] sm:$0xff]
      %v3154 = vld [vmem:[%s2944 + $0x69] sm:$0xff]
      %v3155 = vld [vmem:[%s2944 + $0x79] sm:$0xff]
      %v3156 = vld [vmem:[%s2944 + $0x81] sm:$0xff]
      %v3157 = vld [vmem:[%s2944 + $0x91] sm:$0xff]
      %v3158 = vld [vmem:[%s2944 + $0x99] sm:$0xff]
      %v3159 = vld [vmem:[%s2944 + $0xa9] sm:$0xff]
      %v3160 = vld [vmem:[%s2944 + $0xb1] sm:$0xff]
      %v3161 = vld [vmem:[%s2944 + $0xc1] sm:$0xff]
      %v3162 = vld [vmem:[%s2944 + $0xc9] sm:$0xff]
      %v3163 = vld [vmem:[%s2944 + $0xd9] sm:$0xff]
      %v3164 = vld [vmem:[%s2944 + $0xe1] sm:$0xff]
      %v3165 = vld [vmem:[%s2944 + $0xf1] sm:$0xff]
      %v3166 = vld [vmem:[%s2944 + $0xf9] sm:$0xff]
      %v3167 = vld [vmem:[%s2944 + $0x109] sm:$0xff]
      %v3168 = vld [vmem:[%s2944 + $0x111] sm:$0xff]
      %v3169 = vld [vmem:[%s2944 + $0x121] sm:$0xff]
      %v3170 = vld [vmem:[%s2944 + $0x129] sm:$0xff]
      %v3171 = vld [vmem:[%s2944 + $0x139] sm:$0xff]
      %v3172 = vld [vmem:[%s2944 + $0x141] sm:$0xff]
      %v3173 = vld [vmem:[%s2944 + $0x151] sm:$0xff]
      %v3174 = vld [vmem:[%s2944 + $0x159] sm:$0xff]
      %v3175 = vld [vmem:[%s2944 + $0x169] sm:$0xff]
      %v3176 = vld [vmem:[%s2944 + $0x171] sm:$0xff]
      %v3177 = vlaneseq
      %v3178 = vshrl.u32 %v3177, 7
      %v3179 = vsub.s32 1, %v3178
      %v3180 = vrot.slane %v1642, %v3179
      %v3181 = vmul.f32 %v3145, %v3180
      %v3182 = vmul.f32 %v3146, %v3180
      %v3183 = vmul.f32 %v3147, %v3180
      %v3184 = vmul.f32 %v3148, %v3180
      %v3185 = vmul.f32 %v3149, %v3180
      %v3186 = vmul.f32 %v3150, %v3180
      %v3187 = vmul.f32 %v3151, %v3180
      %v3188 = vmul.f32 %v3152, %v3180
      %v3189 = vmul.f32 %v3153, %v3180
      %v3190 = vmul.f32 %v3154, %v3180
      %v3191 = vmul.f32 %v3155, %v3180
      %v3192 = vmul.f32 %v3156, %v3180
      %v3193 = vmul.f32 %v3157, %v3180
      %v3194 = vmul.f32 %v3158, %v3180
      %v3195 = vmul.f32 %v3159, %v3180
      %v3196 = vmul.f32 %v3160, %v3180
      %v3197 = vmul.f32 %v3161, %v3180
      %v3198 = vmul.f32 %v3162, %v3180
      %v3199 = vmul.f32 %v3163, %v3180
      %v3200 = vmul.f32 %v3164, %v3180
      %v3201 = vmul.f32 %v3165, %v3180
      %v3202 = vmul.f32 %v3166, %v3180
      %v3203 = vmul.f32 %v3167, %v3180
      %v3204 = vmul.f32 %v3168, %v3180
      %v3205 = vmul.f32 %v3169, %v3180
      %v3206 = vmul.f32 %v3170, %v3180
      %v3207 = vmul.f32 %v3171, %v3180
      %v3208 = vmul.f32 %v3172, %v3180
      %v3209 = vmul.f32 %v3173, %v3180
      %v3210 = vmul.f32 %v3174, %v3180
      %v3211 = vmul.f32 %v3175, %v3180
      %v3212 = vmul.f32 %v3176, %v3180
      %v3213 = vadd.f32 %v3013, %v3181
      %v3214 = vadd.f32 %v3014, %v3182
      %v3215 = vadd.f32 %v3015, %v3183
      %v3216 = vadd.f32 %v3016, %v3184
      %v3217 = vadd.f32 %v3017, %v3185
      %v3218 = vadd.f32 %v3018, %v3186
      %v3219 = vadd.f32 %v3019, %v3187
      %v3220 = vadd.f32 %v3020, %v3188
      %v3221 = vadd.f32 %v3021, %v3189
      %v3222 = vadd.f32 %v3022, %v3190
      %v3223 = vadd.f32 %v3023, %v3191
      %v3224 = vadd.f32 %v3024, %v3192
      %v3225 = vadd.f32 %v3025, %v3193
      %v3226 = vadd.f32 %v3026, %v3194
      %v3227 = vadd.f32 %v3027, %v3195
      %v3228 = vadd.f32 %v3028, %v3196
      %v3229 = vadd.f32 %v3029, %v3197
      %v3230 = vadd.f32 %v3030, %v3198
      %v3231 = vadd.f32 %v3031, %v3199
      %v3232 = vadd.f32 %v3032, %v3200
      %v3233 = vadd.f32 %v3033, %v3201
      %v3234 = vadd.f32 %v3034, %v3202
      %v3235 = vadd.f32 %v3035, %v3203
      %v3236 = vadd.f32 %v3036, %v3204
      %v3237 = vadd.f32 %v3037, %v3205
      %v3238 = vadd.f32 %v3038, %v3206
      %v3239 = vadd.f32 %v3039, %v3207
      %v3240 = vadd.f32 %v3040, %v3208
      %v3241 = vadd.f32 %v3041, %v3209
      %v3242 = vadd.f32 %v3042, %v3210
      %v3243 = vadd.f32 %v3043, %v3211
      %v3244 = vadd.f32 %v3044, %v3212
      %v3245 = vld [vmem:[%s2843 + $0x2] sm:$0xff]
      %v3246 = vld [vmem:[%s2843 + $0xa] sm:$0xff]
      %v3247 = vld [vmem:[%s2843 + $0x1a] sm:$0xff]
      %v3248 = vld [vmem:[%s2843 + $0x22] sm:$0xff]
      %v3249 = vld [vmem:[%s2843 + $0x32] sm:$0xff]
      %v3250 = vld [vmem:[%s2843 + $0x3a] sm:$0xff]
      %v3251 = vld [vmem:[%s2843 + $0x4a] sm:$0xff]
      %v3252 = vld [vmem:[%s2843 + $0x52] sm:$0xff]
      %v3253 = vld [vmem:[%s2843 + $0x62] sm:$0xff]
      %v3254 = vld [vmem:[%s2843 + $0x6a] sm:$0xff]
      %v3255 = vld [vmem:[%s2843 + $0x7a] sm:$0xff]
      %v3256 = vld [vmem:[%s2843 + $0x82] sm:$0xff]
      %v3257 = vld [vmem:[%s2843 + $0x92] sm:$0xff]
      %v3258 = vld [vmem:[%s2843 + $0x9a] sm:$0xff]
      %v3259 = vld [vmem:[%s2843 + $0xaa] sm:$0xff]
      %v3260 = vld [vmem:[%s2843 + $0xb2] sm:$0xff]
      %v3261 = vld [vmem:[%s2843 + $0xc2] sm:$0xff]
      %v3262 = vld [vmem:[%s2843 + $0xca] sm:$0xff]
      %v3263 = vld [vmem:[%s2843 + $0xda] sm:$0xff]
      %v3264 = vld [vmem:[%s2843 + $0xe2] sm:$0xff]
      %v3265 = vld [vmem:[%s2843 + $0xf2] sm:$0xff]
      %v3266 = vld [vmem:[%s2843 + $0xfa] sm:$0xff]
      %v3267 = vld [vmem:[%s2843 + $0x10a] sm:$0xff]
      %v3268 = vld [vmem:[%s2843 + $0x112] sm:$0xff]
      %v3269 = vld [vmem:[%s2843 + $0x122] sm:$0xff]
      %v3270 = vld [vmem:[%s2843 + $0x12a] sm:$0xff]
      %v3271 = vld [vmem:[%s2843 + $0x13a] sm:$0xff]
      %v3272 = vld [vmem:[%s2843 + $0x142] sm:$0xff]
      %v3273 = vld [vmem:[%s2843 + $0x152] sm:$0xff]
      %v3274 = vld [vmem:[%s2843 + $0x15a] sm:$0xff]
      %v3275 = vld [vmem:[%s2843 + $0x16a] sm:$0xff]
      %v3276 = vld [vmem:[%s2843 + $0x172] sm:$0xff]
      %v3277 = vlaneseq
      %v3278 = vshrl.u32 %v3277, 7
      %v3279 = vsub.s32 2, %v3278
      %v3280 = vrot.slane %v1639, %v3279
      %v3281 = vmul.f32 %v3245, %v3280
      %v3282 = vmul.f32 %v3246, %v3280
      %v3283 = vmul.f32 %v3247, %v3280
      %v3284 = vmul.f32 %v3248, %v3280
      %v3285 = vmul.f32 %v3249, %v3280
      %v3286 = vmul.f32 %v3250, %v3280
      %v3287 = vmul.f32 %v3251, %v3280
      %v3288 = vmul.f32 %v3252, %v3280
      %v3289 = vmul.f32 %v3253, %v3280
      %v3290 = vmul.f32 %v3254, %v3280
      %v3291 = vmul.f32 %v3255, %v3280
      %v3292 = vmul.f32 %v3256, %v3280
      %v3293 = vmul.f32 %v3257, %v3280
      %v3294 = vmul.f32 %v3258, %v3280
      %v3295 = vmul.f32 %v3259, %v3280
      %v3296 = vmul.f32 %v3260, %v3280
      %v3297 = vmul.f32 %v3261, %v3280
      %v3298 = vmul.f32 %v3262, %v3280
      %v3299 = vmul.f32 %v3263, %v3280
      %v3300 = vmul.f32 %v3264, %v3280
      %v3301 = vmul.f32 %v3265, %v3280
      %v3302 = vmul.f32 %v3266, %v3280
      %v3303 = vmul.f32 %v3267, %v3280
      %v3304 = vmul.f32 %v3268, %v3280
      %v3305 = vmul.f32 %v3269, %v3280
      %v3306 = vmul.f32 %v3270, %v3280
      %v3307 = vmul.f32 %v3271, %v3280
      %v3308 = vmul.f32 %v3272, %v3280
      %v3309 = vmul.f32 %v3273, %v3280
      %v3310 = vmul.f32 %v3274, %v3280
      %v3311 = vmul.f32 %v3275, %v3280
      %v3312 = vmul.f32 %v3276, %v3280
      %v3313 = vadd.f32 %v3113, %v3281
      %v3314 = vadd.f32 %v3114, %v3282
      %v3315 = vadd.f32 %v3115, %v3283
      %v3316 = vadd.f32 %v3116, %v3284
      %v3317 = vadd.f32 %v3117, %v3285
      %v3318 = vadd.f32 %v3118, %v3286
      %v3319 = vadd.f32 %v3119, %v3287
      %v3320 = vadd.f32 %v3120, %v3288
      %v3321 = vadd.f32 %v3121, %v3289
      %v3322 = vadd.f32 %v3122, %v3290
      %v3323 = vadd.f32 %v3123, %v3291
      %v3324 = vadd.f32 %v3124, %v3292
      %v3325 = vadd.f32 %v3125, %v3293
      %v3326 = vadd.f32 %v3126, %v3294
      %v3327 = vadd.f32 %v3127, %v3295
      %v3328 = vadd.f32 %v3128, %v3296
      %v3329 = vadd.f32 %v3129, %v3297
      %v3330 = vadd.f32 %v3130, %v3298
      %v3331 = vadd.f32 %v3131, %v3299
      %v3332 = vadd.f32 %v3132, %v3300
      %v3333 = vadd.f32 %v3133, %v3301
      %v3334 = vadd.f32 %v3134, %v3302
      %v3335 = vadd.f32 %v3135, %v3303
      %v3336 = vadd.f32 %v3136, %v3304
      %v3337 = vadd.f32 %v3137, %v3305
      %v3338 = vadd.f32 %v3138, %v3306
      %v3339 = vadd.f32 %v3139, %v3307
      %v3340 = vadd.f32 %v3140, %v3308
      %v3341 = vadd.f32 %v3141, %v3309
      %v3342 = vadd.f32 %v3142, %v3310
      %v3343 = vadd.f32 %v3143, %v3311
      %v3344 = vadd.f32 %v3144, %v3312
      %v3345 = vld [vmem:[%s2944 + $0x2] sm:$0xff]
      %v3346 = vld [vmem:[%s2944 + $0xa] sm:$0xff]
      %v3347 = vld [vmem:[%s2944 + $0x1a] sm:$0xff]
      %v3348 = vld [vmem:[%s2944 + $0x22] sm:$0xff]
      %v3349 = vld [vmem:[%s2944 + $0x32] sm:$0xff]
      %v3350 = vld [vmem:[%s2944 + $0x3a] sm:$0xff]
      %v3351 = vld [vmem:[%s2944 + $0x4a] sm:$0xff]
      %v3352 = vld [vmem:[%s2944 + $0x52] sm:$0xff]
      %v3353 = vld [vmem:[%s2944 + $0x62] sm:$0xff]
      %v3354 = vld [vmem:[%s2944 + $0x6a] sm:$0xff]
      %v3355 = vld [vmem:[%s2944 + $0x7a] sm:$0xff]
      %v3356 = vld [vmem:[%s2944 + $0x82] sm:$0xff]
      %v3357 = vld [vmem:[%s2944 + $0x92] sm:$0xff]
      %v3358 = vld [vmem:[%s2944 + $0x9a] sm:$0xff]
      %v3359 = vld [vmem:[%s2944 + $0xaa] sm:$0xff]
      %v3360 = vld [vmem:[%s2944 + $0xb2] sm:$0xff]
      %v3361 = vld [vmem:[%s2944 + $0xc2] sm:$0xff]
      %v3362 = vld [vmem:[%s2944 + $0xca] sm:$0xff]
      %v3363 = vld [vmem:[%s2944 + $0xda] sm:$0xff]
      %v3364 = vld [vmem:[%s2944 + $0xe2] sm:$0xff]
      %v3365 = vld [vmem:[%s2944 + $0xf2] sm:$0xff]
      %v3366 = vld [vmem:[%s2944 + $0xfa] sm:$0xff]
      %v3367 = vld [vmem:[%s2944 + $0x10a] sm:$0xff]
      %v3368 = vld [vmem:[%s2944 + $0x112] sm:$0xff]
      %v3369 = vld [vmem:[%s2944 + $0x122] sm:$0xff]
      %v3370 = vld [vmem:[%s2944 + $0x12a] sm:$0xff]
      %v3371 = vld [vmem:[%s2944 + $0x13a] sm:$0xff]
      %v3372 = vld [vmem:[%s2944 + $0x142] sm:$0xff]
      %v3373 = vld [vmem:[%s2944 + $0x152] sm:$0xff]
      %v3374 = vld [vmem:[%s2944 + $0x15a] sm:$0xff]
      %v3375 = vld [vmem:[%s2944 + $0x16a] sm:$0xff]
      %v3376 = vld [vmem:[%s2944 + $0x172] sm:$0xff]
      %v3377 = vlaneseq
      %v3378 = vshrl.u32 %v3377, 7
      %v3379 = vsub.s32 2, %v3378
      %v3380 = vrot.slane %v1642, %v3379
      %v3381 = vmul.f32 %v3345, %v3380
      %v3382 = vmul.f32 %v3346, %v3380
      %v3383 = vmul.f32 %v3347, %v3380
      %v3384 = vmul.f32 %v3348, %v3380
      %v3385 = vmul.f32 %v3349, %v3380
      %v3386 = vmul.f32 %v3350, %v3380
      %v3387 = vmul.f32 %v3351, %v3380
      %v3388 = vmul.f32 %v3352, %v3380
      %v3389 = vmul.f32 %v3353, %v3380
      %v3390 = vmul.f32 %v3354, %v3380
      %v3391 = vmul.f32 %v3355, %v3380
      %v3392 = vmul.f32 %v3356, %v3380
      %v3393 = vmul.f32 %v3357, %v3380
      %v3394 = vmul.f32 %v3358, %v3380
      %v3395 = vmul.f32 %v3359, %v3380
      %v3396 = vmul.f32 %v3360, %v3380
      %v3397 = vmul.f32 %v3361, %v3380
      %v3398 = vmul.f32 %v3362, %v3380
      %v3399 = vmul.f32 %v3363, %v3380
      %v3400 = vmul.f32 %v3364, %v3380
      %v3401 = vmul.f32 %v3365, %v3380
      %v3402 = vmul.f32 %v3366, %v3380
      %v3403 = vmul.f32 %v3367, %v3380
      %v3404 = vmul.f32 %v3368, %v3380
      %v3405 = vmul.f32 %v3369, %v3380
      %v3406 = vmul.f32 %v3370, %v3380
      %v3407 = vmul.f32 %v3371, %v3380
      %v3408 = vmul.f32 %v3372, %v3380
      %v3409 = vmul.f32 %v3373, %v3380
      %v3410 = vmul.f32 %v3374, %v3380
      %v3411 = vmul.f32 %v3375, %v3380
      %v3412 = vmul.f32 %v3376, %v3380
      %v3413 = vadd.f32 %v3213, %v3381
      %v3414 = vadd.f32 %v3214, %v3382
      %v3415 = vadd.f32 %v3215, %v3383
      %v3416 = vadd.f32 %v3216, %v3384
      %v3417 = vadd.f32 %v3217, %v3385
      %v3418 = vadd.f32 %v3218, %v3386
      %v3419 = vadd.f32 %v3219, %v3387
      %v3420 = vadd.f32 %v3220, %v3388
      %v3421 = vadd.f32 %v3221, %v3389
      %v3422 = vadd.f32 %v3222, %v3390
      %v3423 = vadd.f32 %v3223, %v3391
      %v3424 = vadd.f32 %v3224, %v3392
      %v3425 = vadd.f32 %v3225, %v3393
      %v3426 = vadd.f32 %v3226, %v3394
      %v3427 = vadd.f32 %v3227, %v3395
      %v3428 = vadd.f32 %v3228, %v3396
      %v3429 = vadd.f32 %v3229, %v3397
      %v3430 = vadd.f32 %v3230, %v3398
      %v3431 = vadd.f32 %v3231, %v3399
      %v3432 = vadd.f32 %v3232, %v3400
      %v3433 = vadd.f32 %v3233, %v3401
      %v3434 = vadd.f32 %v3234, %v3402
      %v3435 = vadd.f32 %v3235, %v3403
      %v3436 = vadd.f32 %v3236, %v3404
      %v3437 = vadd.f32 %v3237, %v3405
      %v3438 = vadd.f32 %v3238, %v3406
      %v3439 = vadd.f32 %v3239, %v3407
      %v3440 = vadd.f32 %v3240, %v3408
      %v3441 = vadd.f32 %v3241, %v3409
      %v3442 = vadd.f32 %v3242, %v3410
      %v3443 = vadd.f32 %v3243, %v3411
      %v3444 = vadd.f32 %v3244, %v3412
      %v3445 = vmul.f32 %v3313, 0.5
      %v3446 = vmul.f32 %v3314, 0.5
      %v3447 = vmul.f32 %v3315, 0.5
      %v3448 = vmul.f32 %v3316, 0.5
      %v3449 = vmul.f32 %v3317, 0.5
      %v3450 = vmul.f32 %v3318, 0.5
      %v3451 = vmul.f32 %v3319, 0.5
      %v3452 = vmul.f32 %v3320, 0.5
      %v3453 = vmul.f32 %v3321, 0.5
      %v3454 = vmul.f32 %v3322, 0.5
      %v3455 = vmul.f32 %v3323, 0.5
      %v3456 = vmul.f32 %v3324, 0.5
      %v3457 = vmul.f32 %v3325, 0.5
      %v3458 = vmul.f32 %v3326, 0.5
      %v3459 = vmul.f32 %v3327, 0.5
      %v3460 = vmul.f32 %v3328, 0.5
      %v3461 = vmul.f32 %v3329, 0.5
      %v3462 = vmul.f32 %v3330, 0.5
      %v3463 = vmul.f32 %v3331, 0.5
      %v3464 = vmul.f32 %v3332, 0.5
      %v3465 = vmul.f32 %v3333, 0.5
      %v3466 = vmul.f32 %v3334, 0.5
      %v3467 = vmul.f32 %v3335, 0.5
      %v3468 = vmul.f32 %v3336, 0.5
      %v3469 = vmul.f32 %v3337, 0.5
      %v3470 = vmul.f32 %v3338, 0.5
      %v3471 = vmul.f32 %v3339, 0.5
      %v3472 = vmul.f32 %v3340, 0.5
      %v3473 = vmul.f32 %v3341, 0.5
      %v3474 = vmul.f32 %v3342, 0.5
      %v3475 = vmul.f32 %v3343, 0.5
      %v3476 = vmul.f32 %v3344, 0.5
      %v3477 = vmul.f32 %v3313, 0.70710677
      %v3478 = vmul.f32 %v3314, 0.70710677
      %v3479 = vmul.f32 %v3315, 0.70710677
      %v3480 = vmul.f32 %v3316, 0.70710677
      %v3481 = vmul.f32 %v3317, 0.70710677
      %v3482 = vmul.f32 %v3318, 0.70710677
      %v3483 = vmul.f32 %v3319, 0.70710677
      %v3484 = vmul.f32 %v3320, 0.70710677
      %v3485 = vmul.f32 %v3321, 0.70710677
      %v3486 = vmul.f32 %v3322, 0.70710677
      %v3487 = vmul.f32 %v3323, 0.70710677
      %v3488 = vmul.f32 %v3324, 0.70710677
      %v3489 = vmul.f32 %v3325, 0.70710677
      %v3490 = vmul.f32 %v3326, 0.70710677
      %v3491 = vmul.f32 %v3327, 0.70710677
      %v3492 = vmul.f32 %v3328, 0.70710677
      %v3493 = vmul.f32 %v3329, 0.70710677
      %v3494 = vmul.f32 %v3330, 0.70710677
      %v3495 = vmul.f32 %v3331, 0.70710677
      %v3496 = vmul.f32 %v3332, 0.70710677
      %v3497 = vmul.f32 %v3333, 0.70710677
      %v3498 = vmul.f32 %v3334, 0.70710677
      %v3499 = vmul.f32 %v3335, 0.70710677
      %v3500 = vmul.f32 %v3336, 0.70710677
      %v3501 = vmul.f32 %v3337, 0.70710677
      %v3502 = vmul.f32 %v3338, 0.70710677
      %v3503 = vmul.f32 %v3339, 0.70710677
      %v3504 = vmul.f32 %v3340, 0.70710677
      %v3505 = vmul.f32 %v3341, 0.70710677
      %v3506 = vmul.f32 %v3342, 0.70710677
      %v3507 = vmul.f32 %v3343, 0.70710677
      %v3508 = vmul.f32 %v3344, 0.70710677
      %vm3509 = vcmp.ge.f32.partialorder %v3477, 0.0
      %vm3510 = vcmp.ge.f32.partialorder %v3478, 0.0
      %vm3511 = vcmp.ge.f32.partialorder %v3479, 0.0
      %vm3512 = vcmp.ge.f32.partialorder %v3480, 0.0
      %vm3513 = vcmp.ge.f32.partialorder %v3481, 0.0
      %vm3514 = vcmp.ge.f32.partialorder %v3482, 0.0
      %vm3515 = vcmp.ge.f32.partialorder %v3483, 0.0
      %vm3516 = vcmp.ge.f32.partialorder %v3484, 0.0
      %vm3517 = vcmp.ge.f32.partialorder %v3485, 0.0
      %vm3518 = vcmp.ge.f32.partialorder %v3486, 0.0
      %vm3519 = vcmp.ge.f32.partialorder %v3487, 0.0
      %vm3520 = vcmp.ge.f32.partialorder %v3488, 0.0
      %vm3521 = vcmp.ge.f32.partialorder %v3489, 0.0
      %vm3522 = vcmp.ge.f32.partialorder %v3490, 0.0
      %vm3523 = vcmp.ge.f32.partialorder %v3491, 0.0
      %vm3524 = vcmp.ge.f32.partialorder %v3492, 0.0
      %vm3525 = vcmp.ge.f32.partialorder %v3493, 0.0
      %vm3526 = vcmp.ge.f32.partialorder %v3494, 0.0
      %vm3527 = vcmp.ge.f32.partialorder %v3495, 0.0
      %vm3528 = vcmp.ge.f32.partialorder %v3496, 0.0
      %vm3529 = vcmp.ge.f32.partialorder %v3497, 0.0
      %vm3530 = vcmp.ge.f32.partialorder %v3498, 0.0
      %vm3531 = vcmp.ge.f32.partialorder %v3499, 0.0
      %vm3532 = vcmp.ge.f32.partialorder %v3500, 0.0
      %vm3533 = vcmp.ge.f32.partialorder %v3501, 0.0
      %vm3534 = vcmp.ge.f32.partialorder %v3502, 0.0
      %vm3535 = vcmp.ge.f32.partialorder %v3503, 0.0
      %vm3536 = vcmp.ge.f32.partialorder %v3504, 0.0
      %vm3537 = vcmp.ge.f32.partialorder %v3505, 0.0
      %vm3538 = vcmp.ge.f32.partialorder %v3506, 0.0
      %vm3539 = vcmp.ge.f32.partialorder %v3507, 0.0
      %vm3540 = vcmp.ge.f32.partialorder %v3508, 0.0
      %v3541 = vsel %vm3509, 1.0, -1.0
      %v3542 = vsel %vm3510, 1.0, -1.0
      %v3543 = vsel %vm3511, 1.0, -1.0
      %v3544 = vsel %vm3512, 1.0, -1.0
      %v3545 = vsel %vm3513, 1.0, -1.0
      %v3546 = vsel %vm3514, 1.0, -1.0
      %v3547 = vsel %vm3515, 1.0, -1.0
      %v3548 = vsel %vm3516, 1.0, -1.0
      %v3549 = vsel %vm3517, 1.0, -1.0
      %v3550 = vsel %vm3518, 1.0, -1.0
      %v3551 = vsel %vm3519, 1.0, -1.0
      %v3552 = vsel %vm3520, 1.0, -1.0
      %v3553 = vsel %vm3521, 1.0, -1.0
      %v3554 = vsel %vm3522, 1.0, -1.0
      %v3555 = vsel %vm3523, 1.0, -1.0
      %v3556 = vsel %vm3524, 1.0, -1.0
      %v3557 = vsel %vm3525, 1.0, -1.0
      %v3558 = vsel %vm3526, 1.0, -1.0
      %v3559 = vsel %vm3527, 1.0, -1.0
      %v3560 = vsel %vm3528, 1.0, -1.0
      %v3561 = vsel %vm3529, 1.0, -1.0
      %v3562 = vsel %vm3530, 1.0, -1.0
      %v3563 = vsel %vm3531, 1.0, -1.0
      %v3564 = vsel %vm3532, 1.0, -1.0
      %v3565 = vsel %vm3533, 1.0, -1.0
      %v3566 = vsel %vm3534, 1.0, -1.0
      %v3567 = vsel %vm3535, 1.0, -1.0
      %v3568 = vsel %vm3536, 1.0, -1.0
      %v3569 = vsel %vm3537, 1.0, -1.0
      %v3570 = vsel %vm3538, 1.0, -1.0
      %v3571 = vsel %vm3539, 1.0, -1.0
      %v3572 = vsel %vm3540, 1.0, -1.0
      %v3573 = vand.u32 2147483647, %v3477
      %v3574 = vand.u32 2147483647, %v3478
      %v3575 = vand.u32 2147483647, %v3479
      %v3576 = vand.u32 2147483647, %v3480
      %v3577 = vand.u32 2147483647, %v3481
      %v3578 = vand.u32 2147483647, %v3482
      %v3579 = vand.u32 2147483647, %v3483
      %v3580 = vand.u32 2147483647, %v3484
      %v3581 = vand.u32 2147483647, %v3485
      %v3582 = vand.u32 2147483647, %v3486
      %v3583 = vand.u32 2147483647, %v3487
      %v3584 = vand.u32 2147483647, %v3488
      %v3585 = vand.u32 2147483647, %v3489
      %v3586 = vand.u32 2147483647, %v3490
      %v3587 = vand.u32 2147483647, %v3491
      %v3588 = vand.u32 2147483647, %v3492
      %v3589 = vand.u32 2147483647, %v3493
      %v3590 = vand.u32 2147483647, %v3494
      %v3591 = vand.u32 2147483647, %v3495
      %v3592 = vand.u32 2147483647, %v3496
      %v3593 = vand.u32 2147483647, %v3497
      %v3594 = vand.u32 2147483647, %v3498
      %v3595 = vand.u32 2147483647, %v3499
      %v3596 = vand.u32 2147483647, %v3500
      %v3597 = vand.u32 2147483647, %v3501
      %v3598 = vand.u32 2147483647, %v3502
      %v3599 = vand.u32 2147483647, %v3503
      %v3600 = vand.u32 2147483647, %v3504
      %v3601 = vand.u32 2147483647, %v3505
      %v3602 = vand.u32 2147483647, %v3506
      %v3603 = vand.u32 2147483647, %v3507
      %v3604 = vand.u32 2147483647, %v3508
      %v3605 = vmul.f32 %v3573, 0.3275911
      %v3606 = vmul.f32 %v3574, 0.3275911
      %v3607 = vmul.f32 %v3575, 0.3275911
      %v3608 = vmul.f32 %v3576, 0.3275911
      %v3609 = vmul.f32 %v3577, 0.3275911
      %v3610 = vmul.f32 %v3578, 0.3275911
      %v3611 = vmul.f32 %v3579, 0.3275911
      %v3612 = vmul.f32 %v3580, 0.3275911
      %v3613 = vmul.f32 %v3581, 0.3275911
      %v3614 = vmul.f32 %v3582, 0.3275911
      %v3615 = vmul.f32 %v3583, 0.3275911
      %v3616 = vmul.f32 %v3584, 0.3275911
      %v3617 = vmul.f32 %v3585, 0.3275911
      %v3618 = vmul.f32 %v3586, 0.3275911
      %v3619 = vmul.f32 %v3587, 0.3275911
      %v3620 = vmul.f32 %v3588, 0.3275911
      %v3621 = vmul.f32 %v3589, 0.3275911
      %v3622 = vmul.f32 %v3590, 0.3275911
      %v3623 = vmul.f32 %v3591, 0.3275911
      %v3624 = vmul.f32 %v3592, 0.3275911
      %v3625 = vmul.f32 %v3593, 0.3275911
      %v3626 = vmul.f32 %v3594, 0.3275911
      %v3627 = vmul.f32 %v3595, 0.3275911
      %v3628 = vmul.f32 %v3596, 0.3275911
      %v3629 = vmul.f32 %v3597, 0.3275911
      %v3630 = vmul.f32 %v3598, 0.3275911
      %v3631 = vmul.f32 %v3599, 0.3275911
      %v3632 = vmul.f32 %v3600, 0.3275911
      %v3633 = vmul.f32 %v3601, 0.3275911
      %v3634 = vmul.f32 %v3602, 0.3275911
      %v3635 = vmul.f32 %v3603, 0.3275911
      %v3636 = vmul.f32 %v3604, 0.3275911
      %v3637 = vadd.f32 %v3605, 1.0
      %v3638 = vadd.f32 %v3606, 1.0
      %v3639 = vadd.f32 %v3607, 1.0
      %v3640 = vadd.f32 %v3608, 1.0
      %v3641 = vadd.f32 %v3609, 1.0
      %v3642 = vadd.f32 %v3610, 1.0
      %v3643 = vadd.f32 %v3611, 1.0
      %v3644 = vadd.f32 %v3612, 1.0
      %v3645 = vadd.f32 %v3613, 1.0
      %v3646 = vadd.f32 %v3614, 1.0
      %v3647 = vadd.f32 %v3615, 1.0
      %v3648 = vadd.f32 %v3616, 1.0
      %v3649 = vadd.f32 %v3617, 1.0
      %v3650 = vadd.f32 %v3618, 1.0
      %v3651 = vadd.f32 %v3619, 1.0
      %v3652 = vadd.f32 %v3620, 1.0
      %v3653 = vadd.f32 %v3621, 1.0
      %v3654 = vadd.f32 %v3622, 1.0
      %v3655 = vadd.f32 %v3623, 1.0
      %v3656 = vadd.f32 %v3624, 1.0
      %v3657 = vadd.f32 %v3625, 1.0
      %v3658 = vadd.f32 %v3626, 1.0
      %v3659 = vadd.f32 %v3627, 1.0
      %v3660 = vadd.f32 %v3628, 1.0
      %v3661 = vadd.f32 %v3629, 1.0
      %v3662 = vadd.f32 %v3630, 1.0
      %v3663 = vadd.f32 %v3631, 1.0
      %v3664 = vadd.f32 %v3632, 1.0
      %v3665 = vadd.f32 %v3633, 1.0
      %v3666 = vadd.f32 %v3634, 1.0
      %v3667 = vadd.f32 %v3635, 1.0
      %v3668 = vadd.f32 %v3636, 1.0
      %v3669 = vrcp.pop %v3637
      %v3670 = vmul.f32 1.0, %v3669
      %v3671 = vrcp.pop %v3638
      %v3672 = vmul.f32 1.0, %v3671
      %v3673 = vrcp.pop %v3639
      %v3674 = vmul.f32 1.0, %v3673
      %v3675 = vrcp.pop %v3640
      %v3676 = vmul.f32 1.0, %v3675
      %v3677 = vrcp.pop %v3641
      %v3678 = vmul.f32 1.0, %v3677
      %v3679 = vrcp.pop %v3642
      %v3680 = vmul.f32 1.0, %v3679
      %v3681 = vrcp.pop %v3643
      %v3682 = vmul.f32 1.0, %v3681
      %v3683 = vrcp.pop %v3644
      %v3684 = vmul.f32 1.0, %v3683
      %v3685 = vrcp.pop %v3645
      %v3686 = vmul.f32 1.0, %v3685
      %v3687 = vrcp.pop %v3646
      %v3688 = vmul.f32 1.0, %v3687
      %v3689 = vrcp.pop %v3647
      %v3690 = vmul.f32 1.0, %v3689
      %v3691 = vrcp.pop %v3648
      %v3692 = vmul.f32 1.0, %v3691
      %v3693 = vrcp.pop %v3649
      %v3694 = vmul.f32 1.0, %v3693
      %v3695 = vrcp.pop %v3650
      %v3696 = vmul.f32 1.0, %v3695
      %v3697 = vrcp.pop %v3651
      %v3698 = vmul.f32 1.0, %v3697
      %v3699 = vrcp.pop %v3652
      %v3700 = vmul.f32 1.0, %v3699
      %v3701 = vrcp.pop %v3653
      %v3702 = vmul.f32 1.0, %v3701
      %v3703 = vrcp.pop %v3654
      %v3704 = vmul.f32 1.0, %v3703
      %v3705 = vrcp.pop %v3655
      %v3706 = vmul.f32 1.0, %v3705
      %v3707 = vrcp.pop %v3656
      %v3708 = vmul.f32 1.0, %v3707
      %v3709 = vrcp.pop %v3657
      %v3710 = vmul.f32 1.0, %v3709
      %v3711 = vrcp.pop %v3658
      %v3712 = vmul.f32 1.0, %v3711
      %v3713 = vrcp.pop %v3659
      %v3714 = vmul.f32 1.0, %v3713
      %v3715 = vrcp.pop %v3660
      %v3716 = vmul.f32 1.0, %v3715
      %v3717 = vrcp.pop %v3661
      %v3718 = vmul.f32 1.0, %v3717
      %v3719 = vrcp.pop %v3662
      %v3720 = vmul.f32 1.0, %v3719
      %v3721 = vrcp.pop %v3663
      %v3722 = vmul.f32 1.0, %v3721
      %v3723 = vrcp.pop %v3664
      %v3724 = vmul.f32 1.0, %v3723
      %v3725 = vrcp.pop %v3665
      %v3726 = vmul.f32 1.0, %v3725
      %v3727 = vrcp.pop %v3666
      %v3728 = vmul.f32 1.0, %v3727
      %v3729 = vrcp.pop %v3667
      %v3730 = vmul.f32 1.0, %v3729
      %v3731 = vrcp.pop %v3668
      %v3732 = vmul.f32 1.0, %v3731
      %v3733 = vmul.f32 %v3670, 1.0614054
      %v3734 = vmul.f32 %v3672, 1.0614054
      %v3735 = vmul.f32 %v3674, 1.0614054
      %v3736 = vmul.f32 %v3676, 1.0614054
      %v3737 = vmul.f32 %v3678, 1.0614054
      %v3738 = vmul.f32 %v3680, 1.0614054
      %v3739 = vmul.f32 %v3682, 1.0614054
      %v3740 = vmul.f32 %v3684, 1.0614054
      %v3741 = vmul.f32 %v3686, 1.0614054
      %v3742 = vmul.f32 %v3688, 1.0614054
      %v3743 = vmul.f32 %v3690, 1.0614054
      %v3744 = vmul.f32 %v3692, 1.0614054
      %v3745 = vmul.f32 %v3694, 1.0614054
      %v3746 = vmul.f32 %v3696, 1.0614054
      %v3747 = vmul.f32 %v3698, 1.0614054
      %v3748 = vmul.f32 %v3700, 1.0614054
      %v3749 = vmul.f32 %v3702, 1.0614054
      %v3750 = vmul.f32 %v3704, 1.0614054
      %v3751 = vmul.f32 %v3706, 1.0614054
      %v3752 = vmul.f32 %v3708, 1.0614054
      %v3753 = vmul.f32 %v3710, 1.0614054
      %v3754 = vmul.f32 %v3712, 1.0614054
      %v3755 = vmul.f32 %v3714, 1.0614054
      %v3756 = vmul.f32 %v3716, 1.0614054
      %v3757 = vmul.f32 %v3718, 1.0614054
      %v3758 = vmul.f32 %v3720, 1.0614054
      %v3759 = vmul.f32 %v3722, 1.0614054
      %v3760 = vmul.f32 %v3724, 1.0614054
      %v3761 = vmul.f32 %v3726, 1.0614054
      %v3762 = vmul.f32 %v3728, 1.0614054
      %v3763 = vmul.f32 %v3730, 1.0614054
      %v3764 = vmul.f32 %v3732, 1.0614054
      %v3765 = vadd.f32 %v3733, -1.4531521
      %v3766 = vadd.f32 %v3734, -1.4531521
      %v3767 = vadd.f32 %v3735, -1.4531521
      %v3768 = vadd.f32 %v3736, -1.4531521
      %v3769 = vadd.f32 %v3737, -1.4531521
      %v3770 = vadd.f32 %v3738, -1.4531521
      %v3771 = vadd.f32 %v3739, -1.4531521
      %v3772 = vadd.f32 %v3740, -1.4531521
      %v3773 = vadd.f32 %v3741, -1.4531521
      %v3774 = vadd.f32 %v3742, -1.4531521
      %v3775 = vadd.f32 %v3743, -1.4531521
      %v3776 = vadd.f32 %v3744, -1.4531521
      %v3777 = vadd.f32 %v3745, -1.4531521
      %v3778 = vadd.f32 %v3746, -1.4531521
      %v3779 = vadd.f32 %v3747, -1.4531521
      %v3780 = vadd.f32 %v3748, -1.4531521
      %v3781 = vadd.f32 %v3749, -1.4531521
      %v3782 = vadd.f32 %v3750, -1.4531521
      %v3783 = vadd.f32 %v3751, -1.4531521
      %v3784 = vadd.f32 %v3752, -1.4531521
      %v3785 = vadd.f32 %v3753, -1.4531521
      %v3786 = vadd.f32 %v3754, -1.4531521
      %v3787 = vadd.f32 %v3755, -1.4531521
      %v3788 = vadd.f32 %v3756, -1.4531521
      %v3789 = vadd.f32 %v3757, -1.4531521
      %v3790 = vadd.f32 %v3758, -1.4531521
      %v3791 = vadd.f32 %v3759, -1.4531521
      %v3792 = vadd.f32 %v3760, -1.4531521
      %v3793 = vadd.f32 %v3761, -1.4531521
      %v3794 = vadd.f32 %v3762, -1.4531521
      %v3795 = vadd.f32 %v3763, -1.4531521
      %v3796 = vadd.f32 %v3764, -1.4531521
      %v3797 = vmul.f32 %v3765, %v3670
      %v3798 = vmul.f32 %v3766, %v3672
      %v3799 = vmul.f32 %v3767, %v3674
      %v3800 = vmul.f32 %v3768, %v3676
      %v3801 = vmul.f32 %v3769, %v3678
      %v3802 = vmul.f32 %v3770, %v3680
      %v3803 = vmul.f32 %v3771, %v3682
      %v3804 = vmul.f32 %v3772, %v3684
      %v3805 = vmul.f32 %v3773, %v3686
      %v3806 = vmul.f32 %v3774, %v3688
      %v3807 = vmul.f32 %v3775, %v3690
      %v3808 = vmul.f32 %v3776, %v3692
      %v3809 = vmul.f32 %v3777, %v3694
      %v3810 = vmul.f32 %v3778, %v3696
      %v3811 = vmul.f32 %v3779, %v3698
      %v3812 = vmul.f32 %v3780, %v3700
      %v3813 = vmul.f32 %v3781, %v3702
      %v3814 = vmul.f32 %v3782, %v3704
      %v3815 = vmul.f32 %v3783, %v3706
      %v3816 = vmul.f32 %v3784, %v3708
      %v3817 = vmul.f32 %v3785, %v3710
      %v3818 = vmul.f32 %v3786, %v3712
      %v3819 = vmul.f32 %v3787, %v3714
      %v3820 = vmul.f32 %v3788, %v3716
      %v3821 = vmul.f32 %v3789, %v3718
      %v3822 = vmul.f32 %v3790, %v3720
      %v3823 = vmul.f32 %v3791, %v3722
      %v3824 = vmul.f32 %v3792, %v3724
      %v3825 = vmul.f32 %v3793, %v3726
      %v3826 = vmul.f32 %v3794, %v3728
      %v3827 = vmul.f32 %v3795, %v3730
      %v3828 = vmul.f32 %v3796, %v3732
      %v3829 = vadd.f32 %v3797, 1.4214138
      %v3830 = vadd.f32 %v3798, 1.4214138
      %v3831 = vadd.f32 %v3799, 1.4214138
      %v3832 = vadd.f32 %v3800, 1.4214138
      %v3833 = vadd.f32 %v3801, 1.4214138
      %v3834 = vadd.f32 %v3802, 1.4214138
      %v3835 = vadd.f32 %v3803, 1.4214138
      %v3836 = vadd.f32 %v3804, 1.4214138
      %v3837 = vadd.f32 %v3805, 1.4214138
      %v3838 = vadd.f32 %v3806, 1.4214138
      %v3839 = vadd.f32 %v3807, 1.4214138
      %v3840 = vadd.f32 %v3808, 1.4214138
      %v3841 = vadd.f32 %v3809, 1.4214138
      %v3842 = vadd.f32 %v3810, 1.4214138
      %v3843 = vadd.f32 %v3811, 1.4214138
      %v3844 = vadd.f32 %v3812, 1.4214138
      %v3845 = vadd.f32 %v3813, 1.4214138
      %v3846 = vadd.f32 %v3814, 1.4214138
      %v3847 = vadd.f32 %v3815, 1.4214138
      %v3848 = vadd.f32 %v3816, 1.4214138
      %v3849 = vadd.f32 %v3817, 1.4214138
      %v3850 = vadd.f32 %v3818, 1.4214138
      %v3851 = vadd.f32 %v3819, 1.4214138
      %v3852 = vadd.f32 %v3820, 1.4214138
      %v3853 = vadd.f32 %v3821, 1.4214138
      %v3854 = vadd.f32 %v3822, 1.4214138
      %v3855 = vadd.f32 %v3823, 1.4214138
      %v3856 = vadd.f32 %v3824, 1.4214138
      %v3857 = vadd.f32 %v3825, 1.4214138
      %v3858 = vadd.f32 %v3826, 1.4214138
      %v3859 = vadd.f32 %v3827, 1.4214138
      %v3860 = vadd.f32 %v3828, 1.4214138
      %v3861 = vmul.f32 %v3829, %v3670
      %v3862 = vmul.f32 %v3830, %v3672
      %v3863 = vmul.f32 %v3831, %v3674
      %v3864 = vmul.f32 %v3832, %v3676
      %v3865 = vmul.f32 %v3833, %v3678
      %v3866 = vmul.f32 %v3834, %v3680
      %v3867 = vmul.f32 %v3835, %v3682
      %v3868 = vmul.f32 %v3836, %v3684
      %v3869 = vmul.f32 %v3837, %v3686
      %v3870 = vmul.f32 %v3838, %v3688
      %v3871 = vmul.f32 %v3839, %v3690
      %v3872 = vmul.f32 %v3840, %v3692
      %v3873 = vmul.f32 %v3841, %v3694
      %v3874 = vmul.f32 %v3842, %v3696
      %v3875 = vmul.f32 %v3843, %v3698
      %v3876 = vmul.f32 %v3844, %v3700
      %v3877 = vmul.f32 %v3845, %v3702
      %v3878 = vmul.f32 %v3846, %v3704
      %v3879 = vmul.f32 %v3847, %v3706
      %v3880 = vmul.f32 %v3848, %v3708
      %v3881 = vmul.f32 %v3849, %v3710
      %v3882 = vmul.f32 %v3850, %v3712
      %v3883 = vmul.f32 %v3851, %v3714
      %v3884 = vmul.f32 %v3852, %v3716
      %v3885 = vmul.f32 %v3853, %v3718
      %v3886 = vmul.f32 %v3854, %v3720
      %v3887 = vmul.f32 %v3855, %v3722
      %v3888 = vmul.f32 %v3856, %v3724
      %v3889 = vmul.f32 %v3857, %v3726
      %v3890 = vmul.f32 %v3858, %v3728
      %v3891 = vmul.f32 %v3859, %v3730
      %v3892 = vmul.f32 %v3860, %v3732
      %v3893 = vadd.f32 %v3861, -0.28449672
      %v3894 = vadd.f32 %v3862, -0.28449672
      %v3895 = vadd.f32 %v3863, -0.28449672
      %v3896 = vadd.f32 %v3864, -0.28449672
      %v3897 = vadd.f32 %v3865, -0.28449672
      %v3898 = vadd.f32 %v3866, -0.28449672
      %v3899 = vadd.f32 %v3867, -0.28449672
      %v3900 = vadd.f32 %v3868, -0.28449672
      %v3901 = vadd.f32 %v3869, -0.28449672
      %v3902 = vadd.f32 %v3870, -0.28449672
      %v3903 = vadd.f32 %v3871, -0.28449672
      %v3904 = vadd.f32 %v3872, -0.28449672
      %v3905 = vadd.f32 %v3873, -0.28449672
      %v3906 = vadd.f32 %v3874, -0.28449672
      %v3907 = vadd.f32 %v3875, -0.28449672
      %v3908 = vadd.f32 %v3876, -0.28449672
      %v3909 = vadd.f32 %v3877, -0.28449672
      %v3910 = vadd.f32 %v3878, -0.28449672
      %v3911 = vadd.f32 %v3879, -0.28449672
      %v3912 = vadd.f32 %v3880, -0.28449672
      %v3913 = vadd.f32 %v3881, -0.28449672
      %v3914 = vadd.f32 %v3882, -0.28449672
      %v3915 = vadd.f32 %v3883, -0.28449672
      %v3916 = vadd.f32 %v3884, -0.28449672
      %v3917 = vadd.f32 %v3885, -0.28449672
      %v3918 = vadd.f32 %v3886, -0.28449672
      %v3919 = vadd.f32 %v3887, -0.28449672
      %v3920 = vadd.f32 %v3888, -0.28449672
      %v3921 = vadd.f32 %v3889, -0.28449672
      %v3922 = vadd.f32 %v3890, -0.28449672
      %v3923 = vadd.f32 %v3891, -0.28449672
      %v3924 = vadd.f32 %v3892, -0.28449672
      %v3925 = vmul.f32 %v3893, %v3670
      %v3926 = vmul.f32 %v3894, %v3672
      %v3927 = vmul.f32 %v3895, %v3674
      %v3928 = vmul.f32 %v3896, %v3676
      %v3929 = vmul.f32 %v3897, %v3678
      %v3930 = vmul.f32 %v3898, %v3680
      %v3931 = vmul.f32 %v3899, %v3682
      %v3932 = vmul.f32 %v3900, %v3684
      %v3933 = vmul.f32 %v3901, %v3686
      %v3934 = vmul.f32 %v3902, %v3688
      %v3935 = vmul.f32 %v3903, %v3690
      %v3936 = vmul.f32 %v3904, %v3692
      %v3937 = vmul.f32 %v3905, %v3694
      %v3938 = vmul.f32 %v3906, %v3696
      %v3939 = vmul.f32 %v3907, %v3698
      %v3940 = vmul.f32 %v3908, %v3700
      %v3941 = vmul.f32 %v3909, %v3702
      %v3942 = vmul.f32 %v3910, %v3704
      %v3943 = vmul.f32 %v3911, %v3706
      %v3944 = vmul.f32 %v3912, %v3708
      %v3945 = vmul.f32 %v3913, %v3710
      %v3946 = vmul.f32 %v3914, %v3712
      %v3947 = vmul.f32 %v3915, %v3714
      %v3948 = vmul.f32 %v3916, %v3716
      %v3949 = vmul.f32 %v3917, %v3718
      %v3950 = vmul.f32 %v3918, %v3720
      %v3951 = vmul.f32 %v3919, %v3722
      %v3952 = vmul.f32 %v3920, %v3724
      %v3953 = vmul.f32 %v3921, %v3726
      %v3954 = vmul.f32 %v3922, %v3728
      %v3955 = vmul.f32 %v3923, %v3730
      %v3956 = vmul.f32 %v3924, %v3732
      %v3957 = vadd.f32 %v3925, 0.2548296
      %v3958 = vadd.f32 %v3926, 0.2548296
      %v3959 = vadd.f32 %v3927, 0.2548296
      %v3960 = vadd.f32 %v3928, 0.2548296
      %v3961 = vadd.f32 %v3929, 0.2548296
      %v3962 = vadd.f32 %v3930, 0.2548296
      %v3963 = vadd.f32 %v3931, 0.2548296
      %v3964 = vadd.f32 %v3932, 0.2548296
      %v3965 = vadd.f32 %v3933, 0.2548296
      %v3966 = vadd.f32 %v3934, 0.2548296
      %v3967 = vadd.f32 %v3935, 0.2548296
      %v3968 = vadd.f32 %v3936, 0.2548296
      %v3969 = vadd.f32 %v3937, 0.2548296
      %v3970 = vadd.f32 %v3938, 0.2548296
      %v3971 = vadd.f32 %v3939, 0.2548296
      %v3972 = vadd.f32 %v3940, 0.2548296
      %v3973 = vadd.f32 %v3941, 0.2548296
      %v3974 = vadd.f32 %v3942, 0.2548296
      %v3975 = vadd.f32 %v3943, 0.2548296
      %v3976 = vadd.f32 %v3944, 0.2548296
      %v3977 = vadd.f32 %v3945, 0.2548296
      %v3978 = vadd.f32 %v3946, 0.2548296
      %v3979 = vadd.f32 %v3947, 0.2548296
      %v3980 = vadd.f32 %v3948, 0.2548296
      %v3981 = vadd.f32 %v3949, 0.2548296
      %v3982 = vadd.f32 %v3950, 0.2548296
      %v3983 = vadd.f32 %v3951, 0.2548296
      %v3984 = vadd.f32 %v3952, 0.2548296
      %v3985 = vadd.f32 %v3953, 0.2548296
      %v3986 = vadd.f32 %v3954, 0.2548296
      %v3987 = vadd.f32 %v3955, 0.2548296
      %v3988 = vadd.f32 %v3956, 0.2548296
      %v3989 = vmul.f32 %v3957, %v3670
      %v3990 = vmul.f32 %v3958, %v3672
      %v3991 = vmul.f32 %v3959, %v3674
      %v3992 = vmul.f32 %v3960, %v3676
      %v3993 = vmul.f32 %v3961, %v3678
      %v3994 = vmul.f32 %v3962, %v3680
      %v3995 = vmul.f32 %v3963, %v3682
      %v3996 = vmul.f32 %v3964, %v3684
      %v3997 = vmul.f32 %v3965, %v3686
      %v3998 = vmul.f32 %v3966, %v3688
      %v3999 = vmul.f32 %v3967, %v3690
      %v4000 = vmul.f32 %v3968, %v3692
      %v4001 = vmul.f32 %v3969, %v3694
      %v4002 = vmul.f32 %v3970, %v3696
      %v4003 = vmul.f32 %v3971, %v3698
      %v4004 = vmul.f32 %v3972, %v3700
      %v4005 = vmul.f32 %v3973, %v3702
      %v4006 = vmul.f32 %v3974, %v3704
      %v4007 = vmul.f32 %v3975, %v3706
      %v4008 = vmul.f32 %v3976, %v3708
      %v4009 = vmul.f32 %v3977, %v3710
      %v4010 = vmul.f32 %v3978, %v3712
      %v4011 = vmul.f32 %v3979, %v3714
      %v4012 = vmul.f32 %v3980, %v3716
      %v4013 = vmul.f32 %v3981, %v3718
      %v4014 = vmul.f32 %v3982, %v3720
      %v4015 = vmul.f32 %v3983, %v3722
      %v4016 = vmul.f32 %v3984, %v3724
      %v4017 = vmul.f32 %v3985, %v3726
      %v4018 = vmul.f32 %v3986, %v3728
      %v4019 = vmul.f32 %v3987, %v3730
      %v4020 = vmul.f32 %v3988, %v3732
      %v4021 = vsub.f32 0.0, %v3573
      %v4022 = vsub.f32 0.0, %v3574
      %v4023 = vsub.f32 0.0, %v3575
      %v4024 = vsub.f32 0.0, %v3576
      %v4025 = vsub.f32 0.0, %v3577
      %v4026 = vsub.f32 0.0, %v3578
      %v4027 = vsub.f32 0.0, %v3579
      %v4028 = vsub.f32 0.0, %v3580
      %v4029 = vsub.f32 0.0, %v3581
      %v4030 = vsub.f32 0.0, %v3582
      %v4031 = vsub.f32 0.0, %v3583
      %v4032 = vsub.f32 0.0, %v3584
      %v4033 = vsub.f32 0.0, %v3585
      %v4034 = vsub.f32 0.0, %v3586
      %v4035 = vsub.f32 0.0, %v3587
      %v4036 = vsub.f32 0.0, %v3588
      %v4037 = vsub.f32 0.0, %v3589
      %v4038 = vsub.f32 0.0, %v3590
      %v4039 = vsub.f32 0.0, %v3591
      %v4040 = vsub.f32 0.0, %v3592
      %v4041 = vsub.f32 0.0, %v3593
      %v4042 = vsub.f32 0.0, %v3594
      %v4043 = vsub.f32 0.0, %v3595
      %v4044 = vsub.f32 0.0, %v3596
      %v4045 = vsub.f32 0.0, %v3597
      %v4046 = vsub.f32 0.0, %v3598
      %v4047 = vsub.f32 0.0, %v3599
      %v4048 = vsub.f32 0.0, %v3600
      %v4049 = vsub.f32 0.0, %v3601
      %v4050 = vsub.f32 0.0, %v3602
      %v4051 = vsub.f32 0.0, %v3603
      %v4052 = vsub.f32 0.0, %v3604
      %v4053 = vmul.f32 %v4021, %v3573
      %v4054 = vmul.f32 %v4022, %v3574
      %v4055 = vmul.f32 %v4023, %v3575
      %v4056 = vmul.f32 %v4024, %v3576
      %v4057 = vmul.f32 %v4025, %v3577
      %v4058 = vmul.f32 %v4026, %v3578
      %v4059 = vmul.f32 %v4027, %v3579
      %v4060 = vmul.f32 %v4028, %v3580
      %v4061 = vmul.f32 %v4029, %v3581
      %v4062 = vmul.f32 %v4030, %v3582
      %v4063 = vmul.f32 %v4031, %v3583
      %v4064 = vmul.f32 %v4032, %v3584
      %v4065 = vmul.f32 %v4033, %v3585
      %v4066 = vmul.f32 %v4034, %v3586
      %v4067 = vmul.f32 %v4035, %v3587
      %v4068 = vmul.f32 %v4036, %v3588
      %v4069 = vmul.f32 %v4037, %v3589
      %v4070 = vmul.f32 %v4038, %v3590
      %v4071 = vmul.f32 %v4039, %v3591
      %v4072 = vmul.f32 %v4040, %v3592
      %v4073 = vmul.f32 %v4041, %v3593
      %v4074 = vmul.f32 %v4042, %v3594
      %v4075 = vmul.f32 %v4043, %v3595
      %v4076 = vmul.f32 %v4044, %v3596
      %v4077 = vmul.f32 %v4045, %v3597
      %v4078 = vmul.f32 %v4046, %v3598
      %v4079 = vmul.f32 %v4047, %v3599
      %v4080 = vmul.f32 %v4048, %v3600
      %v4081 = vmul.f32 %v4049, %v3601
      %v4082 = vmul.f32 %v4050, %v3602
      %v4083 = vmul.f32 %v4051, %v3603
      %v4084 = vmul.f32 %v4052, %v3604
      %v4085 = vmul.f32 %v4053, 1.442695
      %v4086 = vpow.pop %v4085
      %v4087 = vmul.f32 %v4054, 1.442695
      %v4088 = vpow.pop %v4087
      %v4089 = vmul.f32 %v4055, 1.442695
      %v4090 = vpow.pop %v4089
      %v4091 = vmul.f32 %v4056, 1.442695
      %v4092 = vpow.pop %v4091
      %v4093 = vmul.f32 %v4057, 1.442695
      %v4094 = vpow.pop %v4093
      %v4095 = vmul.f32 %v4058, 1.442695
      %v4096 = vpow.pop %v4095
      %v4097 = vmul.f32 %v4059, 1.442695
      %v4098 = vpow.pop %v4097
      %v4099 = vmul.f32 %v4060, 1.442695
      %v4100 = vpow.pop %v4099
      %v4101 = vmul.f32 %v4061, 1.442695
      %v4102 = vpow.pop %v4101
      %v4103 = vmul.f32 %v4062, 1.442695
      %v4104 = vpow.pop %v4103
      %v4105 = vmul.f32 %v4063, 1.442695
      %v4106 = vpow.pop %v4105
      %v4107 = vmul.f32 %v4064, 1.442695
      %v4108 = vpow.pop %v4107
      %v4109 = vmul.f32 %v4065, 1.442695
      %v4110 = vpow.pop %v4109
      %v4111 = vmul.f32 %v4066, 1.442695
      %v4112 = vpow.pop %v4111
      %v4113 = vmul.f32 %v4067, 1.442695
      %v4114 = vpow.pop %v4113
      %v4115 = vmul.f32 %v4068, 1.442695
      %v4116 = vpow.pop %v4115
      %v4117 = vmul.f32 %v4069, 1.442695
      %v4118 = vpow.pop %v4117
      %v4119 = vmul.f32 %v4070, 1.442695
      %v4120 = vpow.pop %v4119
      %v4121 = vmul.f32 %v4071, 1.442695
      %v4122 = vpow.pop %v4121
      %v4123 = vmul.f32 %v4072, 1.442695
      %v4124 = vpow.pop %v4123
      %v4125 = vmul.f32 %v4073, 1.442695
      %v4126 = vpow.pop %v4125
      %v4127 = vmul.f32 %v4074, 1.442695
      %v4128 = vpow.pop %v4127
      %v4129 = vmul.f32 %v4075, 1.442695
      %v4130 = vpow.pop %v4129
      %v4131 = vmul.f32 %v4076, 1.442695
      %v4132 = vpow.pop %v4131
      %v4133 = vmul.f32 %v4077, 1.442695
      %v4134 = vpow.pop %v4133
      %v4135 = vmul.f32 %v4078, 1.442695
      %v4136 = vpow.pop %v4135
      %v4137 = vmul.f32 %v4079, 1.442695
      %v4138 = vpow.pop %v4137
      %v4139 = vmul.f32 %v4080, 1.442695
      %v4140 = vpow.pop %v4139
      %v4141 = vmul.f32 %v4081, 1.442695
      %v4142 = vpow.pop %v4141
      %v4143 = vmul.f32 %v4082, 1.442695
      %v4144 = vpow.pop %v4143
      %v4145 = vmul.f32 %v4083, 1.442695
      %v4146 = vpow.pop %v4145
      %v4147 = vmul.f32 %v4084, 1.442695
      %v4148 = vpow.pop %v4147
      %v4149 = vmul.f32 %v3989, %v4086
      %v4150 = vmul.f32 %v3990, %v4088
      %v4151 = vmul.f32 %v3991, %v4090
      %v4152 = vmul.f32 %v3992, %v4092
      %v4153 = vmul.f32 %v3993, %v4094
      %v4154 = vmul.f32 %v3994, %v4096
      %v4155 = vmul.f32 %v3995, %v4098
      %v4156 = vmul.f32 %v3996, %v4100
      %v4157 = vmul.f32 %v3997, %v4102
      %v4158 = vmul.f32 %v3998, %v4104
      %v4159 = vmul.f32 %v3999, %v4106
      %v4160 = vmul.f32 %v4000, %v4108
      %v4161 = vmul.f32 %v4001, %v4110
      %v4162 = vmul.f32 %v4002, %v4112
      %v4163 = vmul.f32 %v4003, %v4114
      %v4164 = vmul.f32 %v4004, %v4116
      %v4165 = vmul.f32 %v4005, %v4118
      %v4166 = vmul.f32 %v4006, %v4120
      %v4167 = vmul.f32 %v4007, %v4122
      %v4168 = vmul.f32 %v4008, %v4124
      %v4169 = vmul.f32 %v4009, %v4126
      %v4170 = vmul.f32 %v4010, %v4128
      %v4171 = vmul.f32 %v4011, %v4130
      %v4172 = vmul.f32 %v4012, %v4132
      %v4173 = vmul.f32 %v4013, %v4134
      %v4174 = vmul.f32 %v4014, %v4136
      %v4175 = vmul.f32 %v4015, %v4138
      %v4176 = vmul.f32 %v4016, %v4140
      %v4177 = vmul.f32 %v4017, %v4142
      %v4178 = vmul.f32 %v4018, %v4144
      %v4179 = vmul.f32 %v4019, %v4146
      %v4180 = vmul.f32 %v4020, %v4148
      %v4181 = vsub.f32 1.0, %v4149
      %v4182 = vsub.f32 1.0, %v4150
      %v4183 = vsub.f32 1.0, %v4151
      %v4184 = vsub.f32 1.0, %v4152
      %v4185 = vsub.f32 1.0, %v4153
      %v4186 = vsub.f32 1.0, %v4154
      %v4187 = vsub.f32 1.0, %v4155
      %v4188 = vsub.f32 1.0, %v4156
      %v4189 = vsub.f32 1.0, %v4157
      %v4190 = vsub.f32 1.0, %v4158
      %v4191 = vsub.f32 1.0, %v4159
      %v4192 = vsub.f32 1.0, %v4160
      %v4193 = vsub.f32 1.0, %v4161
      %v4194 = vsub.f32 1.0, %v4162
      %v4195 = vsub.f32 1.0, %v4163
      %v4196 = vsub.f32 1.0, %v4164
      %v4197 = vsub.f32 1.0, %v4165
      %v4198 = vsub.f32 1.0, %v4166
      %v4199 = vsub.f32 1.0, %v4167
      %v4200 = vsub.f32 1.0, %v4168
      %v4201 = vsub.f32 1.0, %v4169
      %v4202 = vsub.f32 1.0, %v4170
      %v4203 = vsub.f32 1.0, %v4171
      %v4204 = vsub.f32 1.0, %v4172
      %v4205 = vsub.f32 1.0, %v4173
      %v4206 = vsub.f32 1.0, %v4174
      %v4207 = vsub.f32 1.0, %v4175
      %v4208 = vsub.f32 1.0, %v4176
      %v4209 = vsub.f32 1.0, %v4177
      %v4210 = vsub.f32 1.0, %v4178
      %v4211 = vsub.f32 1.0, %v4179
      %v4212 = vsub.f32 1.0, %v4180
      %v4213 = vmul.f32 %v3541, %v4181
      %v4214 = vmul.f32 %v3542, %v4182
      %v4215 = vmul.f32 %v3543, %v4183
      %v4216 = vmul.f32 %v3544, %v4184
      %v4217 = vmul.f32 %v3545, %v4185
      %v4218 = vmul.f32 %v3546, %v4186
      %v4219 = vmul.f32 %v3547, %v4187
      %v4220 = vmul.f32 %v3548, %v4188
      %v4221 = vmul.f32 %v3549, %v4189
      %v4222 = vmul.f32 %v3550, %v4190
      %v4223 = vmul.f32 %v3551, %v4191
      %v4224 = vmul.f32 %v3552, %v4192
      %v4225 = vmul.f32 %v3553, %v4193
      %v4226 = vmul.f32 %v3554, %v4194
      %v4227 = vmul.f32 %v3555, %v4195
      %v4228 = vmul.f32 %v3556, %v4196
      %v4229 = vmul.f32 %v3557, %v4197
      %v4230 = vmul.f32 %v3558, %v4198
      %v4231 = vmul.f32 %v3559, %v4199
      %v4232 = vmul.f32 %v3560, %v4200
      %v4233 = vmul.f32 %v3561, %v4201
      %v4234 = vmul.f32 %v3562, %v4202
      %v4235 = vmul.f32 %v3563, %v4203
      %v4236 = vmul.f32 %v3564, %v4204
      %v4237 = vmul.f32 %v3565, %v4205
      %v4238 = vmul.f32 %v3566, %v4206
      %v4239 = vmul.f32 %v3567, %v4207
      %v4240 = vmul.f32 %v3568, %v4208
      %v4241 = vmul.f32 %v3569, %v4209
      %v4242 = vmul.f32 %v3570, %v4210
      %v4243 = vmul.f32 %v3571, %v4211
      %v4244 = vmul.f32 %v3572, %v4212
      %v4245 = vadd.f32 %v4213, 1.0
      %v4246 = vadd.f32 %v4214, 1.0
      %v4247 = vadd.f32 %v4215, 1.0
      %v4248 = vadd.f32 %v4216, 1.0
      %v4249 = vadd.f32 %v4217, 1.0
      %v4250 = vadd.f32 %v4218, 1.0
      %v4251 = vadd.f32 %v4219, 1.0
      %v4252 = vadd.f32 %v4220, 1.0
      %v4253 = vadd.f32 %v4221, 1.0
      %v4254 = vadd.f32 %v4222, 1.0
      %v4255 = vadd.f32 %v4223, 1.0
      %v4256 = vadd.f32 %v4224, 1.0
      %v4257 = vadd.f32 %v4225, 1.0
      %v4258 = vadd.f32 %v4226, 1.0
      %v4259 = vadd.f32 %v4227, 1.0
      %v4260 = vadd.f32 %v4228, 1.0
      %v4261 = vadd.f32 %v4229, 1.0
      %v4262 = vadd.f32 %v4230, 1.0
      %v4263 = vadd.f32 %v4231, 1.0
      %v4264 = vadd.f32 %v4232, 1.0
      %v4265 = vadd.f32 %v4233, 1.0
      %v4266 = vadd.f32 %v4234, 1.0
      %v4267 = vadd.f32 %v4235, 1.0
      %v4268 = vadd.f32 %v4236, 1.0
      %v4269 = vadd.f32 %v4237, 1.0
      %v4270 = vadd.f32 %v4238, 1.0
      %v4271 = vadd.f32 %v4239, 1.0
      %v4272 = vadd.f32 %v4240, 1.0
      %v4273 = vadd.f32 %v4241, 1.0
      %v4274 = vadd.f32 %v4242, 1.0
      %v4275 = vadd.f32 %v4243, 1.0
      %v4276 = vadd.f32 %v4244, 1.0
      %v4277 = vmul.f32 %v3445, %v4245
      %v4278 = vmul.f32 %v3446, %v4246
      %v4279 = vmul.f32 %v3447, %v4247
      %v4280 = vmul.f32 %v3448, %v4248
      %v4281 = vmul.f32 %v3449, %v4249
      %v4282 = vmul.f32 %v3450, %v4250
      %v4283 = vmul.f32 %v3451, %v4251
      %v4284 = vmul.f32 %v3452, %v4252
      %v4285 = vmul.f32 %v3453, %v4253
      %v4286 = vmul.f32 %v3454, %v4254
      %v4287 = vmul.f32 %v3455, %v4255
      %v4288 = vmul.f32 %v3456, %v4256
      %v4289 = vmul.f32 %v3457, %v4257
      %v4290 = vmul.f32 %v3458, %v4258
      %v4291 = vmul.f32 %v3459, %v4259
      %v4292 = vmul.f32 %v3460, %v4260
      %v4293 = vmul.f32 %v3461, %v4261
      %v4294 = vmul.f32 %v3462, %v4262
      %v4295 = vmul.f32 %v3463, %v4263
      %v4296 = vmul.f32 %v3464, %v4264
      %v4297 = vmul.f32 %v3465, %v4265
      %v4298 = vmul.f32 %v3466, %v4266
      %v4299 = vmul.f32 %v3467, %v4267
      %v4300 = vmul.f32 %v3468, %v4268
      %v4301 = vmul.f32 %v3469, %v4269
      %v4302 = vmul.f32 %v3470, %v4270
      %v4303 = vmul.f32 %v3471, %v4271
      %v4304 = vmul.f32 %v3472, %v4272
      %v4305 = vmul.f32 %v3473, %v4273
      %v4306 = vmul.f32 %v3474, %v4274
      %v4307 = vmul.f32 %v3475, %v4275
      %v4308 = vmul.f32 %v3476, %v4276
      %v4309 = vmul.f32 %v4277, %v3413
      %v4310 = vmul.f32 %v4278, %v3414
      %v4311 = vmul.f32 %v4279, %v3415
      %v4312 = vmul.f32 %v4280, %v3416
      %v4313 = vmul.f32 %v4281, %v3417
      %v4314 = vmul.f32 %v4282, %v3418
      %v4315 = vmul.f32 %v4283, %v3419
      %v4316 = vmul.f32 %v4284, %v3420
      %v4317 = vmul.f32 %v4285, %v3421
      %v4318 = vmul.f32 %v4286, %v3422
      %v4319 = vmul.f32 %v4287, %v3423
      %v4320 = vmul.f32 %v4288, %v3424
      %v4321 = vmul.f32 %v4289, %v3425
      %v4322 = vmul.f32 %v4290, %v3426
      %v4323 = vmul.f32 %v4291, %v3427
      %v4324 = vmul.f32 %v4292, %v3428
      %v4325 = vmul.f32 %v4293, %v3429
      %v4326 = vmul.f32 %v4294, %v3430
      %v4327 = vmul.f32 %v4295, %v3431
      %v4328 = vmul.f32 %v4296, %v3432
      %v4329 = vmul.f32 %v4297, %v3433
      %v4330 = vmul.f32 %v4298, %v3434
      %v4331 = vmul.f32 %v4299, %v3435
      %v4332 = vmul.f32 %v4300, %v3436
      %v4333 = vmul.f32 %v4301, %v3437
      %v4334 = vmul.f32 %v4302, %v3438
      %v4335 = vmul.f32 %v4303, %v3439
      %v4336 = vmul.f32 %v4304, %v3440
      %v4337 = vmul.f32 %v4305, %v3441
      %v4338 = vmul.f32 %v4306, %v3442
      %v4339 = vmul.f32 %v4307, %v3443
      %v4340 = vmul.f32 %v4308, %v3444
      %v4341 = vpack.c.bf16 %v4310, %v4309
      %v4342 = vpack.c.bf16 %v4312, %v4311
      %v4343 = vpack.c.bf16 %v4314, %v4313
      %v4344 = vpack.c.bf16 %v4316, %v4315
      %v4345 = vpack.c.bf16 %v4318, %v4317
      %v4346 = vpack.c.bf16 %v4320, %v4319
      %v4347 = vpack.c.bf16 %v4322, %v4321
      %v4348 = vpack.c.bf16 %v4324, %v4323
      %v4349 = vpack.c.bf16 %v4326, %v4325
      %v4350 = vpack.c.bf16 %v4328, %v4327
      %v4351 = vpack.c.bf16 %v4330, %v4329
      %v4352 = vpack.c.bf16 %v4332, %v4331
      %v4353 = vpack.c.bf16 %v4334, %v4333
      %v4354 = vpack.c.bf16 %v4336, %v4335
      %v4355 = vpack.c.bf16 %v4338, %v4337
      %v4356 = vpack.c.bf16 %v4340, %v4339
      %v4357 = vld [vmem:[%s7] sm:$0xf]
      %v4358 = vld [vmem:[%s7 + $0x4] sm:$0xf]
      %v4359 = vld [vmem:[%s7 + $0x8] sm:$0xf]
      %v4360 = vld [vmem:[%s7 + $0xc] sm:$0xf]
      %v4361 = vld [vmem:[%s7 + $0x10] sm:$0xf]
      %v4362 = vld [vmem:[%s7 + $0x14] sm:$0x1]
      %v4369 = vunpack.c.l.b16 %v4357
      %v4370 = vunpack.c.l.b16 %v4358
      %v4371 = vunpack.c.l.b16 %v4359
      %v4372 = vunpack.c.l.b16 %v4360
      %v4373 = vunpack.c.l.b16 %v4361
      %v4374 = vunpack.c.l.b16 %v4362
      %v4375 = vpack.c.b16 %v4370, %v4369
      %v4376 = vpack.c.b16 %v4372, %v4371
      %v4377 = vpack.c.b16 %v4374, %v4373
      %v4381 = vsel %vm1461, %v4341, 0
      %v4384 = vsel %vm1461, %v4342, 0
      %v4387 = vsel %vm1461, %v4343, 0
      %v4390 = vsel %vm1461, %v4344, 0
      %v4393 = vsel %vm1461, %v4345, 0
      %v4396 = vsel %vm1461, %v4346, 0
      %v4399 = vsel %vm1461, %v4347, 0
      %v4402 = vsel %vm1461, %v4348, 0
      %v4405 = vsel %vm1461, %v4349, 0
      %v4408 = vsel %vm1461, %v4350, 0
      %v4411 = vsel %vm1461, %v4351, 0
      %v4414 = vsel %vm1461, %v4352, 0
      %v4417 = vsel %vm1461, %v4353, 0
      %v4420 = vsel %vm1461, %v4354, 0
      %v4423 = vsel %vm1461, %v4355, 0
      %v4426 = vsel %vm1461, %v4356, 0
      %vm4428 = vcmask 1044480
      %v4430 = vsel %vm4428, %v4377, 0
      %4432 = vmatprep.subr.bf16.mxu0 0
      %4433 = vmatpush1.bf16.msra.mxu0 %v4375
      %4434 = vmatprep.subr.bf16.mxu0 0
      %4435 = vmatpush1.bf16.msra.mxu0 %v4376
      %4436 = vmatprep.subr.bf16.mxu0 0
      %4437 = vmatpush1.bf16.msra.mxu0 %v4430
      %4438 = vmatprep.subr.bf16.mxu0 0
      %4439 = vmatpush1.bf16.msra.mxu0 0
      %4440 = vmatprep.subr.bf16.mxu0 0
      %4441 = vmatpush1.bf16.msra.mxu0 0
      %4442 = vmatprep.subr.bf16.mxu0 0
      %4443 = vmatpush1.bf16.msra.mxu0 0
      %4444 = vmatprep.subr.bf16.mxu0 0
      %4445 = vmatpush1.bf16.msra.mxu0 0
      %4446 = vmatprep.subr.bf16.mxu0 0
      %4447 = vmatpush1.bf16.msra.mxu0 0
      %4448 = vmatprep.subr.bf16.mxu0 0
      %4449 = vmatpush1.bf16.msra.mxu0 0
      %4450 = vmatprep.subr.bf16.mxu0 0
      %4451 = vmatpush1.bf16.msra.mxu0 0
      %4452 = vmatprep.subr.bf16.mxu0 0
      %4453 = vmatpush1.bf16.msra.mxu0 0
      %4454 = vmatprep.subr.bf16.mxu0 0
      %4455 = vmatpush1.bf16.msra.mxu0 0
      %4456 = vmatprep.subr.bf16.mxu0 0
      %4457 = vmatpush1.bf16.msra.mxu0 0
      %4458 = vmatprep.subr.bf16.mxu0 0
      %4459 = vmatpush1.bf16.msra.mxu0 0
      %4460 = vmatprep.subr.bf16.mxu0 0
      %4461 = vmatpush1.bf16.msra.mxu0 0
      %4462 = vmatprep.subr.bf16.mxu0 0
      %4463 = vmatpush1.bf16.msra.mxu0 0
      %4464 = vmatprep.mubr.bf16.mxu0 0
      %4465 = vmatmul.mubr.bf16.gmra.mrb[0].mxu0 %v4381
      %v4466 = vpop.f32.mrb[0].mxu0
      %v4467 = vadd.f32 0.0, %v4466
      %v4468 = vpop.f32.mrb[0].mxu0
      %v4469 = vpop.f32.mrb[0].mxu0
      %v4470 = vadd.f32 0.0, %v4469
      %v4471 = vpop.f32.mrb[0].mxu0
      %4472 = vmatprep.mubr.bf16.mxu0 0
      %4473 = vmatmul.mubr.bf16.gmra.mrb[0].mxu0 %v4384
      %v4474 = vpop.f32.mrb[0].mxu0
      %v4475 = vadd.f32 0.0, %v4474
      %v4476 = vpop.f32.mrb[0].mxu0
      %v4477 = vpop.f32.mrb[0].mxu0
      %v4478 = vadd.f32 0.0, %v4477
      %v4479 = vpop.f32.mrb[0].mxu0
      %4480 = vmatprep.mubr.bf16.mxu0 0
      %4481 = vmatmul.mubr.bf16.gmra.mrb[0].mxu0 %v4387
      %v4482 = vpop.f32.mrb[0].mxu0
      %v4483 = vadd.f32 0.0, %v4482
      %v4484 = vpop.f32.mrb[0].mxu0
      %v4485 = vpop.f32.mrb[0].mxu0
      %v4486 = vadd.f32 0.0, %v4485
      %v4487 = vpop.f32.mrb[0].mxu0
      %4488 = vmatprep.mubr.bf16.mxu0 0
      %4489 = vmatmul.mubr.bf16.gmra.mrb[0].mxu0 %v4390
      %v4490 = vpop.f32.mrb[0].mxu0
      %v4491 = vadd.f32 0.0, %v4490
      %v4492 = vpop.f32.mrb[0].mxu0
      %v4493 = vpop.f32.mrb[0].mxu0
      %v4494 = vadd.f32 0.0, %v4493
      %v4495 = vpop.f32.mrb[0].mxu0
      %4496 = vmatprep.mubr.bf16.mxu0 0
      %4497 = vmatmul.mubr.bf16.gmra.mrb[0].mxu0 %v4393
      %v4498 = vpop.f32.mrb[0].mxu0
      %v4499 = vadd.f32 0.0, %v4498
      %v4500 = vpop.f32.mrb[0].mxu0
      %v4501 = vpop.f32.mrb[0].mxu0
      %v4502 = vadd.f32 0.0, %v4501
      %v4503 = vpop.f32.mrb[0].mxu0
      %4504 = vmatprep.mubr.bf16.mxu0 0
      %4505 = vmatmul.mubr.bf16.gmra.mrb[0].mxu0 %v4396
      %v4506 = vpop.f32.mrb[0].mxu0
      %v4507 = vadd.f32 0.0, %v4506
      %v4508 = vpop.f32.mrb[0].mxu0
      %v4509 = vpop.f32.mrb[0].mxu0
      %v4510 = vadd.f32 0.0, %v4509
      %v4511 = vpop.f32.mrb[0].mxu0
      %4512 = vmatprep.mubr.bf16.mxu0 0
      %4513 = vmatmul.mubr.bf16.gmra.mrb[0].mxu0 %v4399
      %v4514 = vpop.f32.mrb[0].mxu0
      %v4515 = vadd.f32 0.0, %v4514
      %v4516 = vpop.f32.mrb[0].mxu0
      %v4517 = vpop.f32.mrb[0].mxu0
      %v4518 = vadd.f32 0.0, %v4517
      %v4519 = vpop.f32.mrb[0].mxu0
      %4520 = vmatprep.mubr.bf16.mxu0 0
      %4521 = vmatmul.mubr.bf16.gmra.mrb[0].mxu0 %v4402
      %v4522 = vpop.f32.mrb[0].mxu0
      %v4523 = vadd.f32 0.0, %v4522
      %v4524 = vpop.f32.mrb[0].mxu0
      %v4525 = vpop.f32.mrb[0].mxu0
      %v4526 = vadd.f32 0.0, %v4525
      %v4527 = vpop.f32.mrb[0].mxu0
      %4528 = vmatprep.mubr.bf16.mxu0 0
      %4529 = vmatmul.mubr.bf16.gmra.mrb[0].mxu0 %v4405
      %v4530 = vpop.f32.mrb[0].mxu0
      %v4531 = vadd.f32 0.0, %v4530
      %v4532 = vpop.f32.mrb[0].mxu0
      %v4533 = vpop.f32.mrb[0].mxu0
      %v4534 = vadd.f32 0.0, %v4533
      %v4535 = vpop.f32.mrb[0].mxu0
      %4536 = vmatprep.mubr.bf16.mxu0 0
      %4537 = vmatmul.mubr.bf16.gmra.mrb[0].mxu0 %v4408
      %v4538 = vpop.f32.mrb[0].mxu0
      %v4539 = vadd.f32 0.0, %v4538
      %v4540 = vpop.f32.mrb[0].mxu0
      %v4541 = vpop.f32.mrb[0].mxu0
      %v4542 = vadd.f32 0.0, %v4541
      %v4543 = vpop.f32.mrb[0].mxu0
      %4544 = vmatprep.mubr.bf16.mxu0 0
      %4545 = vmatmul.mubr.bf16.gmra.mrb[0].mxu0 %v4411
      %v4546 = vpop.f32.mrb[0].mxu0
      %v4547 = vadd.f32 0.0, %v4546
      %v4548 = vpop.f32.mrb[0].mxu0
      %v4549 = vpop.f32.mrb[0].mxu0
      %v4550 = vadd.f32 0.0, %v4549
      %v4551 = vpop.f32.mrb[0].mxu0
      %4552 = vmatprep.mubr.bf16.mxu0 0
      %4553 = vmatmul.mubr.bf16.gmra.mrb[0].mxu0 %v4414
      %v4554 = vpop.f32.mrb[0].mxu0
      %v4555 = vadd.f32 0.0, %v4554
      %v4556 = vpop.f32.mrb[0].mxu0
      %v4557 = vpop.f32.mrb[0].mxu0
      %v4558 = vadd.f32 0.0, %v4557
      %v4559 = vpop.f32.mrb[0].mxu0
      %4560 = vmatprep.mubr.bf16.mxu0 0
      %4561 = vmatmul.mubr.bf16.gmra.mrb[0].mxu0 %v4417
      %v4562 = vpop.f32.mrb[0].mxu0
      %v4563 = vadd.f32 0.0, %v4562
      %v4564 = vpop.f32.mrb[0].mxu0
      %v4565 = vpop.f32.mrb[0].mxu0
      %v4566 = vadd.f32 0.0, %v4565
      %v4567 = vpop.f32.mrb[0].mxu0
      %4568 = vmatprep.mubr.bf16.mxu0 0
      %4569 = vmatmul.mubr.bf16.gmra.mrb[0].mxu0 %v4420
      %v4570 = vpop.f32.mrb[0].mxu0
      %v4571 = vadd.f32 0.0, %v4570
      %v4572 = vpop.f32.mrb[0].mxu0
      %v4573 = vpop.f32.mrb[0].mxu0
      %v4574 = vadd.f32 0.0, %v4573
      %v4575 = vpop.f32.mrb[0].mxu0
      %4576 = vmatprep.mubr.bf16.mxu0 0
      %4577 = vmatmul.mubr.bf16.gmra.mrb[0].mxu0 %v4423
      %v4578 = vpop.f32.mrb[0].mxu0
      %v4579 = vadd.f32 0.0, %v4578
      %v4580 = vpop.f32.mrb[0].mxu0
      %v4581 = vpop.f32.mrb[0].mxu0
      %v4582 = vadd.f32 0.0, %v4581
      %v4583 = vpop.f32.mrb[0].mxu0
      %4584 = vmatprep.mubr.bf16.mxu0 0
      %4585 = vmatmul.mubr.bf16.gmra.mrb[0].mxu0 %v4426
      %v4586 = vpop.f32.mrb[0].mxu0
      %v4587 = vadd.f32 0.0, %v4586
      %v4588 = vpop.f32.mrb[0].mxu0
      %v4589 = vpop.f32.mrb[0].mxu0
      %v4590 = vadd.f32 0.0, %v4589
      %v4591 = vpop.f32.mrb[0].mxu0
      %4592 = vdwg.mxu0
      %4593 = vst.msk [vmem:[%s305] sm:$0xff] %vm339, %v4467
      %4594 = vst.msk [vmem:[%s305 + $0x8] sm:$0xff] %vm339, %v4470
      %4595 = vst.msk [vmem:[%s305 + $0x10] sm:$0xff] %vm339, %v4475
      %4596 = vst.msk [vmem:[%s305 + $0x18] sm:$0xff] %vm339, %v4478
      %4597 = vst.msk [vmem:[%s305 + $0x20] sm:$0xff] %vm339, %v4483
      %4598 = vst.msk [vmem:[%s305 + $0x28] sm:$0xff] %vm339, %v4486
      %4599 = vst.msk [vmem:[%s305 + $0x30] sm:$0xff] %vm339, %v4491
      %4600 = vst.msk [vmem:[%s305 + $0x38] sm:$0xff] %vm339, %v4494
      %4601 = vst.msk [vmem:[%s305 + $0x40] sm:$0xff] %vm339, %v4499
      %4602 = vst.msk [vmem:[%s305 + $0x48] sm:$0xff] %vm339, %v4502
      %4603 = vst.msk [vmem:[%s305 + $0x50] sm:$0xff] %vm339, %v4507
      %4604 = vst.msk [vmem:[%s305 + $0x58] sm:$0xff] %vm339, %v4510
      %4605 = vst.msk [vmem:[%s305 + $0x60] sm:$0xff] %vm339, %v4515
      %4606 = vst.msk [vmem:[%s305 + $0x68] sm:$0xff] %vm339, %v4518
      %4607 = vst.msk [vmem:[%s305 + $0x70] sm:$0xff] %vm339, %v4523
      %4608 = vst.msk [vmem:[%s305 + $0x78] sm:$0xff] %vm339, %v4526
      %4609 = vst.msk [vmem:[%s305 + $0x80] sm:$0xff] %vm339, %v4531
      %4610 = vst.msk [vmem:[%s305 + $0x88] sm:$0xff] %vm339, %v4534
      %4611 = vst.msk [vmem:[%s305 + $0x90] sm:$0xff] %vm339, %v4539
      %4612 = vst.msk [vmem:[%s305 + $0x98] sm:$0xff] %vm339, %v4542
      %4613 = vst.msk [vmem:[%s305 + $0xa0] sm:$0xff] %vm339, %v4547
      %4614 = vst.msk [vmem:[%s305 + $0xa8] sm:$0xff] %vm339, %v4550
      %4615 = vst.msk [vmem:[%s305 + $0xb0] sm:$0xff] %vm339, %v4555
      %4616 = vst.msk [vmem:[%s305 + $0xb8] sm:$0xff] %vm339, %v4558
      %4617 = vst.msk [vmem:[%s305 + $0xc0] sm:$0xff] %vm339, %v4563
      %4618 = vst.msk [vmem:[%s305 + $0xc8] sm:$0xff] %vm339, %v4566
      %4619 = vst.msk [vmem:[%s305 + $0xd0] sm:$0xff] %vm339, %v4571
      %4620 = vst.msk [vmem:[%s305 + $0xd8] sm:$0xff] %vm339, %v4574
      %4621 = vst.msk [vmem:[%s305 + $0xe0] sm:$0xff] %vm339, %v4579
      %4622 = vst.msk [vmem:[%s305 + $0xe8] sm:$0xff] %vm339, %v4582
      %4623 = vst.msk [vmem:[%s305 + $0xf0] sm:$0xff] %vm339, %v4587
      %4624 = vst.msk [vmem:[%s305 + $0xf8] sm:$0xff] %vm339, %v4590
      %p4625 = scmp.lt.s32.totalorder %s19, 1
      %s4626 = scalar_select %p4625, %s19, 1
      %s4627 = smul.addr %s4626, 32
      %s4628 = smul.addr %s4627, 8
      %s4629 = scalar_lea.vmem %s8, %s4628
      // Predicated region
      $region53: #{gated_dconv_feedforward.1} parent=51 // pred_check
        %p4630 = pneg %p210
      $region54: #{gated_dconv_feedforward.1} parent=51 // pred_check_branch
        %4632 = sbr.rel (%p4630) target = $region56
      $region55: #{gated_dconv_feedforward.1} parent=51 // pred_region
        _
      $region56: #{gated_dconv_feedforward.1} parent=51 // pred_fallthru
        _
    $region52: #{gated_dconv_feedforward.1} parent=5 // pred_fallthru
      _
    %p4633 = scmp.le.s32.totalorder 2, %s14
    // Predicated region
    $region57: #{gated_dconv_feedforward.1} parent=5 // pred_check
      %p4634 = pneg %p4633
    $region58: #{gated_dconv_feedforward.1} parent=5 // pred_check_branch
      %4636 = sbr.rel (%p4634) target = $region60
    $region59: #{gated_dconv_feedforward.1} parent=5 // pred_region
      %s4637 = ssub.s32 %s14, 2
      // Predicated region
      $region61: #{gated_dconv_feedforward.1} parent=59 // pred_check
        %p4638 = pneg %p216
      $region62: #{gated_dconv_feedforward.1} parent=59 // pred_check_branch
        %4640 = sbr.rel (%p4638) target = $region64
      $region63: #{gated_dconv_feedforward.1} parent=59 // pred_region
        %p4641 = scmp.lt.s32.totalorder %s20, 1
        %s4642 = scalar_select %p4641, %s20, 1
        %s4643 = smul.addr %s4642, 32
        %s4644 = smul.addr %s4643, 8
        %s4645 = scalar_lea.vmem %s8, %s4644
      $region64: #{gated_dconv_feedforward.1} parent=59 // pred_fallthru
        _
    $region60: #{gated_dconv_feedforward.1} parent=5 // pred_fallthru
      _
  $region6: #{gated_dconv_feedforward.1} parent=0 // loop_footer
    %s18 = sadd.s32 1, %s14
  $region7: #{gated_dconv_feedforward.1} parent=0 // loop_footer_branch
    %13 = sbr.rel target = $region3
  $region8: #{gated_dconv_feedforward.1} parent=0 // loop_exit
    _

</llo_original>
